<compile_context>
chip_gen: v7x
topology: tpu7x:2x2x1
jax: 0.10.0
libtpu: 0.0.40
codegen_flags: <defaults>
</compile_context>

<pallas_src>
import jax
import jax.numpy as jnp
from jax import lax
from jax.experimental import pallas as pl
from jax.experimental.pallas import tpu as pltpu

_BN_EPS = 1e-3                 # matches nn.BatchNorm2d(eps=0.001)
_LANE = 128                    # TPU lane width; hidden/out channel dims padded to this
_PAD_H = 6                     # max kernel 13 -> pad 6 on each H side
_WPAD = 8                      # W pad on each side: >=6 needed, 8 keeps the
                               # interior store sublane (8) aligned
# Scoped VMEM limit: v5e/v6e have 128 MiB physical VMEM, v7x only 64 MiB.
# 48 MiB is safe on all three and far above this kernel's working set.
_VMEM_LIMIT = 48 * 1024 * 1024


def _round_up(x, m):
    return (x + m - 1) // m * m


def _pick_images_per_block(n, max_nb=4):
    """Images per grid step: >=2 grid blocks when N>=2 (feeds both v7x
    TensorCores via the 'parallel' axis), up to max_nb images per block to
    amortize per-step overhead for larger batches."""
    if n <= 1:
        return 1
    best = 1
    for nb in range(1, min(max_nb, n // 2) + 1):
        if n % nb == 0:
            best = nb
    return best


# ----------------------------------------------------------------------------
# Fused kernel: conv1 (1x1+BN+SiLU) -> SPP (5/9/13 max pools) -> conv2
# (1x1+BN+SiLU), one block of images per grid step.
#
#   x_ref : (Nb, H, W, Cin)        f32   (unpadded channels, cast in-kernel)
#   w1_ref: (Cin, Cp)              bf16  (folded BN)
#   b1_ref: (1, Cp)                f32
#   w2_ref: (4*Cp, Coutp)          bf16  (folded BN; 4 branch blocks of Cp rows)
#   b2_ref: (1, Coutp)             f32
#   o_ref : (Nb, H, W, Coutp)      f32
#   xp_ref: (Nb, H+12, W+16, Cp)   bf16  VMEM scratch (-inf padded tile)
# ----------------------------------------------------------------------------
def _spp_fused_kernel(x_ref, w1_ref, b1_ref, w2_ref, b2_ref, o_ref, xp_ref):
    nb, H, W, cin = x_ref.shape
    cp = w1_ref.shape[1]
    coutp = o_ref.shape[-1]
    hp = H + 2 * _PAD_H
    wp = W + 2 * _WPAD
    dt = xp_ref.dtype
    neg = jnp.finfo(dt).min          # -inf-like pad; every window has a real cell

    # ---- conv1: 1x1 conv + folded-BN bias + SiLU (bf16 MXU, f32 accumulate) --
    # W % 8 == 0 in practice, so collapsing (Nb,H,W)->M is layout-preserving.
    x = x_ref[...].astype(jnp.bfloat16).reshape(nb * H * W, cin)
    y = jnp.dot(x, w1_ref[...], preferred_element_type=jnp.float32) + b1_ref[...]
    y = (y * jax.nn.sigmoid(y)).astype(dt)          # SiLU in f32 -> bf16
    y4 = y.reshape(nb, H, W, cp)

    # ---- -inf border strips (interior is fully overwritten every step, so no
    #      full-buffer refill; strip refill stays correct even when the grid
    #      axis is sharded across TensorCores). -------------------------------
    xp_ref[:, 0:_PAD_H, :, :] = jnp.full((nb, _PAD_H, wp, cp), neg, dt)
    xp_ref[:, _PAD_H + H:, :, :] = jnp.full((nb, _PAD_H, wp, cp), neg, dt)
    xp_ref[:, _PAD_H:_PAD_H + H, 0:_WPAD, :] = jnp.full((nb, H, _WPAD, cp), neg, dt)
    xp_ref[:, _PAD_H:_PAD_H + H, _WPAD + W:, :] = jnp.full((nb, H, _WPAD, cp), neg, dt)
    # Interior store: W offset 8 (sublane aligned) -> lane- and sublane-dense.
    xp_ref[:, _PAD_H:_PAD_H + H, _WPAD:_WPAD + W, :] = y4
    xp = xp_ref[...]

    # ---- W-axis (sublane) hierarchical pooling first: only 6 shifted maxes --
    # cw2[u] = max(xp cols u..u+4); cw4[u] = max(cols u..u+8); cw6 = u..u+12.
    cw2 = xp[:, :, 0:wp - 4]
    for d in range(1, 5):
        cw2 = jnp.maximum(cw2, xp[:, :, d:d + wp - 4])
    cw4 = jnp.maximum(cw2[:, :, 0:wp - 8], cw2[:, :, 4:wp - 4])
    cw6 = jnp.maximum(cw4[:, :, 0:wp - 12], cw4[:, :, 4:wp - 8])
    # Output col j maps to padded col 8+j; window [8+j-r, 8+j+r].
    w5 = cw2[:, :, 6:6 + W]      # radius 2
    w9 = cw4[:, :, 4:4 + W]      # radius 4
    w13 = cw6[:, :, 2:2 + W]     # radius 6

    # ---- H-axis per-branch hierarchical pooling (outer-dim slices, cheap) ---
    def hpool(a, radius):
        r2 = a[:, 0:hp - 4]
        for d in range(1, 5):
            r2 = jnp.maximum(r2, a[:, d:d + hp - 4])
        if radius == 2:
            return r2[:, 4:4 + H]
        r4 = jnp.maximum(r2[:, 0:hp - 8], r2[:, 4:hp - 4])
        if radius == 4:
            return r4[:, 2:2 + H]
        r6 = jnp.maximum(r4[:, 0:hp - 12], r4[:, 4:hp - 8])
        return r6[:, 0:H]

    p5, p9, p13 = hpool(w5, 2), hpool(w9, 4), hpool(w13, 6)
    # TODO(synk): on v5e (no bf16 VALU) pooling in f32 would cut unpack/repack
    # pressure; kept bf16 here for the common v6e/v7x case.

    # ---- conv2: single K=4*Cp matmul on the lane-concatenated branches ------
    cat = jnp.concatenate([y4, p5, p9, p13], axis=-1)       # (Nb,H,W,4*Cp) bf16
    cat2 = cat.reshape(nb * H * W, 4 * cp)
    z = jnp.dot(cat2, w2_ref[...], preferred_element_type=jnp.float32) + b2_ref[...]
    z = z * jax.nn.sigmoid(z)                                # SiLU in f32
    o_ref[...] = z.reshape(nb, H, W, coutp).astype(o_ref.dtype)


def spp_fused(x_nhwc, w1, b1, w2, b2, images_per_block=None):
    N, H, W, cin = x_nhwc.shape
    cp = w1.shape[1]
    coutp = w2.shape[1]
    nb = images_per_block or _pick_images_per_block(N)
    n_pad = _round_up(N, nb)
    if n_pad != N:
        x_nhwc = jnp.pad(x_nhwc, ((0, n_pad - N), (0, 0), (0, 0), (0, 0)))

    hp, wp = H + 2 * _PAD_H, W + 2 * _WPAD
    # TODO(synk): add spatial (halo=6) H blocking for very large feature maps;
    # at SPP resolutions (13-40 px) one image block fits VMEM comfortably.
    out = pl.pallas_call(
        _spp_fused_kernel,
        out_shape=jax.ShapeDtypeStruct((n_pad, H, W, coutp), jnp.float32),
        grid=(n_pad // nb,),
        in_specs=[
            pl.BlockSpec((nb, H, W, cin), lambda n: (n, 0, 0, 0)),
            pl.BlockSpec((cin, cp), lambda n: (0, 0)),
            pl.BlockSpec((1, cp), lambda n: (0, 0)),
            pl.BlockSpec((4 * cp, coutp), lambda n: (0, 0)),
            pl.BlockSpec((1, coutp), lambda n: (0, 0)),
        ],
        out_specs=pl.BlockSpec((nb, H, W, coutp), lambda n: (n, 0, 0, 0)),
        scratch_shapes=[pltpu.VMEM((nb, hp, wp, cp), jnp.bfloat16)],
        compiler_params=pltpu.CompilerParams(
            dimension_semantics=("parallel",),
            vmem_limit_bytes=_VMEM_LIMIT),
    )(x_nhwc, w1, b1, w2, b2)
    return out[:N]


# ----------------------------------------------------------------------------
# Parameter setup: deterministic init, BN folding, lane padding, bf16 weights.
# ----------------------------------------------------------------------------
def _fold_bn(w_oi, gamma, beta, mean, var, eps=_BN_EPS):
    # w_oi: (Cout, Cin) from PyTorch Conv2d weight (Cout, Cin, 1, 1).
    scale = gamma / jnp.sqrt(var + eps)
    w_folded = (w_oi * scale[:, None]).T          # (Cin, Cout)
    b_folded = (beta - mean * scale)[None, :]     # (1, Cout)
    return w_folded, b_folded


def init_raw_params(key, in_channels, out_channels):
    hidden = in_channels // 2
    conv2_in = hidden * 4
    k = jax.random.split(key, 10)

    def bn(kg, kb, km, kv, c):
        g = jax.random.uniform(kg, (c,), jnp.float32, 0.5, 1.5)
        b = 0.1 * jax.random.normal(kb, (c,), jnp.float32)
        m = 0.1 * jax.random.normal(km, (c,), jnp.float32)
        v = jax.random.uniform(kv, (c,), jnp.float32, 0.5, 1.5)
        return g, b, m, v

    w1 = 0.2 * jax.random.normal(k[0], (hidden, in_channels), jnp.float32)
    w2 = 0.2 * jax.random.normal(k[5], (out_channels, conv2_in), jnp.float32)
    return {"conv1": (w1, *bn(k[1], k[2], k[3], k[4], hidden)),
            "conv2": (w2, *bn(k[6], k[7], k[8], k[9], out_channels))}


def prepare_params(raw, in_channels, out_channels):
    """Fold BN, pad hidden/output channels to the lane width (128), cast the
    matmul weights to bf16.  Input channels stay UNPADDED (x is read raw)."""
    hidden = in_channels // 2
    ch_p = _round_up(hidden, _LANE)
    cout_p = _round_up(out_channels, _LANE)

    fw1, fb1 = _fold_bn(*raw["conv1"])            # (Cin, hidden), (1, hidden)
    fw2, fb2 = _fold_bn(*raw["conv2"])            # (4*hidden, Cout), (1, Cout)

    w1p = jnp.zeros((in_channels, ch_p), jnp.float32).at[:, :hidden].set(fw1)
    b1p = jnp.zeros((1, ch_p), jnp.float32).at[:, :hidden].set(fb1)

    # conv2 weight laid out as 4 branch blocks of ch_p rows each
    # (concat order: identity, pool5, pool9, pool13). Padded rows/cols are zero.
    w2p = jnp.zeros((4 * ch_p, cout_p), jnp.float32)
    for b in range(4):
        w2p = w2p.at[b * ch_p:b * ch_p + hidden, :out_channels].set(
            fw2[b * hidden:(b + 1) * hidden, :])
    b2p = jnp.zeros((1, cout_p), jnp.float32).at[:, :out_channels].set(fb2)

    return {
        "conv1_w": w1p.astype(jnp.bfloat16), "conv1_b": b1p,
        "conv2_w": w2p.astype(jnp.bfloat16), "conv2_b": b2p,
        "cin": in_channels, "hidden": hidden, "hidden_p": ch_p,
        "cout": out_channels, "cout_p": cout_p,
    }


# ----------------------------------------------------------------------------
# SPPBottleneck forward (Pallas).
# ----------------------------------------------------------------------------
def spp_bottleneck(x_nchw, p, images_per_block=None):
    N, cin, H, W = x_nchw.shape
    assert cin == p["cin"]
    # NCHW <-> NHWC glue kept at the boundary for PyTorch interface parity.
    x = jnp.transpose(x_nchw, (0, 2, 3, 1))                 # (N, H, W, Cin) f32
    z = spp_fused(x, p["conv1_w"], p["conv1_b"], p["conv2_w"], p["conv2_b"],
                  images_per_block=images_per_block)        # (N, H, W, cout_p) f32
    z = z[..., :p["cout"]]
    return jnp.transpose(z, (0, 3, 1, 2))


# ----------------------------------------------------------------------------
# Pure-JAX references for correctness checking.
# ----------------------------------------------------------------------------
def reference_f32(x_nchw, raw):
    """Full-f32 reference (eval-mode BN), NCHW."""
    def conv_bn_silu(x, w, g, b, m, v):
        y = jnp.einsum("nchw,oc->nohw", x, w)
        y = (y - m[None, :, None, None]) / jnp.sqrt(v[None, :, None, None] + _BN_EPS)
        y = y * g[None, :, None, None] + b[None, :, None, None]
        return y * jax.nn.sigmoid(y)

    def maxpool(x, k):
        p = k // 2
        return lax.reduce_window(x, -jnp.inf, lax.max, (1, 1, k, k), (1, 1, 1, 1),
                                 ((0, 0), (0, 0), (p, p), (p, p)))

    y = conv_bn_silu(x_nchw, *raw["conv1"])
    cat = jnp.concatenate([y, maxpool(y, 5), maxpool(y, 9), maxpool(y, 13)], axis=1)
    return conv_bn_silu(cat, *raw["conv2"])


def reference_bf16(x_nchw, raw):
    """Reference mirroring the kernel's numeric recipe: folded BN, bf16 matmul
    inputs with f32 accumulation, f32 SiLU, bf16 intermediate."""
    fw1, fb1 = _fold_bn(*raw["conv1"])
    fw2, fb2 = _fold_bn(*raw["conv2"])
    x = jnp.transpose(x_nchw, (0, 2, 3, 1))
    N, H, W, cin = x.shape
    y = jnp.dot(x.reshape(-1, cin).astype(jnp.bfloat16), fw1.astype(jnp.bfloat16),
                preferred_element_type=jnp.float32) + fb1
    y = (y * jax.nn.sigmoid(y)).astype(jnp.bfloat16).reshape(N, H, W, -1)

    yf = y.astype(jnp.float32)

    def maxpool(a, k):
        p = k // 2
        return lax.reduce_window(a, -jnp.inf, lax.max, (1, k, k, 1), (1, 1, 1, 1),
                                 ((0, 0), (p, p), (p, p), (0, 0)))

    cat = jnp.concatenate([yf, maxpool(yf, 5), maxpool(yf, 9), maxpool(yf, 13)],
                          axis=-1)
    z = jnp.dot(cat.reshape(N * H * W, -1).astype(jnp.bfloat16),
                fw2.astype(jnp.bfloat16), preferred_element_type=jnp.float32) + fb2
    z = (z * jax.nn.sigmoid(z)).reshape(N, H, W, -1)
    return jnp.transpose(z, (0, 3, 1, 2))


if __name__ == "__main__":
    key = jax.random.PRNGKey(0)
    k_x, k_p = jax.random.split(key)

    in_channels, out_channels = 4, 4
    x = jax.random.normal(k_x, (2, in_channels, 16, 16), jnp.float32)  # NCHW

    raw = init_raw_params(k_p, in_channels, out_channels)
    params = prepare_params(raw, in_channels, out_channels)

    out = jax.block_until_ready(spp_bottleneck(x, params))
    ref_b = jax.block_until_ready(reference_bf16(x, raw))
    ref_f = jax.block_until_ready(reference_f32(x, raw))

    assert out.shape == ref_f.shape == (2, out_channels, 16, 16)
    err_b = float(jnp.max(jnp.abs(out - ref_b)))
    err_f = float(jnp.max(jnp.abs(out - ref_f)))
    # Tight check vs the reference that uses the same bf16-matmul recipe.
    assert err_b < 5e-3, f"mismatch vs bf16-recipe reference: {err_b}"
    # Loose sanity check vs the full-f32 reference (bf16 rounding tolerance).
    assert err_f < 0.25, f"mismatch vs f32 reference: {err_f}"

    print("KERNEL_OK")
</pallas_src>

<mosaic_0001>
module attributes {stable_mosaic.version = 11 : i64} {
  func.func @_spp_fused_kernel(%arg0: i32, %arg1: memref<1x16x16x4xf32, #tpu.memory_space<vmem>>, %arg2: memref<4x128xbf16, #tpu.memory_space<vmem>>, %arg3: memref<1x128xf32, #tpu.memory_space<vmem>>, %arg4: memref<512x128xbf16, #tpu.memory_space<vmem>>, %arg5: memref<1x128xf32, #tpu.memory_space<vmem>>, %arg6: memref<1x16x16x128xf32, #tpu.memory_space<vmem>>, %arg7: memref<1x28x32x128xbf16, #tpu.memory_space<vmem>>) attributes {dimension_semantics = [#tpu.dimension_semantics<parallel>], iteration_bounds = array<i64: 2>, scalar_prefetch = 0 : i64, scratch_operands = 1 : i64, tpu.core_type = #tpu.core_type<tc>, window_params = [{transform_indices = @transform_0, window_bounds = array<i64: 1, 16, 16, 4>}, {pipeline_mode = #tpu.pipeline_mode<synchronous>, transform_indices = @transform_1, window_bounds = array<i64: 4, 128>}, {pipeline_mode = #tpu.pipeline_mode<synchronous>, transform_indices = @transform_2, window_bounds = array<i64: 1, 128>}, {pipeline_mode = #tpu.pipeline_mode<synchronous>, transform_indices = @transform_3, window_bounds = array<i64: 512, 128>}, {pipeline_mode = #tpu.pipeline_mode<synchronous>, transform_indices = @transform_4, window_bounds = array<i64: 1, 128>}, {transform_indices = @transform_5, window_bounds = array<i64: 1, 16, 16, 128>}]} {
    %c0 = arith.constant 0 : index
    %c0_0 = arith.constant 0 : index
    %c0_1 = arith.constant 0 : index
    %c0_2 = arith.constant 0 : index
    %0 = vector.load %arg1[%c0, %c0_0, %c0_1, %c0_2] : memref<1x16x16x4xf32, #tpu.memory_space<vmem>>, vector<1x16x16x4xf32>
    %1 = arith.truncf %0 : vector<1x16x16x4xf32> to vector<1x16x16x4xbf16>
    %2 = vector.shape_cast %1 : vector<1x16x16x4xbf16> to vector<256x4xbf16>
    %c0_3 = arith.constant 0 : index
    %c0_4 = arith.constant 0 : index
    %3 = vector.load %arg2[%c0_3, %c0_4] : memref<4x128xbf16, #tpu.memory_space<vmem>>, vector<4x128xbf16>
    %cst = arith.constant dense<0.000000e+00> : vector<256x128xf32>
    %4 = tpu.matmul %2, %3, %cst {dimension_numbers = #tpu.dot_dimension_numbers<[1], [0], [0], [1], [0, 0, 1, 1], [], []>} : vector<256x4xbf16>, vector<4x128xbf16>, vector<256x128xf32> -> vector<256x128xf32>
    %c0_5 = arith.constant 0 : index
    %c0_6 = arith.constant 0 : index
    %5 = vector.load %arg3[%c0_5, %c0_6] : memref<1x128xf32, #tpu.memory_space<vmem>>, vector<1x128xf32>
    %6 = vector.broadcast %5 : vector<1x128xf32> to vector<256x128xf32>
    %7 = arith.addf %4, %6 : vector<256x128xf32>
    %8 = arith.negf %7 : vector<256x128xf32>
    %9 = math.exp %8 : vector<256x128xf32>
    %cst_7 = arith.constant 1.000000e+00 : f32
    %10 = vector.broadcast %cst_7 : f32 to vector<256x128xf32>
    %11 = arith.addf %10, %9 : vector<256x128xf32>
    %12 = arith.divf %10, %11 : vector<256x128xf32>
    %13 = arith.mulf %7, %12 : vector<256x128xf32>
    %14 = arith.truncf %13 : vector<256x128xf32> to vector<256x128xbf16>
    %15 = vector.shape_cast %14 : vector<256x128xbf16> to vector<1x16x16x128xbf16>
    %cst_8 = arith.constant -3.389530e+38 : bf16
    %16 = vector.broadcast %cst_8 : bf16 to vector<1x6x32x128xbf16>
    %c0_9 = arith.constant 0 : index
    %c0_10 = arith.constant 0 : index
    %c0_11 = arith.constant 0 : index
    %c0_12 = arith.constant 0 : index
    %17 = vector.load %arg7[%c0_9, %c0_10, %c0_11, %c0_12] : memref<1x28x32x128xbf16, #tpu.memory_space<vmem>>, vector<1x6x32x128xbf16>
    tpu.vector_store %arg7[%c0_9, %c0_10, %c0_11, %c0_12], %16 {strides = array<i32>} : memref<1x28x32x128xbf16, #tpu.memory_space<vmem>>, vector<1x6x32x128xbf16>,
    %cst_13 = arith.constant -3.389530e+38 : bf16
    %18 = vector.broadcast %cst_13 : bf16 to vector<1x6x32x128xbf16>
    %c0_14 = arith.constant 0 : index
    %c22 = arith.constant 22 : index
    %c0_15 = arith.constant 0 : index
    %c0_16 = arith.constant 0 : index
    %19 = vector.load %arg7[%c0_14, %c22, %c0_15, %c0_16] : memref<1x28x32x128xbf16, #tpu.memory_space<vmem>>, vector<1x6x32x128xbf16>
    tpu.vector_store %arg7[%c0_14, %c22, %c0_15, %c0_16], %18 {strides = array<i32>} : memref<1x28x32x128xbf16, #tpu.memory_space<vmem>>, vector<1x6x32x128xbf16>,
    %cst_17 = arith.constant -3.389530e+38 : bf16
    %20 = vector.broadcast %cst_17 : bf16 to vector<1x16x8x128xbf16>
    %c0_18 = arith.constant 0 : index
    %c6 = arith.constant 6 : index
    %c0_19 = arith.constant 0 : index
    %c0_20 = arith.constant 0 : index
    %21 = vector.load %arg7[%c0_18, %c6, %c0_19, %c0_20] : memref<1x28x32x128xbf16, #tpu.memory_space<vmem>>, vector<1x16x8x128xbf16>
    tpu.vector_store %arg7[%c0_18, %c6, %c0_19, %c0_20], %20 {strides = array<i32>} : memref<1x28x32x128xbf16, #tpu.memory_space<vmem>>, vector<1x16x8x128xbf16>,
    %cst_21 = arith.constant -3.389530e+38 : bf16
    %22 = vector.broadcast %cst_21 : bf16 to vector<1x16x8x128xbf16>
    %c0_22 = arith.constant 0 : index
    %c6_23 = arith.constant 6 : index
    %c24 = arith.constant 24 : index
    %c0_24 = arith.constant 0 : index
    %23 = vector.load %arg7[%c0_22, %c6_23, %c24, %c0_24] : memref<1x28x32x128xbf16, #tpu.memory_space<vmem>>, vector<1x16x8x128xbf16>
    tpu.vector_store %arg7[%c0_22, %c6_23, %c24, %c0_24], %22 {strides = array<i32>} : memref<1x28x32x128xbf16, #tpu.memory_space<vmem>>, vector<1x16x8x128xbf16>,
    %c0_25 = arith.constant 0 : index
    %c6_26 = arith.constant 6 : index
    %c8 = arith.constant 8 : index
    %c0_27 = arith.constant 0 : index
    %24 = vector.load %arg7[%c0_25, %c6_26, %c8, %c0_27] : memref<1x28x32x128xbf16, #tpu.memory_space<vmem>>, vector<1x16x16x128xbf16>
    tpu.vector_store %arg7[%c0_25, %c6_26, %c8, %c0_27], %15 {strides = array<i32>} : memref<1x28x32x128xbf16, #tpu.memory_space<vmem>>, vector<1x16x16x128xbf16>,
    %c0_28 = arith.constant 0 : index
    %c0_29 = arith.constant 0 : index
    %c0_30 = arith.constant 0 : index
    %c0_31 = arith.constant 0 : index
    %25 = vector.load %arg7[%c0_28, %c0_29, %c0_30, %c0_31] : memref<1x28x32x128xbf16, #tpu.memory_space<vmem>>, vector<1x28x32x128xbf16>
    %26 = vector.extract_strided_slice %25 {offsets = [0, 0, 0, 0], sizes = [1, 28, 28, 128], strides = [1, 1, 1, 1]} : vector<1x28x32x128xbf16> to vector<1x28x28x128xbf16>
    %27 = vector.extract_strided_slice %25 {offsets = [0, 0, 1, 0], sizes = [1, 28, 28, 128], strides = [1, 1, 1, 1]} : vector<1x28x32x128xbf16> to vector<1x28x28x128xbf16>
    %28 = arith.maximumf %26, %27 : vector<1x28x28x128xbf16>
    %29 = vector.extract_strided_slice %25 {offsets = [0, 0, 2, 0], sizes = [1, 28, 28, 128], strides = [1, 1, 1, 1]} : vector<1x28x32x128xbf16> to vector<1x28x28x128xbf16>
    %30 = arith.maximumf %28, %29 : vector<1x28x28x128xbf16>
    %31 = vector.extract_strided_slice %25 {offsets = [0, 0, 3, 0], sizes = [1, 28, 28, 128], strides = [1, 1, 1, 1]} : vector<1x28x32x128xbf16> to vector<1x28x28x128xbf16>
    %32 = arith.maximumf %30, %31 : vector<1x28x28x128xbf16>
    %33 = vector.extract_strided_slice %25 {offsets = [0, 0, 4, 0], sizes = [1, 28, 28, 128], strides = [1, 1, 1, 1]} : vector<1x28x32x128xbf16> to vector<1x28x28x128xbf16>
    %34 = arith.maximumf %32, %33 : vector<1x28x28x128xbf16>
    %35 = vector.extract_strided_slice %34 {offsets = [0, 0, 0, 0], sizes = [1, 28, 24, 128], strides = [1, 1, 1, 1]} : vector<1x28x28x128xbf16> to vector<1x28x24x128xbf16>
    %36 = vector.extract_strided_slice %34 {offsets = [0, 0, 4, 0], sizes = [1, 28, 24, 128], strides = [1, 1, 1, 1]} : vector<1x28x28x128xbf16> to vector<1x28x24x128xbf16>
    %37 = arith.maximumf %35, %36 : vector<1x28x24x128xbf16>
    %38 = vector.extract_strided_slice %37 {offsets = [0, 0, 0, 0], sizes = [1, 28, 20, 128], strides = [1, 1, 1, 1]} : vector<1x28x24x128xbf16> to vector<1x28x20x128xbf16>
    %39 = vector.extract_strided_slice %37 {offsets = [0, 0, 4, 0], sizes = [1, 28, 20, 128], strides = [1, 1, 1, 1]} : vector<1x28x24x128xbf16> to vector<1x28x20x128xbf16>
    %40 = arith.maximumf %38, %39 : vector<1x28x20x128xbf16>
    %41 = vector.extract_strided_slice %34 {offsets = [0, 0, 6, 0], sizes = [1, 28, 16, 128], strides = [1, 1, 1, 1]} : vector<1x28x28x128xbf16> to vector<1x28x16x128xbf16>
    %42 = vector.extract_strided_slice %37 {offsets = [0, 0, 4, 0], sizes = [1, 28, 16, 128], strides = [1, 1, 1, 1]} : vector<1x28x24x128xbf16> to vector<1x28x16x128xbf16>
    %43 = vector.extract_strided_slice %40 {offsets = [0, 0, 2, 0], sizes = [1, 28, 16, 128], strides = [1, 1, 1, 1]} : vector<1x28x20x128xbf16> to vector<1x28x16x128xbf16>
    %44 = vector.extract_strided_slice %41 {offsets = [0, 0, 0, 0], sizes = [1, 24, 16, 128], strides = [1, 1, 1, 1]} : vector<1x28x16x128xbf16> to vector<1x24x16x128xbf16>
    %45 = vector.extract_strided_slice %41 {offsets = [0, 1, 0, 0], sizes = [1, 24, 16, 128], strides = [1, 1, 1, 1]} : vector<1x28x16x128xbf16> to vector<1x24x16x128xbf16>
    %46 = arith.maximumf %44, %45 : vector<1x24x16x128xbf16>
    %47 = vector.extract_strided_slice %41 {offsets = [0, 2, 0, 0], sizes = [1, 24, 16, 128], strides = [1, 1, 1, 1]} : vector<1x28x16x128xbf16> to vector<1x24x16x128xbf16>
    %48 = arith.maximumf %46, %47 : vector<1x24x16x128xbf16>
    %49 = vector.extract_strided_slice %41 {offsets = [0, 3, 0, 0], sizes = [1, 24, 16, 128], strides = [1, 1, 1, 1]} : vector<1x28x16x128xbf16> to vector<1x24x16x128xbf16>
    %50 = arith.maximumf %48, %49 : vector<1x24x16x128xbf16>
    %51 = vector.extract_strided_slice %41 {offsets = [0, 4, 0, 0], sizes = [1, 24, 16, 128], strides = [1, 1, 1, 1]} : vector<1x28x16x128xbf16> to vector<1x24x16x128xbf16>
    %52 = arith.maximumf %50, %51 : vector<1x24x16x128xbf16>
    %53 = vector.extract_strided_slice %52 {offsets = [0, 4, 0, 0], sizes = [1, 16, 16, 128], strides = [1, 1, 1, 1]} : vector<1x24x16x128xbf16> to vector<1x16x16x128xbf16>
    %54 = vector.extract_strided_slice %42 {offsets = [0, 0, 0, 0], sizes = [1, 24, 16, 128], strides = [1, 1, 1, 1]} : vector<1x28x16x128xbf16> to vector<1x24x16x128xbf16>
    %55 = vector.extract_strided_slice %42 {offsets = [0, 1, 0, 0], sizes = [1, 24, 16, 128], strides = [1, 1, 1, 1]} : vector<1x28x16x128xbf16> to vector<1x24x16x128xbf16>
    %56 = arith.maximumf %54, %55 : vector<1x24x16x128xbf16>
    %57 = vector.extract_strided_slice %42 {offsets = [0, 2, 0, 0], sizes = [1, 24, 16, 128], strides = [1, 1, 1, 1]} : vector<1x28x16x128xbf16> to vector<1x24x16x128xbf16>
    %58 = arith.maximumf %56, %57 : vector<1x24x16x128xbf16>
    %59 = vector.extract_strided_slice %42 {offsets = [0, 3, 0, 0], sizes = [1, 24, 16, 128], strides = [1, 1, 1, 1]} : vector<1x28x16x128xbf16> to vector<1x24x16x128xbf16>
    %60 = arith.maximumf %58, %59 : vector<1x24x16x128xbf16>
    %61 = vector.extract_strided_slice %42 {offsets = [0, 4, 0, 0], sizes = [1, 24, 16, 128], strides = [1, 1, 1, 1]} : vector<1x28x16x128xbf16> to vector<1x24x16x128xbf16>
    %62 = arith.maximumf %60, %61 : vector<1x24x16x128xbf16>
    %63 = vector.extract_strided_slice %62 {offsets = [0, 0, 0, 0], sizes = [1, 20, 16, 128], strides = [1, 1, 1, 1]} : vector<1x24x16x128xbf16> to vector<1x20x16x128xbf16>
    %64 = vector.extract_strided_slice %62 {offsets = [0, 4, 0, 0], sizes = [1, 20, 16, 128], strides = [1, 1, 1, 1]} : vector<1x24x16x128xbf16> to vector<1x20x16x128xbf16>
    %65 = arith.maximumf %63, %64 : vector<1x20x16x128xbf16>
    %66 = vector.extract_strided_slice %65 {offsets = [0, 2, 0, 0], sizes = [1, 16, 16, 128], strides = [1, 1, 1, 1]} : vector<1x20x16x128xbf16> to vector<1x16x16x128xbf16>
    %67 = vector.extract_strided_slice %43 {offsets = [0, 0, 0, 0], sizes = [1, 24, 16, 128], strides = [1, 1, 1, 1]} : vector<1x28x16x128xbf16> to vector<1x24x16x128xbf16>
    %68 = vector.extract_strided_slice %43 {offsets = [0, 1, 0, 0], sizes = [1, 24, 16, 128], strides = [1, 1, 1, 1]} : vector<1x28x16x128xbf16> to vector<1x24x16x128xbf16>
    %69 = arith.maximumf %67, %68 : vector<1x24x16x128xbf16>
    %70 = vector.extract_strided_slice %43 {offsets = [0, 2, 0, 0], sizes = [1, 24, 16, 128], strides = [1, 1, 1, 1]} : vector<1x28x16x128xbf16> to vector<1x24x16x128xbf16>
    %71 = arith.maximumf %69, %70 : vector<1x24x16x128xbf16>
    %72 = vector.extract_strided_slice %43 {offsets = [0, 3, 0, 0], sizes = [1, 24, 16, 128], strides = [1, 1, 1, 1]} : vector<1x28x16x128xbf16> to vector<1x24x16x128xbf16>
    %73 = arith.maximumf %71, %72 : vector<1x24x16x128xbf16>
    %74 = vector.extract_strided_slice %43 {offsets = [0, 4, 0, 0], sizes = [1, 24, 16, 128], strides = [1, 1, 1, 1]} : vector<1x28x16x128xbf16> to vector<1x24x16x128xbf16>
    %75 = arith.maximumf %73, %74 : vector<1x24x16x128xbf16>
    %76 = vector.extract_strided_slice %75 {offsets = [0, 0, 0, 0], sizes = [1, 20, 16, 128], strides = [1, 1, 1, 1]} : vector<1x24x16x128xbf16> to vector<1x20x16x128xbf16>
    %77 = vector.extract_strided_slice %75 {offsets = [0, 4, 0, 0], sizes = [1, 20, 16, 128], strides = [1, 1, 1, 1]} : vector<1x24x16x128xbf16> to vector<1x20x16x128xbf16>
    %78 = arith.maximumf %76, %77 : vector<1x20x16x128xbf16>
    %79 = vector.extract_strided_slice %78 {offsets = [0, 0, 0, 0], sizes = [1, 16, 16, 128], strides = [1, 1, 1, 1]} : vector<1x20x16x128xbf16> to vector<1x16x16x128xbf16>
    %80 = vector.extract_strided_slice %78 {offsets = [0, 4, 0, 0], sizes = [1, 16, 16, 128], strides = [1, 1, 1, 1]} : vector<1x20x16x128xbf16> to vector<1x16x16x128xbf16>
    %81 = arith.maximumf %79, %80 : vector<1x16x16x128xbf16>
    %82 = tpu.concatenate %15, %53, %66, %81 in 3 : vector<1x16x16x128xbf16>, vector<1x16x16x128xbf16>, vector<1x16x16x128xbf16>, vector<1x16x16x128xbf16> -> vector<1x16x16x512xbf16>
    %83 = vector.shape_cast %82 : vector<1x16x16x512xbf16> to vector<256x512xbf16>
    %c0_32 = arith.constant 0 : index
    %c0_33 = arith.constant 0 : index
    %84 = vector.load %arg4[%c0_32, %c0_33] : memref<512x128xbf16, #tpu.memory_space<vmem>>, vector<512x128xbf16>
    %cst_34 = arith.constant dense<0.000000e+00> : vector<256x128xf32>
    %85 = tpu.matmul %83, %84, %cst_34 {dimension_numbers = #tpu.dot_dimension_numbers<[1], [0], [0], [1], [0, 0, 1, 1], [], []>} : vector<256x512xbf16>, vector<512x128xbf16>, vector<256x128xf32> -> vector<256x128xf32>
    %c0_35 = arith.constant 0 : index
    %c0_36 = arith.constant 0 : index
    %86 = vector.load %arg5[%c0_35, %c0_36] : memref<1x128xf32, #tpu.memory_space<vmem>>, vector<1x128xf32>
    %87 = vector.broadcast %86 : vector<1x128xf32> to vector<256x128xf32>
    %88 = arith.addf %85, %87 : vector<256x128xf32>
    %89 = arith.negf %88 : vector<256x128xf32>
    %90 = math.exp %89 : vector<256x128xf32>
    %cst_37 = arith.constant 1.000000e+00 : f32
    %91 = vector.broadcast %cst_37 : f32 to vector<256x128xf32>
    %92 = arith.addf %91, %90 : vector<256x128xf32>
    %93 = arith.divf %91, %92 : vector<256x128xf32>
    %94 = arith.mulf %88, %93 : vector<256x128xf32>
    %95 = vector.shape_cast %94 : vector<256x128xf32> to vector<1x16x16x128xf32>
    %c0_38 = arith.constant 0 : index
    %c0_39 = arith.constant 0 : index
    %c0_40 = arith.constant 0 : index
    %c0_41 = arith.constant 0 : index
    %96 = vector.load %arg6[%c0_38, %c0_39, %c0_40, %c0_41] : memref<1x16x16x128xf32, #tpu.memory_space<vmem>>, vector<1x16x16x128xf32>
    tpu.vector_store %arg6[%c0_38, %c0_39, %c0_40, %c0_41], %95 {strides = array<i32>} : memref<1x16x16x128xf32, #tpu.memory_space<vmem>>, vector<1x16x16x128xf32>,
    return
  }
  func.func @transform_0(%arg0: i32) -> (i32, i32, i32, i32) {
    %c0_i32 = arith.constant 0 : i32
    %c0_i32_0 = arith.constant 0 : i32
    %c0_i32_1 = arith.constant 0 : i32
    %c0_i32_2 = arith.constant 0 : i32
    return %arg0, %c0_i32, %c0_i32_0, %c0_i32_1 : i32, i32, i32, i32
  }
  func.func @transform_1(%arg0: i32) -> (i32, i32) {
    %c0_i32 = arith.constant 0 : i32
    %c0_i32_0 = arith.constant 0 : i32
    %c0_i32_1 = arith.constant 0 : i32
    return %c0_i32, %c0_i32_0 : i32, i32
  }
  func.func @transform_2(%arg0: i32) -> (i32, i32) {
    %c0_i32 = arith.constant 0 : i32
    %c0_i32_0 = arith.constant 0 : i32
    %c0_i32_1 = arith.constant 0 : i32
    return %c0_i32, %c0_i32_0 : i32, i32
  }
  func.func @transform_3(%arg0: i32) -> (i32, i32) {
    %c0_i32 = arith.constant 0 : i32
    %c0_i32_0 = arith.constant 0 : i32
    %c0_i32_1 = arith.constant 0 : i32
    return %c0_i32, %c0_i32_0 : i32, i32
  }
  func.func @transform_4(%arg0: i32) -> (i32, i32) {
    %c0_i32 = arith.constant 0 : i32
    %c0_i32_0 = arith.constant 0 : i32
    %c0_i32_1 = arith.constant 0 : i32
    return %c0_i32, %c0_i32_0 : i32, i32
  }
  func.func @transform_5(%arg0: i32) -> (i32, i32, i32, i32) {
    %c0_i32 = arith.constant 0 : i32
    %c0_i32_0 = arith.constant 0 : i32
    %c0_i32_1 = arith.constant 0 : i32
    %c0_i32_2 = arith.constant 0 : i32
    return %arg0, %c0_i32, %c0_i32_0, %c0_i32_1 : i32, i32, i32, i32
  }
}

</mosaic_0001>

<llo_original>
// kernel: tpu_custom_call.1
$region0: #{tpu_custom_call.1}
  #allocation0 [shape = 'u32[]', space=smem, size = 0x4, offset = 0x4, fixed_abs, tag = 'smem constant byte address 0x4 - core index']
  #allocation1 [shape = 'u32[144,128]{1,0:T(1,128)}', space=vmem, size = 0x12000, scoped, tag = 'internal scratch']
  #allocation2 [shape = 'bf16[1,28,32,128]{3,2,1,0:T(16,128)(2,1)}', space=vmem, size = 0x38000, scoped, tag = 'scratch operand']
  %s0 = inlined_call_operand.vmem [shape: f32[2,16,16,4], index: 0, kind: input, shape index: {}]
  %s1 = inlined_call_operand.vmem [shape: bf16[4,128], index: 1, kind: input, shape index: {}]
  %s2 = inlined_call_operand.vmem [shape: f32[1,128], index: 2, kind: input, shape index: {}]
  %s3 = inlined_call_operand.vmem [shape: bf16[512,128], index: 3, kind: input, shape index: {}]
  %s4 = inlined_call_operand.vmem [shape: f32[1,128], index: 4, kind: input, shape index: {}]
  %s5 = inlined_call_operand.hbm [shape: f32[2,16,16,128], index: 5, kind: output, shape index: {}]
  %s6 = sld [smem:[#allocation0]]
  $region53: #{tpu_custom_call.1} parent=0
    _
  %s8 = ssub.s32 1, %s6
  %s9 = scalar_select 0, %s8, %s6
  $region1: #{tpu_custom_call.1} parent=0
    #allocation3 [shape = 'u8[262144]{0}', space=vmem, size = 0x40000, scoped, tag = 'output window, operand 0']
    #allocation4 [shape = 's32[2]{0}', space=sflag, size = 0x8, scoped, tag = 'scoped memory for tpu_custom_call.1']
    %10 = vsyncpa [#allocation4], 0
    %s11 = scalar_lea.sflag [#allocation4], 1
    %12 = vsyncpa %s11, 0
    loop: start=0, step=1, limit=4
    $region2: #{tpu_custom_call.1} parent=1 // loop_pre_header
      _
    $region3: #{tpu_custom_call.1} parent=1 // loop_header
      %s14 = sphi 0, %s18
      %p15 = scmp.ge.s32.totalorder %s14, 4
      %s24 = sphi 0, %s26
      %s27 = sphi 0, %s24
      %s28 = sphi 0, %s27
      %s44 = sphi 0, %s28
      %s48 = sphi 0, %s48
      %s50 = sphi 0, %s48
      %s51 = sphi 0, %s50
      %s65 = sphi 0, %s51
      %s69 = sphi 0, %s69
      %s71 = sphi 0, %s69
      %s72 = sphi 0, %s71
      %s86 = sphi 0, %s72
      %s90 = sphi 0, %s90
      %s92 = sphi 0, %s90
      %s93 = sphi 0, %s92
      %s107 = sphi 0, %s93
      %s111 = sphi 0, %s111
      %s113 = sphi 0, %s111
      %s114 = sphi 0, %s113
      %s128 = sphi 0, %s114
      %s134 = sphi 0, %s136
      %s137 = sphi 0, %s134
      %s138 = sphi 0, %s137
      %s154 = sphi 0, %s138
    $region4: #{tpu_custom_call.1} parent=1 // loop_header_branch
      %17 = sbr.rel (%p15) target = $region8
    $region5: #{tpu_custom_call.1} parent=1 // loop_body
      %s19 = ssub.s32 %s14, 1
      %s20 = ssub.s32 %s14, 2
      %s21 = sadd.s32 %s14, 1
      %s22 = ssub.s32 %s14, %s21
      %p23 = scmp.eq.s32.totalorder %s22, 0
      %s25 = sadd.s32 %s24, 1
      %s26 = scalar_select %p23, %s24, %s25
      %p29 = pneg %p23
      %p30 = scmp.eq.s32.totalorder %s14, 1
      %p31 = por %p29, %p30
      %p32 = scmp.ne.s32.totalorder %s24, %s27
      %p33 = scmp.eq.s32.totalorder %s14, 0
      %p34 = por %p32, %p33
      %p35 = scmp.ne.s32.totalorder %s24, %s27
      %p36 = scmp.eq.s32.totalorder %s19, 1
      %p37 = por %p35, %p36
      %p38 = scmp.ne.s32.totalorder %s27, %s28
      %p39 = scmp.eq.s32.totalorder %s19, 0
      %p40 = por %p38, %p39
      %p41 = scmp.ne.s32.totalorder %s27, %s28
      %p42 = scmp.eq.s32.totalorder %s20, 1
      %p43 = por %p41, %p42
      %p45 = scmp.ne.s32.totalorder %s28, %s44
      %p46 = scmp.eq.s32.totalorder %s20, 0
      %p47 = por %p45, %p46
      %s49 = sadd.s32 %s48, 1
      %p52 = scmp.eq.s32.totalorder %s14, 1
      %p53 = scmp.ne.s32.totalorder %s48, %s50
      %p54 = scmp.eq.s32.totalorder %s14, 0
      %p55 = por %p53, %p54
      %p56 = scmp.ne.s32.totalorder %s48, %s50
      %p57 = scmp.eq.s32.totalorder %s19, 1
      %p58 = por %p56, %p57
      %p59 = scmp.ne.s32.totalorder %s50, %s51
      %p60 = scmp.eq.s32.totalorder %s19, 0
      %p61 = por %p59, %p60
      %p62 = scmp.ne.s32.totalorder %s50, %s51
      %p63 = scmp.eq.s32.totalorder %s20, 1
      %p64 = por %p62, %p63
      %p66 = scmp.ne.s32.totalorder %s51, %s65
      %p67 = scmp.eq.s32.totalorder %s20, 0
      %p68 = por %p66, %p67
      %s70 = sadd.s32 %s69, 1
      %p73 = scmp.eq.s32.totalorder %s14, 1
      %p74 = scmp.ne.s32.totalorder %s69, %s71
      %p75 = scmp.eq.s32.totalorder %s14, 0
      %p76 = por %p74, %p75
      %p77 = scmp.ne.s32.totalorder %s69, %s71
      %p78 = scmp.eq.s32.totalorder %s19, 1
      %p79 = por %p77, %p78
      %p80 = scmp.ne.s32.totalorder %s71, %s72
      %p81 = scmp.eq.s32.totalorder %s19, 0
      %p82 = por %p80, %p81
      %p83 = scmp.ne.s32.totalorder %s71, %s72
      %p84 = scmp.eq.s32.totalorder %s20, 1
      %p85 = por %p83, %p84
      %p87 = scmp.ne.s32.totalorder %s72, %s86
      %p88 = scmp.eq.s32.totalorder %s20, 0
      %p89 = por %p87, %p88
      %s91 = sadd.s32 %s90, 1
      %p94 = scmp.eq.s32.totalorder %s14, 1
      %p95 = scmp.ne.s32.totalorder %s90, %s92
      %p96 = scmp.eq.s32.totalorder %s14, 0
      %p97 = por %p95, %p96
      %p98 = scmp.ne.s32.totalorder %s90, %s92
      %p99 = scmp.eq.s32.totalorder %s19, 1
      %p100 = por %p98, %p99
      %p101 = scmp.ne.s32.totalorder %s92, %s93
      %p102 = scmp.eq.s32.totalorder %s19, 0
      %p103 = por %p101, %p102
      %p104 = scmp.ne.s32.totalorder %s92, %s93
      %p105 = scmp.eq.s32.totalorder %s20, 1
      %p106 = por %p104, %p105
      %p108 = scmp.ne.s32.totalorder %s93, %s107
      %p109 = scmp.eq.s32.totalorder %s20, 0
      %p110 = por %p108, %p109
      %s112 = sadd.s32 %s111, 1
      %p115 = scmp.eq.s32.totalorder %s14, 1
      %p116 = scmp.ne.s32.totalorder %s111, %s113
      %p117 = scmp.eq.s32.totalorder %s14, 0
      %p118 = por %p116, %p117
      %p119 = scmp.ne.s32.totalorder %s111, %s113
      %p120 = scmp.eq.s32.totalorder %s19, 1
      %p121 = por %p119, %p120
      %p122 = scmp.ne.s32.totalorder %s113, %s114
      %p123 = scmp.eq.s32.totalorder %s19, 0
      %p124 = por %p122, %p123
      %p125 = scmp.ne.s32.totalorder %s113, %s114
      %p126 = scmp.eq.s32.totalorder %s20, 1
      %p127 = por %p125, %p126
      %p129 = scmp.ne.s32.totalorder %s114, %s128
      %p130 = scmp.eq.s32.totalorder %s20, 0
      %p131 = por %p129, %p130
      %s132 = ssub.s32 %s14, %s21
      %p133 = scmp.eq.s32.totalorder %s132, 0
      %s135 = sadd.s32 %s134, 1
      %s136 = scalar_select %p133, %s134, %s135
      %p139 = pneg %p133
      %p140 = scmp.eq.s32.totalorder %s14, 1
      %p141 = por %p139, %p140
      %p142 = scmp.ne.s32.totalorder %s134, %s137
      %p143 = scmp.eq.s32.totalorder %s14, 0
      %p144 = por %p142, %p143
      %p145 = scmp.ne.s32.totalorder %s134, %s137
      %p146 = scmp.eq.s32.totalorder %s19, 1
      %p147 = por %p145, %p146
      %p148 = scmp.ne.s32.totalorder %s137, %s138
      %p149 = scmp.eq.s32.totalorder %s19, 0
      %p150 = por %p148, %p149
      %p151 = scmp.ne.s32.totalorder %s137, %s138
      %p152 = scmp.eq.s32.totalorder %s20, 1
      %p153 = por %p151, %p152
      %p155 = scmp.ne.s32.totalorder %s138, %s154
      %p156 = scmp.eq.s32.totalorder %s20, 0
      %p157 = por %p155, %p156
      %p158 = scmp.le.s32.totalorder 1, %s14
      %p159 = scmp.lt.s32.totalorder %s14, 3
      %p160 = pnand %p158, %p159
      %p161 = pneg %p160
      // Predicated region
      $region9: #{tpu_custom_call.1} parent=5 // pred_check
        _
      $region10: #{tpu_custom_call.1} parent=5 // pred_check_branch
        %163 = sbr.rel (%p160) target = $region12
      $region11: #{tpu_custom_call.1} parent=5 // pred_region
        %s164 = ssub.s32 %s14, 1
        // Predicated region
        $region13: #{tpu_custom_call.1} parent=11 // pred_check
          %p165 = pneg %p61
        $region14: #{tpu_custom_call.1} parent=11 // pred_check_branch
          %167 = sbr.rel (%p165) target = $region16
        $region15: #{tpu_custom_call.1} parent=11 // pred_region
          _
        $region16: #{tpu_custom_call.1} parent=11 // pred_fallthru
          _
        // Predicated region
        $region17: #{tpu_custom_call.1} parent=11 // pred_check
          %p168 = pneg %p82
        $region18: #{tpu_custom_call.1} parent=11 // pred_check_branch
          %170 = sbr.rel (%p168) target = $region20
        $region19: #{tpu_custom_call.1} parent=11 // pred_region
          _
        $region20: #{tpu_custom_call.1} parent=11 // pred_fallthru
          _
        // Predicated region
        $region21: #{tpu_custom_call.1} parent=11 // pred_check
          %p171 = pneg %p103
        $region22: #{tpu_custom_call.1} parent=11 // pred_check_branch
          %173 = sbr.rel (%p171) target = $region24
        $region23: #{tpu_custom_call.1} parent=11 // pred_region
          _
        $region24: #{tpu_custom_call.1} parent=11 // pred_fallthru
          _
        // Predicated region
        $region25: #{tpu_custom_call.1} parent=11 // pred_check
          %p174 = pneg %p124
        $region26: #{tpu_custom_call.1} parent=11 // pred_check_branch
          %176 = sbr.rel (%p174) target = $region28
        $region27: #{tpu_custom_call.1} parent=11 // pred_region
          _
        $region28: #{tpu_custom_call.1} parent=11 // pred_fallthru
          _
      $region12: #{tpu_custom_call.1} parent=5 // pred_fallthru
        _
      %p177 = scmp.lt.s32.totalorder %s14, 2
      // Predicated region
      $region29: #{tpu_custom_call.1} parent=5 // pred_check
        %p178 = pneg %p177
      $region30: #{tpu_custom_call.1} parent=5 // pred_check_branch
        %180 = sbr.rel (%p178) target = $region32
      $region31: #{tpu_custom_call.1} parent=5 // pred_region
        // Predicated region
        $region33: #{tpu_custom_call.1} parent=31 // pred_check
          %p181 = pneg %p34
        $region34: #{tpu_custom_call.1} parent=31 // pred_check_branch
          %183 = sbr.rel (%p181) target = $region36
        $region35: #{tpu_custom_call.1} parent=31 // pred_region
          %p184 = scmp.lt.s32.totalorder %s14, 1
          %s185 = scalar_select %p184, %s14, 1
          %s186 = smul.addr %s185, 32
          %s187 = smul.addr %s186, 8
          %s188 = scalar_lea.vmem %s0, %s187
        $region36: #{tpu_custom_call.1} parent=31 // pred_fallthru
          _
      $region32: #{tpu_custom_call.1} parent=5 // pred_fallthru
        _
      %p189 = scmp.le.s32.totalorder 1, %s14
      %p190 = scmp.lt.s32.totalorder %s14, 3
      %p191 = pnand %p189, %p190
      %p192 = pneg %p191
      // Predicated region
      $region37: #{tpu_custom_call.1} parent=5 // pred_check
        _
      $region38: #{tpu_custom_call.1} parent=5 // pred_check_branch
        %194 = sbr.rel (%p191) target = $region40
      $region39: #{tpu_custom_call.1} parent=5 // pred_region
        %s195 = ssub.s32 %s14, 1
        %p196 = scmp.lt.s32.totalorder %s19, 1
        %s197 = scalar_select %p196, %s19, 1
        %s198 = smul.addr %s197, 32
        %s199 = smul.addr %s198, 8
        %s200 = scalar_lea.vmem %s0, %s199
        %p201 = pneg %p40
        %p202 = pneg %p37
        %p203 = pneg %p61
        %p204 = pneg %p58
        %p205 = pneg %p82
        %p206 = pneg %p79
        %p207 = pneg %p103
        %p208 = pneg %p100
        %p209 = pneg %p124
        %p210 = pneg %p121
        %p211 = pneg %p150
        %p212 = pneg %p147
        %s213 = sand.u32 %s137, 1
        %s214 = scalar_lea.sflag [#allocation4], %s213
        %s215 = sand.u32 %s137, 1
        %s216 = smul.addr %s215, 256
        %s217 = scalar_lea.vmem [#allocation3], %s216
        %p218 = scmp.lt.s32.totalorder %s19, 1
        %s219 = scalar_select %p218, %s19, 1
        %s220 = smul.addr %s219, 32
        %s221 = smul.addr %s220, 8
        %s222 = scalar_lea.vmem %s0, %s221
        %v225 = vld [vmem:[%s222] sm:$0xff]
        %v226 = vld [vmem:[%s222 + $0x8] sm:$0xff]
        %v227 = vld [vmem:[%s222 + $0x10] sm:$0xff]
        %v228 = vld [vmem:[%s222 + $0x18] sm:$0xff]
        %v229 = vld [vmem:[%s222 + $0x20] sm:$0xff]
        %v230 = vld [vmem:[%s222 + $0x28] sm:$0xff]
        %v231 = vld [vmem:[%s222 + $0x30] sm:$0xff]
        %v232 = vld [vmem:[%s222 + $0x38] sm:$0xff]
        %v233 = vld [vmem:[%s222 + $0x40] sm:$0xff]
        %v234 = vld [vmem:[%s222 + $0x48] sm:$0xff]
        %v235 = vld [vmem:[%s222 + $0x50] sm:$0xff]
        %v236 = vld [vmem:[%s222 + $0x58] sm:$0xff]
        %v237 = vld [vmem:[%s222 + $0x60] sm:$0xff]
        %v238 = vld [vmem:[%s222 + $0x68] sm:$0xff]
        %v239 = vld [vmem:[%s222 + $0x70] sm:$0xff]
        %v240 = vld [vmem:[%s222 + $0x78] sm:$0xff]
        %v241 = vld [vmem:[%s222 + $0x80] sm:$0xff]
        %v242 = vld [vmem:[%s222 + $0x88] sm:$0xff]
        %v243 = vld [vmem:[%s222 + $0x90] sm:$0xff]
        %v244 = vld [vmem:[%s222 + $0x98] sm:$0xff]
        %v245 = vld [vmem:[%s222 + $0xa0] sm:$0xff]
        %v246 = vld [vmem:[%s222 + $0xa8] sm:$0xff]
        %v247 = vld [vmem:[%s222 + $0xb0] sm:$0xff]
        %v248 = vld [vmem:[%s222 + $0xb8] sm:$0xff]
        %v249 = vld [vmem:[%s222 + $0xc0] sm:$0xff]
        %v250 = vld [vmem:[%s222 + $0xc8] sm:$0xff]
        %v251 = vld [vmem:[%s222 + $0xd0] sm:$0xff]
        %v252 = vld [vmem:[%s222 + $0xd8] sm:$0xff]
        %v253 = vld [vmem:[%s222 + $0xe0] sm:$0xff]
        %v254 = vld [vmem:[%s222 + $0xe8] sm:$0xff]
        %v255 = vld [vmem:[%s222 + $0xf0] sm:$0xff]
        %v256 = vld [vmem:[%s222 + $0xf8] sm:$0xff]
        %v257 = vpack.c.bf16 %v226, %v225
        %v258 = vpack.c.bf16 %v228, %v227
        %v259 = vpack.c.bf16 %v230, %v229
        %v260 = vpack.c.bf16 %v232, %v231
        %v261 = vpack.c.bf16 %v234, %v233
        %v262 = vpack.c.bf16 %v236, %v235
        %v263 = vpack.c.bf16 %v238, %v237
        %v264 = vpack.c.bf16 %v240, %v239
        %v265 = vpack.c.bf16 %v242, %v241
        %v266 = vpack.c.bf16 %v244, %v243
        %v267 = vpack.c.bf16 %v246, %v245
        %v268 = vpack.c.bf16 %v248, %v247
        %v269 = vpack.c.bf16 %v250, %v249
        %v270 = vpack.c.bf16 %v252, %v251
        %v271 = vpack.c.bf16 %v254, %v253
        %v272 = vpack.c.bf16 %v256, %v255
        %v273 = vld [vmem:[%s1] sm:$0x3]
        %v274 = vld [vmem:[%s2] sm:$0x1]
        %v276 = vlaneseq
        %v277 = vshrl.u32 %v276, 7
        %v278 = vsub.s32 0, %v277
        %v279 = vrot.slane %v274, %v278
        %vm281 = vcmask 31744
        %v283 = vsel %vm281, %v257, 0
        %v286 = vsel %vm281, %v258, 0
        %v289 = vsel %vm281, %v259, 0
        %v292 = vsel %vm281, %v260, 0
        %v295 = vsel %vm281, %v261, 0
        %v298 = vsel %vm281, %v262, 0
        %v301 = vsel %vm281, %v263, 0
        %v304 = vsel %vm281, %v264, 0
        %v307 = vsel %vm281, %v265, 0
        %v310 = vsel %vm281, %v266, 0
        %v313 = vsel %vm281, %v267, 0
        %v316 = vsel %vm281, %v268, 0
        %v319 = vsel %vm281, %v269, 0
        %v322 = vsel %vm281, %v270, 0
        %v325 = vsel %vm281, %v271, 0
        %v328 = vsel %vm281, %v272, 0
        %vm330 = vcmask 1041408
        %v332 = vsel %vm330, %v273, 0
        %334 = vmatprep.subr.bf16.mxu0 0
        %335 = vmatpush1.bf16.msra.mxu0 %v332
        %336 = vmatprep.subr.bf16.mxu0 0
        %337 = vmatpush1.bf16.msra.mxu0 0
        %338 = vmatprep.subr.bf16.mxu0 0
        %339 = vmatpush1.bf16.msra.mxu0 0
        %340 = vmatprep.subr.bf16.mxu0 0
        %341 = vmatpush1.bf16.msra.mxu0 0
        %342 = vmatprep.subr.bf16.mxu0 0
        %343 = vmatpush1.bf16.msra.mxu0 0
        %344 = vmatprep.subr.bf16.mxu0 0
        %345 = vmatpush1.bf16.msra.mxu0 0
        %346 = vmatprep.subr.bf16.mxu0 0
        %347 = vmatpush1.bf16.msra.mxu0 0
        %348 = vmatprep.subr.bf16.mxu0 0
        %349 = vmatpush1.bf16.msra.mxu0 0
        %350 = vmatprep.subr.bf16.mxu0 0
        %351 = vmatpush1.bf16.msra.mxu0 0
        %352 = vmatprep.subr.bf16.mxu0 0
        %353 = vmatpush1.bf16.msra.mxu0 0
        %354 = vmatprep.subr.bf16.mxu0 0
        %355 = vmatpush1.bf16.msra.mxu0 0
        %356 = vmatprep.subr.bf16.mxu0 0
        %357 = vmatpush1.bf16.msra.mxu0 0
        %358 = vmatprep.subr.bf16.mxu0 0
        %359 = vmatpush1.bf16.msra.mxu0 0
        %360 = vmatprep.subr.bf16.mxu0 0
        %361 = vmatpush1.bf16.msra.mxu0 0
        %362 = vmatprep.subr.bf16.mxu0 0
        %363 = vmatpush1.bf16.msra.mxu0 0
        %364 = vmatprep.subr.bf16.mxu0 0
        %365 = vmatpush1.bf16.msra.mxu0 0
        %366 = vmatprep.mubr.bf16.mxu0 0
        %367 = vmatmul.mubr.bf16.gmra.mrb[0].mxu0 %v283
        %v368 = vpop.f32.mrb[0].mxu0
        %v369 = vadd.f32 %v279, %v368
        %v370 = vpop.f32.mrb[0].mxu0
        %v371 = vpop.f32.mrb[0].mxu0
        %v372 = vadd.f32 %v279, %v371
        %v373 = vpop.f32.mrb[0].mxu0
        %374 = vmatprep.mubr.bf16.mxu0 0
        %375 = vmatmul.mubr.bf16.gmra.mrb[0].mxu0 %v286
        %v376 = vpop.f32.mrb[0].mxu0
        %v377 = vadd.f32 %v279, %v376
        %v378 = vpop.f32.mrb[0].mxu0
        %v379 = vpop.f32.mrb[0].mxu0
        %v380 = vadd.f32 %v279, %v379
        %v381 = vpop.f32.mrb[0].mxu0
        %382 = vmatprep.mubr.bf16.mxu0 0
        %383 = vmatmul.mubr.bf16.gmra.mrb[0].mxu0 %v289
        %v384 = vpop.f32.mrb[0].mxu0
        %v385 = vadd.f32 %v279, %v384
        %v386 = vpop.f32.mrb[0].mxu0
        %v387 = vpop.f32.mrb[0].mxu0
        %v388 = vadd.f32 %v279, %v387
        %v389 = vpop.f32.mrb[0].mxu0
        %390 = vmatprep.mubr.bf16.mxu0 0
        %391 = vmatmul.mubr.bf16.gmra.mrb[0].mxu0 %v292
        %v392 = vpop.f32.mrb[0].mxu0
        %v393 = vadd.f32 %v279, %v392
        %v394 = vpop.f32.mrb[0].mxu0
        %v395 = vpop.f32.mrb[0].mxu0
        %v396 = vadd.f32 %v279, %v395
        %v397 = vpop.f32.mrb[0].mxu0
        %398 = vmatprep.mubr.bf16.mxu0 0
        %399 = vmatmul.mubr.bf16.gmra.mrb[0].mxu0 %v295
        %v400 = vpop.f32.mrb[0].mxu0
        %v401 = vadd.f32 %v279, %v400
        %v402 = vpop.f32.mrb[0].mxu0
        %v403 = vpop.f32.mrb[0].mxu0
        %v404 = vadd.f32 %v279, %v403
        %v405 = vpop.f32.mrb[0].mxu0
        %406 = vmatprep.mubr.bf16.mxu0 0
        %407 = vmatmul.mubr.bf16.gmra.mrb[0].mxu0 %v298
        %v408 = vpop.f32.mrb[0].mxu0
        %v409 = vadd.f32 %v279, %v408
        %v410 = vpop.f32.mrb[0].mxu0
        %v411 = vpop.f32.mrb[0].mxu0
        %v412 = vadd.f32 %v279, %v411
        %v413 = vpop.f32.mrb[0].mxu0
        %414 = vmatprep.mubr.bf16.mxu0 0
        %415 = vmatmul.mubr.bf16.gmra.mrb[0].mxu0 %v301
        %v416 = vpop.f32.mrb[0].mxu0
        %v417 = vadd.f32 %v279, %v416
        %v418 = vpop.f32.mrb[0].mxu0
        %v419 = vpop.f32.mrb[0].mxu0
        %v420 = vadd.f32 %v279, %v419
        %v421 = vpop.f32.mrb[0].mxu0
        %422 = vmatprep.mubr.bf16.mxu0 0
        %423 = vmatmul.mubr.bf16.gmra.mrb[0].mxu0 %v304
        %v424 = vpop.f32.mrb[0].mxu0
        %v425 = vadd.f32 %v279, %v424
        %v426 = vpop.f32.mrb[0].mxu0
        %v427 = vpop.f32.mrb[0].mxu0
        %v428 = vadd.f32 %v279, %v427
        %v429 = vpop.f32.mrb[0].mxu0
        %430 = vmatprep.mubr.bf16.mxu0 0
        %431 = vmatmul.mubr.bf16.gmra.mrb[0].mxu0 %v307
        %v432 = vpop.f32.mrb[0].mxu0
        %v433 = vadd.f32 %v279, %v432
        %v434 = vpop.f32.mrb[0].mxu0
        %v435 = vpop.f32.mrb[0].mxu0
        %v436 = vadd.f32 %v279, %v435
        %v437 = vpop.f32.mrb[0].mxu0
        %438 = vmatprep.mubr.bf16.mxu0 0
        %439 = vmatmul.mubr.bf16.gmra.mrb[0].mxu0 %v310
        %v440 = vpop.f32.mrb[0].mxu0
        %v441 = vadd.f32 %v279, %v440
        %v442 = vpop.f32.mrb[0].mxu0
        %v443 = vpop.f32.mrb[0].mxu0
        %v444 = vadd.f32 %v279, %v443
        %v445 = vpop.f32.mrb[0].mxu0
        %446 = vmatprep.mubr.bf16.mxu0 0
        %447 = vmatmul.mubr.bf16.gmra.mrb[0].mxu0 %v313
        %v448 = vpop.f32.mrb[0].mxu0
        %v449 = vadd.f32 %v279, %v448
        %v450 = vpop.f32.mrb[0].mxu0
        %v451 = vpop.f32.mrb[0].mxu0
        %v452 = vadd.f32 %v279, %v451
        %v453 = vpop.f32.mrb[0].mxu0
        %454 = vmatprep.mubr.bf16.mxu0 0
        %455 = vmatmul.mubr.bf16.gmra.mrb[0].mxu0 %v316
        %v456 = vpop.f32.mrb[0].mxu0
        %v457 = vadd.f32 %v279, %v456
        %v458 = vpop.f32.mrb[0].mxu0
        %v459 = vpop.f32.mrb[0].mxu0
        %v460 = vadd.f32 %v279, %v459
        %v461 = vpop.f32.mrb[0].mxu0
        %462 = vmatprep.mubr.bf16.mxu0 0
        %463 = vmatmul.mubr.bf16.gmra.mrb[0].mxu0 %v319
        %v464 = vpop.f32.mrb[0].mxu0
        %v465 = vadd.f32 %v279, %v464
        %v466 = vpop.f32.mrb[0].mxu0
        %v467 = vpop.f32.mrb[0].mxu0
        %v468 = vadd.f32 %v279, %v467
        %v469 = vpop.f32.mrb[0].mxu0
        %470 = vmatprep.mubr.bf16.mxu0 0
        %471 = vmatmul.mubr.bf16.gmra.mrb[0].mxu0 %v322
        %v472 = vpop.f32.mrb[0].mxu0
        %v473 = vadd.f32 %v279, %v472
        %v474 = vpop.f32.mrb[0].mxu0
        %v475 = vpop.f32.mrb[0].mxu0
        %v476 = vadd.f32 %v279, %v475
        %v477 = vpop.f32.mrb[0].mxu0
        %478 = vmatprep.mubr.bf16.mxu0 0
        %479 = vmatmul.mubr.bf16.gmra.mrb[0].mxu0 %v325
        %v480 = vpop.f32.mrb[0].mxu0
        %v481 = vadd.f32 %v279, %v480
        %v482 = vpop.f32.mrb[0].mxu0
        %v483 = vpop.f32.mrb[0].mxu0
        %v484 = vadd.f32 %v279, %v483
        %v485 = vpop.f32.mrb[0].mxu0
        %486 = vmatprep.mubr.bf16.mxu0 0
        %487 = vmatmul.mubr.bf16.gmra.mrb[0].mxu0 %v328
        %v488 = vpop.f32.mrb[0].mxu0
        %v489 = vadd.f32 %v279, %v488
        %v490 = vpop.f32.mrb[0].mxu0
        %v491 = vpop.f32.mrb[0].mxu0
        %v492 = vadd.f32 %v279, %v491
        %v493 = vpop.f32.mrb[0].mxu0
        %494 = vdwg.mxu0
        %v495 = vxor.u32 %v369, 2147483648
        %v496 = vxor.u32 %v372, 2147483648
        %v497 = vxor.u32 %v377, 2147483648
        %v498 = vxor.u32 %v380, 2147483648
        %v499 = vxor.u32 %v385, 2147483648
        %v500 = vxor.u32 %v388, 2147483648
        %v501 = vxor.u32 %v393, 2147483648
        %v502 = vxor.u32 %v396, 2147483648
        %v503 = vxor.u32 %v401, 2147483648
        %v504 = vxor.u32 %v404, 2147483648
        %v505 = vxor.u32 %v409, 2147483648
        %v506 = vxor.u32 %v412, 2147483648
        %v507 = vxor.u32 %v417, 2147483648
        %v508 = vxor.u32 %v420, 2147483648
        %v509 = vxor.u32 %v425, 2147483648
        %v510 = vxor.u32 %v428, 2147483648
        %v511 = vxor.u32 %v433, 2147483648
        %v512 = vxor.u32 %v436, 2147483648
        %v513 = vxor.u32 %v441, 2147483648
        %v514 = vxor.u32 %v444, 2147483648
        %v515 = vxor.u32 %v449, 2147483648
        %v516 = vxor.u32 %v452, 2147483648
        %v517 = vxor.u32 %v457, 2147483648
        %v518 = vxor.u32 %v460, 2147483648
        %v519 = vxor.u32 %v465, 2147483648
        %v520 = vxor.u32 %v468, 2147483648
        %v521 = vxor.u32 %v473, 2147483648
        %v522 = vxor.u32 %v476, 2147483648
        %v523 = vxor.u32 %v481, 2147483648
        %v524 = vxor.u32 %v484, 2147483648
        %v525 = vxor.u32 %v489, 2147483648
        %v526 = vxor.u32 %v492, 2147483648
        %v527 = vmul.f32 %v495, 1.442695
        %v528 = vpow.pop %v527
        %v529 = vmul.f32 %v496, 1.442695
        %v530 = vpow.pop %v529
        %v531 = vmul.f32 %v497, 1.442695
        %v532 = vpow.pop %v531
        %v533 = vmul.f32 %v498, 1.442695
        %v534 = vpow.pop %v533
        %v535 = vmul.f32 %v499, 1.442695
        %v536 = vpow.pop %v535
        %v537 = vmul.f32 %v500, 1.442695
        %v538 = vpow.pop %v537
        %v539 = vmul.f32 %v501, 1.442695
        %v540 = vpow.pop %v539
        %v541 = vmul.f32 %v502, 1.442695
        %v542 = vpow.pop %v541
        %v543 = vmul.f32 %v503, 1.442695
        %v544 = vpow.pop %v543
        %v545 = vmul.f32 %v504, 1.442695
        %v546 = vpow.pop %v545
        %v547 = vmul.f32 %v505, 1.442695
        %v548 = vpow.pop %v547
        %v549 = vmul.f32 %v506, 1.442695
        %v550 = vpow.pop %v549
        %v551 = vmul.f32 %v507, 1.442695
        %v552 = vpow.pop %v551
        %v553 = vmul.f32 %v508, 1.442695
        %v554 = vpow.pop %v553
        %v555 = vmul.f32 %v509, 1.442695
        %v556 = vpow.pop %v555
        %v557 = vmul.f32 %v510, 1.442695
        %v558 = vpow.pop %v557
        %v559 = vmul.f32 %v511, 1.442695
        %v560 = vpow.pop %v559
        %v561 = vmul.f32 %v512, 1.442695
        %v562 = vpow.pop %v561
        %v563 = vmul.f32 %v513, 1.442695
        %v564 = vpow.pop %v563
        %v565 = vmul.f32 %v514, 1.442695
        %v566 = vpow.pop %v565
        %v567 = vmul.f32 %v515, 1.442695
        %v568 = vpow.pop %v567
        %v569 = vmul.f32 %v516, 1.442695
        %v570 = vpow.pop %v569
        %v571 = vmul.f32 %v517, 1.442695
        %v572 = vpow.pop %v571
        %v573 = vmul.f32 %v518, 1.442695
        %v574 = vpow.pop %v573
        %v575 = vmul.f32 %v519, 1.442695
        %v576 = vpow.pop %v575
        %v577 = vmul.f32 %v520, 1.442695
        %v578 = vpow.pop %v577
        %v579 = vmul.f32 %v521, 1.442695
        %v580 = vpow.pop %v579
        %v581 = vmul.f32 %v522, 1.442695
        %v582 = vpow.pop %v581
        %v583 = vmul.f32 %v523, 1.442695
        %v584 = vpow.pop %v583
        %v585 = vmul.f32 %v524, 1.442695
        %v586 = vpow.pop %v585
        %v587 = vmul.f32 %v525, 1.442695
        %v588 = vpow.pop %v587
        %v589 = vmul.f32 %v526, 1.442695
        %v590 = vpow.pop %v589
        %v591 = vadd.f32 %v528, 1.0
        %v592 = vadd.f32 %v530, 1.0
        %v593 = vadd.f32 %v532, 1.0
        %v594 = vadd.f32 %v534, 1.0
        %v595 = vadd.f32 %v536, 1.0
        %v596 = vadd.f32 %v538, 1.0
        %v597 = vadd.f32 %v540, 1.0
        %v598 = vadd.f32 %v542, 1.0
        %v599 = vadd.f32 %v544, 1.0
        %v600 = vadd.f32 %v546, 1.0
        %v601 = vadd.f32 %v548, 1.0
        %v602 = vadd.f32 %v550, 1.0
        %v603 = vadd.f32 %v552, 1.0
        %v604 = vadd.f32 %v554, 1.0
        %v605 = vadd.f32 %v556, 1.0
        %v606 = vadd.f32 %v558, 1.0
        %v607 = vadd.f32 %v560, 1.0
        %v608 = vadd.f32 %v562, 1.0
        %v609 = vadd.f32 %v564, 1.0
        %v610 = vadd.f32 %v566, 1.0
        %v611 = vadd.f32 %v568, 1.0
        %v612 = vadd.f32 %v570, 1.0
        %v613 = vadd.f32 %v572, 1.0
        %v614 = vadd.f32 %v574, 1.0
        %v615 = vadd.f32 %v576, 1.0
        %v616 = vadd.f32 %v578, 1.0
        %v617 = vadd.f32 %v580, 1.0
        %v618 = vadd.f32 %v582, 1.0
        %v619 = vadd.f32 %v584, 1.0
        %v620 = vadd.f32 %v586, 1.0
        %v621 = vadd.f32 %v588, 1.0
        %v622 = vadd.f32 %v590, 1.0
        %v623 = vrcp.pop %v591
        %v624 = vmul.f32 1.0, %v623
        %v625 = vrcp.pop %v592
        %v626 = vmul.f32 1.0, %v625
        %v627 = vrcp.pop %v593
        %v628 = vmul.f32 1.0, %v627
        %v629 = vrcp.pop %v594
        %v630 = vmul.f32 1.0, %v629
        %v631 = vrcp.pop %v595
        %v632 = vmul.f32 1.0, %v631
        %v633 = vrcp.pop %v596
        %v634 = vmul.f32 1.0, %v633
        %v635 = vrcp.pop %v597
        %v636 = vmul.f32 1.0, %v635
        %v637 = vrcp.pop %v598
        %v638 = vmul.f32 1.0, %v637
        %v639 = vrcp.pop %v599
        %v640 = vmul.f32 1.0, %v639
        %v641 = vrcp.pop %v600
        %v642 = vmul.f32 1.0, %v641
        %v643 = vrcp.pop %v601
        %v644 = vmul.f32 1.0, %v643
        %v645 = vrcp.pop %v602
        %v646 = vmul.f32 1.0, %v645
        %v647 = vrcp.pop %v603
        %v648 = vmul.f32 1.0, %v647
        %v649 = vrcp.pop %v604
        %v650 = vmul.f32 1.0, %v649
        %v651 = vrcp.pop %v605
        %v652 = vmul.f32 1.0, %v651
        %v653 = vrcp.pop %v606
        %v654 = vmul.f32 1.0, %v653
        %v655 = vrcp.pop %v607
        %v656 = vmul.f32 1.0, %v655
        %v657 = vrcp.pop %v608
        %v658 = vmul.f32 1.0, %v657
        %v659 = vrcp.pop %v609
        %v660 = vmul.f32 1.0, %v659
        %v661 = vrcp.pop %v610
        %v662 = vmul.f32 1.0, %v661
        %v663 = vrcp.pop %v611
        %v664 = vmul.f32 1.0, %v663
        %v665 = vrcp.pop %v612
        %v666 = vmul.f32 1.0, %v665
        %v667 = vrcp.pop %v613
        %v668 = vmul.f32 1.0, %v667
        %v669 = vrcp.pop %v614
        %v670 = vmul.f32 1.0, %v669
        %v671 = vrcp.pop %v615
        %v672 = vmul.f32 1.0, %v671
        %v673 = vrcp.pop %v616
        %v674 = vmul.f32 1.0, %v673
        %v675 = vrcp.pop %v617
        %v676 = vmul.f32 1.0, %v675
        %v677 = vrcp.pop %v618
        %v678 = vmul.f32 1.0, %v677
        %v679 = vrcp.pop %v619
        %v680 = vmul.f32 1.0, %v679
        %v681 = vrcp.pop %v620
        %v682 = vmul.f32 1.0, %v681
        %v683 = vrcp.pop %v621
        %v684 = vmul.f32 1.0, %v683
        %v685 = vrcp.pop %v622
        %v686 = vmul.f32 1.0, %v685
        %v687 = vmul.f32 %v369, %v624
        %v688 = vmul.f32 %v372, %v626
        %v689 = vmul.f32 %v377, %v628
        %v690 = vmul.f32 %v380, %v630
        %v691 = vmul.f32 %v385, %v632
        %v692 = vmul.f32 %v388, %v634
        %v693 = vmul.f32 %v393, %v636
        %v694 = vmul.f32 %v396, %v638
        %v695 = vmul.f32 %v401, %v640
        %v696 = vmul.f32 %v404, %v642
        %v697 = vmul.f32 %v409, %v644
        %v698 = vmul.f32 %v412, %v646
        %v699 = vmul.f32 %v417, %v648
        %v700 = vmul.f32 %v420, %v650
        %v701 = vmul.f32 %v425, %v652
        %v702 = vmul.f32 %v428, %v654
        %v703 = vmul.f32 %v433, %v656
        %v704 = vmul.f32 %v436, %v658
        %v705 = vmul.f32 %v441, %v660
        %v706 = vmul.f32 %v444, %v662
        %v707 = vmul.f32 %v449, %v664
        %v708 = vmul.f32 %v452, %v666
        %v709 = vmul.f32 %v457, %v668
        %v710 = vmul.f32 %v460, %v670
        %v711 = vmul.f32 %v465, %v672
        %v712 = vmul.f32 %v468, %v674
        %v713 = vmul.f32 %v473, %v676
        %v714 = vmul.f32 %v476, %v678
        %v715 = vmul.f32 %v481, %v680
        %v716 = vmul.f32 %v484, %v682
        %v717 = vmul.f32 %v489, %v684
        %v718 = vmul.f32 %v492, %v686
        %v719 = vpack.c.bf16 %v688, %v687
        %v720 = vpack.c.bf16 %v690, %v689
        %v721 = vpack.c.bf16 %v692, %v691
        %v722 = vpack.c.bf16 %v694, %v693
        %v723 = vpack.c.bf16 %v696, %v695
        %v724 = vpack.c.bf16 %v698, %v697
        %v725 = vpack.c.bf16 %v700, %v699
        %v726 = vpack.c.bf16 %v702, %v701
        %v727 = vpack.c.bf16 %v704, %v703
        %v728 = vpack.c.bf16 %v706, %v705
        %v729 = vpack.c.bf16 %v708, %v707
        %v730 = vpack.c.bf16 %v710, %v709
        %v731 = vpack.c.bf16 %v712, %v711
        %v732 = vpack.c.bf16 %v714, %v713
        %v733 = vpack.c.bf16 %v716, %v715
        %v734 = vpack.c.bf16 %v718, %v717
        %735 = vst [vmem:[#allocation2] sm:$0xff] 4286578559
        %736 = vst [vmem:[#allocation2 + $0x8] sm:$0xff] 4286578559
        %737 = vst [vmem:[#allocation2 + $0x10] sm:$0xff] 4286578559
        %738 = vst [vmem:[#allocation2 + $0x18] sm:$0xff] 4286578559
        %739 = vst [vmem:[#allocation2 + $0x20] sm:$0xff] 4286578559
        %740 = vst [vmem:[#allocation2 + $0x28] sm:$0xff] 4286578559
        %741 = vst [vmem:[#allocation2 + $0x30] sm:$0xff] 4286578559
        %742 = vst [vmem:[#allocation2 + $0x38] sm:$0xff] 4286578559
        %743 = vst [vmem:[#allocation2 + $0x40] sm:$0xff] 4286578559
        %744 = vst [vmem:[#allocation2 + $0x48] sm:$0xff] 4286578559
        %745 = vst [vmem:[#allocation2 + $0x50] sm:$0xff] 4286578559
        %746 = vst [vmem:[#allocation2 + $0x58] sm:$0xff] 4286578559
        %s747 = scalar_lea.vmem [#allocation2], 352
        %748 = vst [vmem:[%s747] sm:$0xff] 4286578559
        %749 = vst [vmem:[%s747 + $0x8] sm:$0xff] 4286578559
        %750 = vst [vmem:[%s747 + $0x10] sm:$0xff] 4286578559
        %751 = vst [vmem:[%s747 + $0x18] sm:$0xff] 4286578559
        %752 = vst [vmem:[%s747 + $0x20] sm:$0xff] 4286578559
        %753 = vst [vmem:[%s747 + $0x28] sm:$0xff] 4286578559
        %754 = vst [vmem:[%s747 + $0x30] sm:$0xff] 4286578559
        %755 = vst [vmem:[%s747 + $0x38] sm:$0xff] 4286578559
        %756 = vst [vmem:[%s747 + $0x40] sm:$0xff] 4286578559
        %757 = vst [vmem:[%s747 + $0x48] sm:$0xff] 4286578559
        %758 = vst [vmem:[%s747 + $0x50] sm:$0xff] 4286578559
        %759 = vst [vmem:[%s747 + $0x58] sm:$0xff] 4286578559
        %s760 = scalar_lea.vmem [#allocation2], 96
        %761 = vst [vmem:[%s760] sm:$0xf] 4286578559
        %762 = vst [vmem:[%s760 + $0x10] sm:$0xf] 4286578559
        %763 = vst [vmem:[%s760 + $0x20] sm:$0xf] 4286578559
        %764 = vst [vmem:[%s760 + $0x30] sm:$0xf] 4286578559
        %765 = vst [vmem:[%s760 + $0x40] sm:$0xf] 4286578559
        %766 = vst [vmem:[%s760 + $0x50] sm:$0xf] 4286578559
        %767 = vst [vmem:[%s760 + $0x60] sm:$0xf] 4286578559
        %768 = vst [vmem:[%s760 + $0x70] sm:$0xf] 4286578559
        %769 = vst [vmem:[%s760 + $0x80] sm:$0xf] 4286578559
        %770 = vst [vmem:[%s760 + $0x90] sm:$0xf] 4286578559
        %771 = vst [vmem:[%s760 + $0xa0] sm:$0xf] 4286578559
        %772 = vst [vmem:[%s760 + $0xb0] sm:$0xf] 4286578559
        %773 = vst [vmem:[%s760 + $0xc0] sm:$0xf] 4286578559
        %774 = vst [vmem:[%s760 + $0xd0] sm:$0xf] 4286578559
        %775 = vst [vmem:[%s760 + $0xe0] sm:$0xf] 4286578559
        %776 = vst [vmem:[%s760 + $0xf0] sm:$0xf] 4286578559
        %777 = vst [vmem:[%s760 + $0x8] sm:$0xf0] 4286578559
        %778 = vst [vmem:[%s760 + $0x18] sm:$0xf0] 4286578559
        %779 = vst [vmem:[%s760 + $0x28] sm:$0xf0] 4286578559
        %780 = vst [vmem:[%s760 + $0x38] sm:$0xf0] 4286578559
        %781 = vst [vmem:[%s760 + $0x48] sm:$0xf0] 4286578559
        %782 = vst [vmem:[%s760 + $0x58] sm:$0xf0] 4286578559
        %783 = vst [vmem:[%s760 + $0x68] sm:$0xf0] 4286578559
        %784 = vst [vmem:[%s760 + $0x78] sm:$0xf0] 4286578559
        %785 = vst [vmem:[%s760 + $0x88] sm:$0xf0] 4286578559
        %786 = vst [vmem:[%s760 + $0x98] sm:$0xf0] 4286578559
        %787 = vst [vmem:[%s760 + $0xa8] sm:$0xf0] 4286578559
        %788 = vst [vmem:[%s760 + $0xb8] sm:$0xf0] 4286578559
        %789 = vst [vmem:[%s760 + $0xc8] sm:$0xf0] 4286578559
        %790 = vst [vmem:[%s760 + $0xd8] sm:$0xf0] 4286578559
        %791 = vst [vmem:[%s760 + $0xe8] sm:$0xf0] 4286578559
        %792 = vst [vmem:[%s760 + $0xf8] sm:$0xf0] 4286578559
        %v809 = vrot.slane %v719, 4
        %v810 = vrot.slane %v720, 4
        %v811 = vrot.slane %v721, 4
        %v812 = vrot.slane %v722, 4
        %v813 = vrot.slane %v723, 4
        %v814 = vrot.slane %v724, 4
        %v815 = vrot.slane %v725, 4
        %v816 = vrot.slane %v726, 4
        %v817 = vrot.slane %v727, 4
        %v818 = vrot.slane %v728, 4
        %v819 = vrot.slane %v729, 4
        %v820 = vrot.slane %v730, 4
        %v821 = vrot.slane %v731, 4
        %v822 = vrot.slane %v732, 4
        %v823 = vrot.slane %v733, 4
        %v824 = vrot.slane %v734, 4
        %841 = vst [vmem:[%s760] sm:$0xf0] %v809
        %842 = vst [vmem:[%s760 + $0x8] sm:$0xf] %v809
        %843 = vst [vmem:[%s760 + $0x10] sm:$0xf0] %v810
        %844 = vst [vmem:[%s760 + $0x18] sm:$0xf] %v810
        %845 = vst [vmem:[%s760 + $0x20] sm:$0xf0] %v811
        %846 = vst [vmem:[%s760 + $0x28] sm:$0xf] %v811
        %847 = vst [vmem:[%s760 + $0x30] sm:$0xf0] %v812
        %848 = vst [vmem:[%s760 + $0x38] sm:$0xf] %v812
        %849 = vst [vmem:[%s760 + $0x40] sm:$0xf0] %v813
        %850 = vst [vmem:[%s760 + $0x48] sm:$0xf] %v813
        %851 = vst [vmem:[%s760 + $0x50] sm:$0xf0] %v814
        %852 = vst [vmem:[%s760 + $0x58] sm:$0xf] %v814
        %853 = vst [vmem:[%s760 + $0x60] sm:$0xf0] %v815
        %854 = vst [vmem:[%s760 + $0x68] sm:$0xf] %v815
        %855 = vst [vmem:[%s760 + $0x70] sm:$0xf0] %v816
        %856 = vst [vmem:[%s760 + $0x78] sm:$0xf] %v816
        %857 = vst [vmem:[%s760 + $0x80] sm:$0xf0] %v817
        %858 = vst [vmem:[%s760 + $0x88] sm:$0xf] %v817
        %859 = vst [vmem:[%s760 + $0x90] sm:$0xf0] %v818
        %860 = vst [vmem:[%s760 + $0x98] sm:$0xf] %v818
        %861 = vst [vmem:[%s760 + $0xa0] sm:$0xf0] %v819
        %862 = vst [vmem:[%s760 + $0xa8] sm:$0xf] %v819
        %863 = vst [vmem:[%s760 + $0xb0] sm:$0xf0] %v820
        %864 = vst [vmem:[%s760 + $0xb8] sm:$0xf] %v820
        %865 = vst [vmem:[%s760 + $0xc0] sm:$0xf0] %v821
        %866 = vst [vmem:[%s760 + $0xc8] sm:$0xf] %v821
        %867 = vst [vmem:[%s760 + $0xd0] sm:$0xf0] %v822
        %868 = vst [vmem:[%s760 + $0xd8] sm:$0xf] %v822
        %869 = vst [vmem:[%s760 + $0xe0] sm:$0xf0] %v823
        %870 = vst [vmem:[%s760 + $0xe8] sm:$0xf] %v823
        %871 = vst [vmem:[%s760 + $0xf0] sm:$0xf0] %v824
        %872 = vst [vmem:[%s760 + $0xf8] sm:$0xf] %v824
        %v873 = vld [vmem:[#allocation2] sm:$0xff]
        %v874 = vld [vmem:[#allocation2 + $0x8] sm:$0xff]
        %v875 = vld [vmem:[#allocation2 + $0x10] sm:$0xff]
        %v876 = vld [vmem:[#allocation2 + $0x18] sm:$0xff]
        %v877 = vld [vmem:[#allocation2 + $0x20] sm:$0xff]
        %v878 = vld [vmem:[#allocation2 + $0x28] sm:$0xff]
        %v879 = vld [vmem:[#allocation2 + $0x30] sm:$0xff]
        %v880 = vld [vmem:[#allocation2 + $0x38] sm:$0xff]
        %v881 = vld [vmem:[#allocation2 + $0x40] sm:$0xff]
        %v882 = vld [vmem:[#allocation2 + $0x48] sm:$0xff]
        %v883 = vld [vmem:[#allocation2 + $0x50] sm:$0xff]
        %v884 = vld [vmem:[#allocation2 + $0x58] sm:$0xff]
        %v885 = vld [vmem:[#allocation2 + $0x60] sm:$0xff]
        %v886 = vld [vmem:[#allocation2 + $0x68] sm:$0xff]
        %v887 = vld [vmem:[#allocation2 + $0x70] sm:$0xff]
        %v888 = vld [vmem:[#allocation2 + $0x78] sm:$0xff]
        %v889 = vld [vmem:[#allocation2 + $0x80] sm:$0xff]
        %v890 = vld [vmem:[#allocation2 + $0x88] sm:$0xff]
        %v891 = vld [vmem:[#allocation2 + $0x90] sm:$0xff]
        %v892 = vld [vmem:[#allocation2 + $0x98] sm:$0xff]
        %v893 = vld [vmem:[#allocation2 + $0xa0] sm:$0xff]
        %v894 = vld [vmem:[#allocation2 + $0xa8] sm:$0xff]
        %v895 = vld [vmem:[#allocation2 + $0xb0] sm:$0xff]
        %v896 = vld [vmem:[#allocation2 + $0xb8] sm:$0xff]
        %v897 = vld [vmem:[#allocation2 + $0xc0] sm:$0xff]
        %v898 = vld [vmem:[#allocation2 + $0xc8] sm:$0xff]
        %v899 = vld [vmem:[#allocation2 + $0xd0] sm:$0xff]
        %v900 = vld [vmem:[#allocation2 + $0xd8] sm:$0xff]
        %v901 = vld [vmem:[#allocation2 + $0xe0] sm:$0xff]
        %v902 = vld [vmem:[#allocation2 + $0xe8] sm:$0xff]
        %v903 = vld [vmem:[#allocation2 + $0xf0] sm:$0xff]
        %v904 = vld [vmem:[#allocation2 + $0xf8] sm:$0xff]
        %v905 = vld [vmem:[#allocation2 + $0x100] sm:$0xff]
        %v906 = vld [vmem:[#allocation2 + $0x108] sm:$0xff]
        %v907 = vld [vmem:[#allocation2 + $0x110] sm:$0xff]
        %v908 = vld [vmem:[#allocation2 + $0x118] sm:$0xff]
        %v909 = vld [vmem:[#allocation2 + $0x120] sm:$0xff]
        %v910 = vld [vmem:[#allocation2 + $0x128] sm:$0xff]
        %v911 = vld [vmem:[#allocation2 + $0x130] sm:$0xff]
        %v912 = vld [vmem:[#allocation2 + $0x138] sm:$0xff]
        %v913 = vld [vmem:[#allocation2 + $0x140] sm:$0xff]
        %v914 = vld [vmem:[#allocation2 + $0x148] sm:$0xff]
        %v915 = vld [vmem:[#allocation2 + $0x150] sm:$0xff]
        %v916 = vld [vmem:[#allocation2 + $0x158] sm:$0xff]
        %v917 = vld [vmem:[#allocation2 + $0x160] sm:$0xff]
        %v918 = vld [vmem:[#allocation2 + $0x168] sm:$0xff]
        %v919 = vld [vmem:[#allocation2 + $0x170] sm:$0xff]
        %v920 = vld [vmem:[#allocation2 + $0x178] sm:$0xff]
        %v921 = vld [vmem:[#allocation2 + $0x180] sm:$0xff]
        %v922 = vld [vmem:[#allocation2 + $0x188] sm:$0xff]
        %v923 = vld [vmem:[#allocation2 + $0x190] sm:$0xff]
        %v924 = vld [vmem:[#allocation2 + $0x198] sm:$0xff]
        %v925 = vld [vmem:[#allocation2 + $0x1a0] sm:$0xff]
        %v926 = vld [vmem:[#allocation2 + $0x1a8] sm:$0xff]
        %v927 = vld [vmem:[#allocation2 + $0x1b0] sm:$0xff]
        %v928 = vld [vmem:[#allocation2 + $0x1b8] sm:$0xff]
        %vm929 = vsmask.f32 7424
        %v931 = vshrl.u32 %v873, 16
        %v933 = vshll.u32 %v873, 16
        %v935 = vrot.slane %v933, 1
        %v936 = vor.u32 %v931, %v935
        %v938 = vshll.u32 %v874, 16
        %v940 = vrot.slane %v938, 1
        %v941 = vsel %vm929, %v936, %v940
        %v942 = vshrl.u32 %v874, 16
        %v944 = vor.u32 %v942, %v940
        %v946 = vshrl.u32 %v875, 16
        %v948 = vshll.u32 %v875, 16
        %v950 = vrot.slane %v948, 1
        %v951 = vor.u32 %v946, %v950
        %v953 = vshll.u32 %v876, 16
        %v955 = vrot.slane %v953, 1
        %v956 = vsel %vm929, %v951, %v955
        %v957 = vshrl.u32 %v876, 16
        %v959 = vor.u32 %v957, %v955
        %v961 = vshrl.u32 %v877, 16
        %v963 = vshll.u32 %v877, 16
        %v965 = vrot.slane %v963, 1
        %v966 = vor.u32 %v961, %v965
        %v968 = vshll.u32 %v878, 16
        %v970 = vrot.slane %v968, 1
        %v971 = vsel %vm929, %v966, %v970
        %v972 = vshrl.u32 %v878, 16
        %v974 = vor.u32 %v972, %v970
        %v976 = vshrl.u32 %v879, 16
        %v978 = vshll.u32 %v879, 16
        %v980 = vrot.slane %v978, 1
        %v981 = vor.u32 %v976, %v980
        %v983 = vshll.u32 %v880, 16
        %v985 = vrot.slane %v983, 1
        %v986 = vsel %vm929, %v981, %v985
        %v987 = vshrl.u32 %v880, 16
        %v989 = vor.u32 %v987, %v985
        %v991 = vshrl.u32 %v881, 16
        %v993 = vshll.u32 %v881, 16
        %v995 = vrot.slane %v993, 1
        %v996 = vor.u32 %v991, %v995
        %v998 = vshll.u32 %v882, 16
        %v1000 = vrot.slane %v998, 1
        %v1001 = vsel %vm929, %v996, %v1000
        %v1002 = vshrl.u32 %v882, 16
        %v1004 = vor.u32 %v1002, %v1000
        %v1006 = vshrl.u32 %v883, 16
        %v1008 = vshll.u32 %v883, 16
        %v1010 = vrot.slane %v1008, 1
        %v1011 = vor.u32 %v1006, %v1010
        %v1013 = vshll.u32 %v884, 16
        %v1015 = vrot.slane %v1013, 1
        %v1016 = vsel %vm929, %v1011, %v1015
        %v1017 = vshrl.u32 %v884, 16
        %v1019 = vor.u32 %v1017, %v1015
        %v1021 = vshrl.u32 %v885, 16
        %v1023 = vshll.u32 %v885, 16
        %v1025 = vrot.slane %v1023, 1
        %v1026 = vor.u32 %v1021, %v1025
        %v1028 = vshll.u32 %v886, 16
        %v1030 = vrot.slane %v1028, 1
        %v1031 = vsel %vm929, %v1026, %v1030
        %v1032 = vshrl.u32 %v886, 16
        %v1034 = vor.u32 %v1032, %v1030
        %v1036 = vshrl.u32 %v887, 16
        %v1038 = vshll.u32 %v887, 16
        %v1040 = vrot.slane %v1038, 1
        %v1041 = vor.u32 %v1036, %v1040
        %v1043 = vshll.u32 %v888, 16
        %v1045 = vrot.slane %v1043, 1
        %v1046 = vsel %vm929, %v1041, %v1045
        %v1047 = vshrl.u32 %v888, 16
        %v1049 = vor.u32 %v1047, %v1045
        %v1051 = vshrl.u32 %v889, 16
        %v1053 = vshll.u32 %v889, 16
        %v1055 = vrot.slane %v1053, 1
        %v1056 = vor.u32 %v1051, %v1055
        %v1058 = vshll.u32 %v890, 16
        %v1060 = vrot.slane %v1058, 1
        %v1061 = vsel %vm929, %v1056, %v1060
        %v1062 = vshrl.u32 %v890, 16
        %v1064 = vor.u32 %v1062, %v1060
        %v1066 = vshrl.u32 %v891, 16
        %v1068 = vshll.u32 %v891, 16
        %v1070 = vrot.slane %v1068, 1
        %v1071 = vor.u32 %v1066, %v1070
        %v1073 = vshll.u32 %v892, 16
        %v1075 = vrot.slane %v1073, 1
        %v1076 = vsel %vm929, %v1071, %v1075
        %v1077 = vshrl.u32 %v892, 16
        %v1079 = vor.u32 %v1077, %v1075
        %v1081 = vshrl.u32 %v893, 16
        %v1083 = vshll.u32 %v893, 16
        %v1085 = vrot.slane %v1083, 1
        %v1086 = vor.u32 %v1081, %v1085
        %v1088 = vshll.u32 %v894, 16
        %v1090 = vrot.slane %v1088, 1
        %v1091 = vsel %vm929, %v1086, %v1090
        %v1092 = vshrl.u32 %v894, 16
        %v1094 = vor.u32 %v1092, %v1090
        %v1096 = vshrl.u32 %v895, 16
        %v1098 = vshll.u32 %v895, 16
        %v1100 = vrot.slane %v1098, 1
        %v1101 = vor.u32 %v1096, %v1100
        %v1103 = vshll.u32 %v896, 16
        %v1105 = vrot.slane %v1103, 1
        %v1106 = vsel %vm929, %v1101, %v1105
        %v1107 = vshrl.u32 %v896, 16
        %v1109 = vor.u32 %v1107, %v1105
        %v1111 = vshrl.u32 %v897, 16
        %v1113 = vshll.u32 %v897, 16
        %v1115 = vrot.slane %v1113, 1
        %v1116 = vor.u32 %v1111, %v1115
        %v1118 = vshll.u32 %v898, 16
        %v1120 = vrot.slane %v1118, 1
        %v1121 = vsel %vm929, %v1116, %v1120
        %v1122 = vshrl.u32 %v898, 16
        %v1124 = vor.u32 %v1122, %v1120
        %v1126 = vshrl.u32 %v899, 16
        %v1128 = vshll.u32 %v899, 16
        %v1130 = vrot.slane %v1128, 1
        %v1131 = vor.u32 %v1126, %v1130
        %v1133 = vshll.u32 %v900, 16
        %v1135 = vrot.slane %v1133, 1
        %v1136 = vsel %vm929, %v1131, %v1135
        %v1137 = vshrl.u32 %v900, 16
        %v1139 = vor.u32 %v1137, %v1135
        %v1141 = vshrl.u32 %v901, 16
        %v1143 = vshll.u32 %v901, 16
        %v1145 = vrot.slane %v1143, 1
        %v1146 = vor.u32 %v1141, %v1145
        %v1148 = vshll.u32 %v902, 16
        %v1150 = vrot.slane %v1148, 1
        %v1151 = vsel %vm929, %v1146, %v1150
        %v1152 = vshrl.u32 %v902, 16
        %v1154 = vor.u32 %v1152, %v1150
        %v1156 = vshrl.u32 %v903, 16
        %v1158 = vshll.u32 %v903, 16
        %v1160 = vrot.slane %v1158, 1
        %v1161 = vor.u32 %v1156, %v1160
        %v1163 = vshll.u32 %v904, 16
        %v1165 = vrot.slane %v1163, 1
        %v1166 = vsel %vm929, %v1161, %v1165
        %v1167 = vshrl.u32 %v904, 16
        %v1169 = vor.u32 %v1167, %v1165
        %v1171 = vshrl.u32 %v905, 16
        %v1173 = vshll.u32 %v905, 16
        %v1175 = vrot.slane %v1173, 1
        %v1176 = vor.u32 %v1171, %v1175
        %v1178 = vshll.u32 %v906, 16
        %v1180 = vrot.slane %v1178, 1
        %v1181 = vsel %vm929, %v1176, %v1180
        %v1182 = vshrl.u32 %v906, 16
        %v1184 = vor.u32 %v1182, %v1180
        %v1186 = vshrl.u32 %v907, 16
        %v1188 = vshll.u32 %v907, 16
        %v1190 = vrot.slane %v1188, 1
        %v1191 = vor.u32 %v1186, %v1190
        %v1193 = vshll.u32 %v908, 16
        %v1195 = vrot.slane %v1193, 1
        %v1196 = vsel %vm929, %v1191, %v1195
        %v1197 = vshrl.u32 %v908, 16
        %v1199 = vor.u32 %v1197, %v1195
        %v1201 = vshrl.u32 %v909, 16
        %v1203 = vshll.u32 %v909, 16
        %v1205 = vrot.slane %v1203, 1
        %v1206 = vor.u32 %v1201, %v1205
        %v1208 = vshll.u32 %v910, 16
        %v1210 = vrot.slane %v1208, 1
        %v1211 = vsel %vm929, %v1206, %v1210
        %v1212 = vshrl.u32 %v910, 16
        %v1214 = vor.u32 %v1212, %v1210
        %v1216 = vshrl.u32 %v911, 16
        %v1218 = vshll.u32 %v911, 16
        %v1220 = vrot.slane %v1218, 1
        %v1221 = vor.u32 %v1216, %v1220
        %v1223 = vshll.u32 %v912, 16
        %v1225 = vrot.slane %v1223, 1
        %v1226 = vsel %vm929, %v1221, %v1225
        %v1227 = vshrl.u32 %v912, 16
        %v1229 = vor.u32 %v1227, %v1225
        %v1231 = vshrl.u32 %v913, 16
        %v1233 = vshll.u32 %v913, 16
        %v1235 = vrot.slane %v1233, 1
        %v1236 = vor.u32 %v1231, %v1235
        %v1238 = vshll.u32 %v914, 16
        %v1240 = vrot.slane %v1238, 1
        %v1241 = vsel %vm929, %v1236, %v1240
        %v1242 = vshrl.u32 %v914, 16
        %v1244 = vor.u32 %v1242, %v1240
        %v1246 = vshrl.u32 %v915, 16
        %v1248 = vshll.u32 %v915, 16
        %v1250 = vrot.slane %v1248, 1
        %v1251 = vor.u32 %v1246, %v1250
        %v1253 = vshll.u32 %v916, 16
        %v1255 = vrot.slane %v1253, 1
        %v1256 = vsel %vm929, %v1251, %v1255
        %v1257 = vshrl.u32 %v916, 16
        %v1259 = vor.u32 %v1257, %v1255
        %v1261 = vshrl.u32 %v917, 16
        %v1263 = vshll.u32 %v917, 16
        %v1265 = vrot.slane %v1263, 1
        %v1266 = vor.u32 %v1261, %v1265
        %v1268 = vshll.u32 %v918, 16
        %v1270 = vrot.slane %v1268, 1
        %v1271 = vsel %vm929, %v1266, %v1270
        %v1272 = vshrl.u32 %v918, 16
        %v1274 = vor.u32 %v1272, %v1270
        %v1276 = vshrl.u32 %v919, 16
        %v1278 = vshll.u32 %v919, 16
        %v1280 = vrot.slane %v1278, 1
        %v1281 = vor.u32 %v1276, %v1280
        %v1283 = vshll.u32 %v920, 16
        %v1285 = vrot.slane %v1283, 1
        %v1286 = vsel %vm929, %v1281, %v1285
        %v1287 = vshrl.u32 %v920, 16
        %v1289 = vor.u32 %v1287, %v1285
        %v1291 = vshrl.u32 %v921, 16
        %v1293 = vshll.u32 %v921, 16
        %v1295 = vrot.slane %v1293, 1
        %v1296 = vor.u32 %v1291, %v1295
        %v1298 = vshll.u32 %v922, 16
        %v1300 = vrot.slane %v1298, 1
        %v1301 = vsel %vm929, %v1296, %v1300
        %v1302 = vshrl.u32 %v922, 16
        %v1304 = vor.u32 %v1302, %v1300
        %v1306 = vshrl.u32 %v923, 16
        %v1308 = vshll.u32 %v923, 16
        %v1310 = vrot.slane %v1308, 1
        %v1311 = vor.u32 %v1306, %v1310
        %v1313 = vshll.u32 %v924, 16
        %v1315 = vrot.slane %v1313, 1
        %v1316 = vsel %vm929, %v1311, %v1315
        %v1317 = vshrl.u32 %v924, 16
        %v1319 = vor.u32 %v1317, %v1315
        %v1321 = vshrl.u32 %v925, 16
        %v1323 = vshll.u32 %v925, 16
        %v1325 = vrot.slane %v1323, 1
        %v1326 = vor.u32 %v1321, %v1325
        %v1328 = vshll.u32 %v926, 16
        %v1330 = vrot.slane %v1328, 1
        %v1331 = vsel %vm929, %v1326, %v1330
        %v1332 = vshrl.u32 %v926, 16
        %v1334 = vor.u32 %v1332, %v1330
        %v1336 = vshrl.u32 %v927, 16
        %v1338 = vshll.u32 %v927, 16
        %v1340 = vrot.slane %v1338, 1
        %v1341 = vor.u32 %v1336, %v1340
        %v1343 = vshll.u32 %v928, 16
        %v1345 = vrot.slane %v1343, 1
        %v1346 = vsel %vm929, %v1341, %v1345
        %v1347 = vshrl.u32 %v928, 16
        %v1349 = vor.u32 %v1347, %v1345
        %v1406 = vmax.bf16 %v873, %v941
        %v1407 = vmax.bf16 %v874, %v944
        %v1408 = vmax.bf16 %v875, %v956
        %v1409 = vmax.bf16 %v876, %v959
        %v1410 = vmax.bf16 %v877, %v971
        %v1411 = vmax.bf16 %v878, %v974
        %v1412 = vmax.bf16 %v879, %v986
        %v1413 = vmax.bf16 %v880, %v989
        %v1414 = vmax.bf16 %v881, %v1001
        %v1415 = vmax.bf16 %v882, %v1004
        %v1416 = vmax.bf16 %v883, %v1016
        %v1417 = vmax.bf16 %v884, %v1019
        %v1418 = vmax.bf16 %v885, %v1031
        %v1419 = vmax.bf16 %v886, %v1034
        %v1420 = vmax.bf16 %v887, %v1046
        %v1421 = vmax.bf16 %v888, %v1049
        %v1422 = vmax.bf16 %v889, %v1061
        %v1423 = vmax.bf16 %v890, %v1064
        %v1424 = vmax.bf16 %v891, %v1076
        %v1425 = vmax.bf16 %v892, %v1079
        %v1426 = vmax.bf16 %v893, %v1091
        %v1427 = vmax.bf16 %v894, %v1094
        %v1428 = vmax.bf16 %v895, %v1106
        %v1429 = vmax.bf16 %v896, %v1109
        %v1430 = vmax.bf16 %v897, %v1121
        %v1431 = vmax.bf16 %v898, %v1124
        %v1432 = vmax.bf16 %v899, %v1136
        %v1433 = vmax.bf16 %v900, %v1139
        %v1434 = vmax.bf16 %v901, %v1151
        %v1435 = vmax.bf16 %v902, %v1154
        %v1436 = vmax.bf16 %v903, %v1166
        %v1437 = vmax.bf16 %v904, %v1169
        %v1438 = vmax.bf16 %v905, %v1181
        %v1439 = vmax.bf16 %v906, %v1184
        %v1440 = vmax.bf16 %v907, %v1196
        %v1441 = vmax.bf16 %v908, %v1199
        %v1442 = vmax.bf16 %v909, %v1211
        %v1443 = vmax.bf16 %v910, %v1214
        %v1444 = vmax.bf16 %v911, %v1226
        %v1445 = vmax.bf16 %v912, %v1229
        %v1446 = vmax.bf16 %v913, %v1241
        %v1447 = vmax.bf16 %v914, %v1244
        %v1448 = vmax.bf16 %v915, %v1256
        %v1449 = vmax.bf16 %v916, %v1259
        %v1450 = vmax.bf16 %v917, %v1271
        %v1451 = vmax.bf16 %v918, %v1274
        %v1452 = vmax.bf16 %v919, %v1286
        %v1453 = vmax.bf16 %v920, %v1289
        %v1454 = vmax.bf16 %v921, %v1301
        %v1455 = vmax.bf16 %v922, %v1304
        %v1456 = vmax.bf16 %v923, %v1316
        %v1457 = vmax.bf16 %v924, %v1319
        %v1458 = vmax.bf16 %v925, %v1331
        %v1459 = vmax.bf16 %v926, %v1334
        %v1460 = vmax.bf16 %v927, %v1346
        %v1461 = vmax.bf16 %v928, %v1349
        %vm1518 = vcmask 1046528
        %v1519 = vrot.slane %v873, 1
        %v1520 = vrot.slane %v874, 1
        %v1521 = vsel %vm1518, %v1519, %v1520
        %v1522 = vrot.slane %v875, 1
        %v1523 = vrot.slane %v876, 1
        %v1524 = vsel %vm1518, %v1522, %v1523
        %v1525 = vrot.slane %v877, 1
        %v1526 = vrot.slane %v878, 1
        %v1527 = vsel %vm1518, %v1525, %v1526
        %v1528 = vrot.slane %v879, 1
        %v1529 = vrot.slane %v880, 1
        %v1530 = vsel %vm1518, %v1528, %v1529
        %v1531 = vrot.slane %v881, 1
        %v1532 = vrot.slane %v882, 1
        %v1533 = vsel %vm1518, %v1531, %v1532
        %v1534 = vrot.slane %v883, 1
        %v1535 = vrot.slane %v884, 1
        %v1536 = vsel %vm1518, %v1534, %v1535
        %v1537 = vrot.slane %v885, 1
        %v1538 = vrot.slane %v886, 1
        %v1539 = vsel %vm1518, %v1537, %v1538
        %v1540 = vrot.slane %v887, 1
        %v1541 = vrot.slane %v888, 1
        %v1542 = vsel %vm1518, %v1540, %v1541
        %v1543 = vrot.slane %v889, 1
        %v1544 = vrot.slane %v890, 1
        %v1545 = vsel %vm1518, %v1543, %v1544
        %v1546 = vrot.slane %v891, 1
        %v1547 = vrot.slane %v892, 1
        %v1548 = vsel %vm1518, %v1546, %v1547
        %v1549 = vrot.slane %v893, 1
        %v1550 = vrot.slane %v894, 1
        %v1551 = vsel %vm1518, %v1549, %v1550
        %v1552 = vrot.slane %v895, 1
        %v1553 = vrot.slane %v896, 1
        %v1554 = vsel %vm1518, %v1552, %v1553
        %v1555 = vrot.slane %v897, 1
        %v1556 = vrot.slane %v898, 1
        %v1557 = vsel %vm1518, %v1555, %v1556
        %v1558 = vrot.slane %v899, 1
        %v1559 = vrot.slane %v900, 1
        %v1560 = vsel %vm1518, %v1558, %v1559
        %v1561 = vrot.slane %v901, 1
        %v1562 = vrot.slane %v902, 1
        %v1563 = vsel %vm1518, %v1561, %v1562
        %v1564 = vrot.slane %v903, 1
        %v1565 = vrot.slane %v904, 1
        %v1566 = vsel %vm1518, %v1564, %v1565
        %v1567 = vrot.slane %v905, 1
        %v1568 = vrot.slane %v906, 1
        %v1569 = vsel %vm1518, %v1567, %v1568
        %v1570 = vrot.slane %v907, 1
        %v1571 = vrot.slane %v908, 1
        %v1572 = vsel %vm1518, %v1570, %v1571
        %v1573 = vrot.slane %v909, 1
        %v1574 = vrot.slane %v910, 1
        %v1575 = vsel %vm1518, %v1573, %v1574
        %v1576 = vrot.slane %v911, 1
        %v1577 = vrot.slane %v912, 1
        %v1578 = vsel %vm1518, %v1576, %v1577
        %v1579 = vrot.slane %v913, 1
        %v1580 = vrot.slane %v914, 1
        %v1581 = vsel %vm1518, %v1579, %v1580
        %v1582 = vrot.slane %v915, 1
        %v1583 = vrot.slane %v916, 1
        %v1584 = vsel %vm1518, %v1582, %v1583
        %v1585 = vrot.slane %v917, 1
        %v1586 = vrot.slane %v918, 1
        %v1587 = vsel %vm1518, %v1585, %v1586
        %v1588 = vrot.slane %v919, 1
        %v1589 = vrot.slane %v920, 1
        %v1590 = vsel %vm1518, %v1588, %v1589
        %v1591 = vrot.slane %v921, 1
        %v1592 = vrot.slane %v922, 1
        %v1593 = vsel %vm1518, %v1591, %v1592
        %v1594 = vrot.slane %v923, 1
        %v1595 = vrot.slane %v924, 1
        %v1596 = vsel %vm1518, %v1594, %v1595
        %v1597 = vrot.slane %v925, 1
        %v1598 = vrot.slane %v926, 1
        %v1599 = vsel %vm1518, %v1597, %v1598
        %v1600 = vrot.slane %v927, 1
        %v1601 = vrot.slane %v928, 1
        %v1602 = vsel %vm1518, %v1600, %v1601
        %v1659 = vmax.bf16 %v1406, %v1521
        %v1660 = vmax.bf16 %v1407, %v1520
        %v1661 = vmax.bf16 %v1408, %v1524
        %v1662 = vmax.bf16 %v1409, %v1523
        %v1663 = vmax.bf16 %v1410, %v1527
        %v1664 = vmax.bf16 %v1411, %v1526
        %v1665 = vmax.bf16 %v1412, %v1530
        %v1666 = vmax.bf16 %v1413, %v1529
        %v1667 = vmax.bf16 %v1414, %v1533
        %v1668 = vmax.bf16 %v1415, %v1532
        %v1669 = vmax.bf16 %v1416, %v1536
        %v1670 = vmax.bf16 %v1417, %v1535
        %v1671 = vmax.bf16 %v1418, %v1539
        %v1672 = vmax.bf16 %v1419, %v1538
        %v1673 = vmax.bf16 %v1420, %v1542
        %v1674 = vmax.bf16 %v1421, %v1541
        %v1675 = vmax.bf16 %v1422, %v1545
        %v1676 = vmax.bf16 %v1423, %v1544
        %v1677 = vmax.bf16 %v1424, %v1548
        %v1678 = vmax.bf16 %v1425, %v1547
        %v1679 = vmax.bf16 %v1426, %v1551
        %v1680 = vmax.bf16 %v1427, %v1550
        %v1681 = vmax.bf16 %v1428, %v1554
        %v1682 = vmax.bf16 %v1429, %v1553
        %v1683 = vmax.bf16 %v1430, %v1557
        %v1684 = vmax.bf16 %v1431, %v1556
        %v1685 = vmax.bf16 %v1432, %v1560
        %v1686 = vmax.bf16 %v1433, %v1559
        %v1687 = vmax.bf16 %v1434, %v1563
        %v1688 = vmax.bf16 %v1435, %v1562
        %v1689 = vmax.bf16 %v1436, %v1566
        %v1690 = vmax.bf16 %v1437, %v1565
        %v1691 = vmax.bf16 %v1438, %v1569
        %v1692 = vmax.bf16 %v1439, %v1568
        %v1693 = vmax.bf16 %v1440, %v1572
        %v1694 = vmax.bf16 %v1441, %v1571
        %v1695 = vmax.bf16 %v1442, %v1575
        %v1696 = vmax.bf16 %v1443, %v1574
        %v1697 = vmax.bf16 %v1444, %v1578
        %v1698 = vmax.bf16 %v1445, %v1577
        %v1699 = vmax.bf16 %v1446, %v1581
        %v1700 = vmax.bf16 %v1447, %v1580
        %v1701 = vmax.bf16 %v1448, %v1584
        %v1702 = vmax.bf16 %v1449, %v1583
        %v1703 = vmax.bf16 %v1450, %v1587
        %v1704 = vmax.bf16 %v1451, %v1586
        %v1705 = vmax.bf16 %v1452, %v1590
        %v1706 = vmax.bf16 %v1453, %v1589
        %v1707 = vmax.bf16 %v1454, %v1593
        %v1708 = vmax.bf16 %v1455, %v1592
        %v1709 = vmax.bf16 %v1456, %v1596
        %v1710 = vmax.bf16 %v1457, %v1595
        %v1711 = vmax.bf16 %v1458, %v1599
        %v1712 = vmax.bf16 %v1459, %v1598
        %v1713 = vmax.bf16 %v1460, %v1602
        %v1714 = vmax.bf16 %v1461, %v1601
        %vm1715 = vsmask.f32 6400
        %v1716 = vrot.slane %v931, 1
        %v1717 = vrot.slane %v933, 2
        %v1718 = vor.u32 %v1716, %v1717
        %v1719 = vrot.slane %v942, 1
        %v1720 = vrot.slane %v938, 2
        %v1721 = vor.u32 %v1719, %v1720
        %v1722 = vsel %vm1715, %v1718, %v1721
        %v1723 = vrot.slane %v946, 1
        %v1724 = vrot.slane %v948, 2
        %v1725 = vor.u32 %v1723, %v1724
        %v1726 = vrot.slane %v957, 1
        %v1727 = vrot.slane %v953, 2
        %v1728 = vor.u32 %v1726, %v1727
        %v1729 = vsel %vm1715, %v1725, %v1728
        %v1730 = vrot.slane %v961, 1
        %v1731 = vrot.slane %v963, 2
        %v1732 = vor.u32 %v1730, %v1731
        %v1733 = vrot.slane %v972, 1
        %v1734 = vrot.slane %v968, 2
        %v1735 = vor.u32 %v1733, %v1734
        %v1736 = vsel %vm1715, %v1732, %v1735
        %v1737 = vrot.slane %v976, 1
        %v1738 = vrot.slane %v978, 2
        %v1739 = vor.u32 %v1737, %v1738
        %v1740 = vrot.slane %v987, 1
        %v1741 = vrot.slane %v983, 2
        %v1742 = vor.u32 %v1740, %v1741
        %v1743 = vsel %vm1715, %v1739, %v1742
        %v1744 = vrot.slane %v991, 1
        %v1745 = vrot.slane %v993, 2
        %v1746 = vor.u32 %v1744, %v1745
        %v1747 = vrot.slane %v1002, 1
        %v1748 = vrot.slane %v998, 2
        %v1749 = vor.u32 %v1747, %v1748
        %v1750 = vsel %vm1715, %v1746, %v1749
        %v1751 = vrot.slane %v1006, 1
        %v1752 = vrot.slane %v1008, 2
        %v1753 = vor.u32 %v1751, %v1752
        %v1754 = vrot.slane %v1017, 1
        %v1755 = vrot.slane %v1013, 2
        %v1756 = vor.u32 %v1754, %v1755
        %v1757 = vsel %vm1715, %v1753, %v1756
        %v1758 = vrot.slane %v1021, 1
        %v1759 = vrot.slane %v1023, 2
        %v1760 = vor.u32 %v1758, %v1759
        %v1761 = vrot.slane %v1032, 1
        %v1762 = vrot.slane %v1028, 2
        %v1763 = vor.u32 %v1761, %v1762
        %v1764 = vsel %vm1715, %v1760, %v1763
        %v1765 = vrot.slane %v1036, 1
        %v1766 = vrot.slane %v1038, 2
        %v1767 = vor.u32 %v1765, %v1766
        %v1768 = vrot.slane %v1047, 1
        %v1769 = vrot.slane %v1043, 2
        %v1770 = vor.u32 %v1768, %v1769
        %v1771 = vsel %vm1715, %v1767, %v1770
        %v1772 = vrot.slane %v1051, 1
        %v1773 = vrot.slane %v1053, 2
        %v1774 = vor.u32 %v1772, %v1773
        %v1775 = vrot.slane %v1062, 1
        %v1776 = vrot.slane %v1058, 2
        %v1777 = vor.u32 %v1775, %v1776
        %v1778 = vsel %vm1715, %v1774, %v1777
        %v1779 = vrot.slane %v1066, 1
        %v1780 = vrot.slane %v1068, 2
        %v1781 = vor.u32 %v1779, %v1780
        %v1782 = vrot.slane %v1077, 1
        %v1783 = vrot.slane %v1073, 2
        %v1784 = vor.u32 %v1782, %v1783
        %v1785 = vsel %vm1715, %v1781, %v1784
        %v1786 = vrot.slane %v1081, 1
        %v1787 = vrot.slane %v1083, 2
        %v1788 = vor.u32 %v1786, %v1787
        %v1789 = vrot.slane %v1092, 1
        %v1790 = vrot.slane %v1088, 2
        %v1791 = vor.u32 %v1789, %v1790
        %v1792 = vsel %vm1715, %v1788, %v1791
        %v1793 = vrot.slane %v1096, 1
        %v1794 = vrot.slane %v1098, 2
        %v1795 = vor.u32 %v1793, %v1794
        %v1796 = vrot.slane %v1107, 1
        %v1797 = vrot.slane %v1103, 2
        %v1798 = vor.u32 %v1796, %v1797
        %v1799 = vsel %vm1715, %v1795, %v1798
        %v1800 = vrot.slane %v1111, 1
        %v1801 = vrot.slane %v1113, 2
        %v1802 = vor.u32 %v1800, %v1801
        %v1803 = vrot.slane %v1122, 1
        %v1804 = vrot.slane %v1118, 2
        %v1805 = vor.u32 %v1803, %v1804
        %v1806 = vsel %vm1715, %v1802, %v1805
        %v1807 = vrot.slane %v1126, 1
        %v1808 = vrot.slane %v1128, 2
        %v1809 = vor.u32 %v1807, %v1808
        %v1810 = vrot.slane %v1137, 1
        %v1811 = vrot.slane %v1133, 2
        %v1812 = vor.u32 %v1810, %v1811
        %v1813 = vsel %vm1715, %v1809, %v1812
        %v1814 = vrot.slane %v1141, 1
        %v1815 = vrot.slane %v1143, 2
        %v1816 = vor.u32 %v1814, %v1815
        %v1817 = vrot.slane %v1152, 1
        %v1818 = vrot.slane %v1148, 2
        %v1819 = vor.u32 %v1817, %v1818
        %v1820 = vsel %vm1715, %v1816, %v1819
        %v1821 = vrot.slane %v1156, 1
        %v1822 = vrot.slane %v1158, 2
        %v1823 = vor.u32 %v1821, %v1822
        %v1824 = vrot.slane %v1167, 1
        %v1825 = vrot.slane %v1163, 2
        %v1826 = vor.u32 %v1824, %v1825
        %v1827 = vsel %vm1715, %v1823, %v1826
        %v1828 = vrot.slane %v1171, 1
        %v1829 = vrot.slane %v1173, 2
        %v1830 = vor.u32 %v1828, %v1829
        %v1831 = vrot.slane %v1182, 1
        %v1832 = vrot.slane %v1178, 2
        %v1833 = vor.u32 %v1831, %v1832
        %v1834 = vsel %vm1715, %v1830, %v1833
        %v1835 = vrot.slane %v1186, 1
        %v1836 = vrot.slane %v1188, 2
        %v1837 = vor.u32 %v1835, %v1836
        %v1838 = vrot.slane %v1197, 1
        %v1839 = vrot.slane %v1193, 2
        %v1840 = vor.u32 %v1838, %v1839
        %v1841 = vsel %vm1715, %v1837, %v1840
        %v1842 = vrot.slane %v1201, 1
        %v1843 = vrot.slane %v1203, 2
        %v1844 = vor.u32 %v1842, %v1843
        %v1845 = vrot.slane %v1212, 1
        %v1846 = vrot.slane %v1208, 2
        %v1847 = vor.u32 %v1845, %v1846
        %v1848 = vsel %vm1715, %v1844, %v1847
        %v1849 = vrot.slane %v1216, 1
        %v1850 = vrot.slane %v1218, 2
        %v1851 = vor.u32 %v1849, %v1850
        %v1852 = vrot.slane %v1227, 1
        %v1853 = vrot.slane %v1223, 2
        %v1854 = vor.u32 %v1852, %v1853
        %v1855 = vsel %vm1715, %v1851, %v1854
        %v1856 = vrot.slane %v1231, 1
        %v1857 = vrot.slane %v1233, 2
        %v1858 = vor.u32 %v1856, %v1857
        %v1859 = vrot.slane %v1242, 1
        %v1860 = vrot.slane %v1238, 2
        %v1861 = vor.u32 %v1859, %v1860
        %v1862 = vsel %vm1715, %v1858, %v1861
        %v1863 = vrot.slane %v1246, 1
        %v1864 = vrot.slane %v1248, 2
        %v1865 = vor.u32 %v1863, %v1864
        %v1866 = vrot.slane %v1257, 1
        %v1867 = vrot.slane %v1253, 2
        %v1868 = vor.u32 %v1866, %v1867
        %v1869 = vsel %vm1715, %v1865, %v1868
        %v1870 = vrot.slane %v1261, 1
        %v1871 = vrot.slane %v1263, 2
        %v1872 = vor.u32 %v1870, %v1871
        %v1873 = vrot.slane %v1272, 1
        %v1874 = vrot.slane %v1268, 2
        %v1875 = vor.u32 %v1873, %v1874
        %v1876 = vsel %vm1715, %v1872, %v1875
        %v1877 = vrot.slane %v1276, 1
        %v1878 = vrot.slane %v1278, 2
        %v1879 = vor.u32 %v1877, %v1878
        %v1880 = vrot.slane %v1287, 1
        %v1881 = vrot.slane %v1283, 2
        %v1882 = vor.u32 %v1880, %v1881
        %v1883 = vsel %vm1715, %v1879, %v1882
        %v1884 = vrot.slane %v1291, 1
        %v1885 = vrot.slane %v1293, 2
        %v1886 = vor.u32 %v1884, %v1885
        %v1887 = vrot.slane %v1302, 1
        %v1888 = vrot.slane %v1298, 2
        %v1889 = vor.u32 %v1887, %v1888
        %v1890 = vsel %vm1715, %v1886, %v1889
        %v1891 = vrot.slane %v1306, 1
        %v1892 = vrot.slane %v1308, 2
        %v1893 = vor.u32 %v1891, %v1892
        %v1894 = vrot.slane %v1317, 1
        %v1895 = vrot.slane %v1313, 2
        %v1896 = vor.u32 %v1894, %v1895
        %v1897 = vsel %vm1715, %v1893, %v1896
        %v1898 = vrot.slane %v1321, 1
        %v1899 = vrot.slane %v1323, 2
        %v1900 = vor.u32 %v1898, %v1899
        %v1901 = vrot.slane %v1332, 1
        %v1902 = vrot.slane %v1328, 2
        %v1903 = vor.u32 %v1901, %v1902
        %v1904 = vsel %vm1715, %v1900, %v1903
        %v1905 = vrot.slane %v1336, 1
        %v1906 = vrot.slane %v1338, 2
        %v1907 = vor.u32 %v1905, %v1906
        %v1908 = vrot.slane %v1347, 1
        %v1909 = vrot.slane %v1343, 2
        %v1910 = vor.u32 %v1908, %v1909
        %v1911 = vsel %vm1715, %v1907, %v1910
        %v1968 = vmax.bf16 %v1659, %v1722
        %v1969 = vmax.bf16 %v1660, %v1721
        %v1970 = vmax.bf16 %v1661, %v1729
        %v1971 = vmax.bf16 %v1662, %v1728
        %v1972 = vmax.bf16 %v1663, %v1736
        %v1973 = vmax.bf16 %v1664, %v1735
        %v1974 = vmax.bf16 %v1665, %v1743
        %v1975 = vmax.bf16 %v1666, %v1742
        %v1976 = vmax.bf16 %v1667, %v1750
        %v1977 = vmax.bf16 %v1668, %v1749
        %v1978 = vmax.bf16 %v1669, %v1757
        %v1979 = vmax.bf16 %v1670, %v1756
        %v1980 = vmax.bf16 %v1671, %v1764
        %v1981 = vmax.bf16 %v1672, %v1763
        %v1982 = vmax.bf16 %v1673, %v1771
        %v1983 = vmax.bf16 %v1674, %v1770
        %v1984 = vmax.bf16 %v1675, %v1778
        %v1985 = vmax.bf16 %v1676, %v1777
        %v1986 = vmax.bf16 %v1677, %v1785
        %v1987 = vmax.bf16 %v1678, %v1784
        %v1988 = vmax.bf16 %v1679, %v1792
        %v1989 = vmax.bf16 %v1680, %v1791
        %v1990 = vmax.bf16 %v1681, %v1799
        %v1991 = vmax.bf16 %v1682, %v1798
        %v1992 = vmax.bf16 %v1683, %v1806
        %v1993 = vmax.bf16 %v1684, %v1805
        %v1994 = vmax.bf16 %v1685, %v1813
        %v1995 = vmax.bf16 %v1686, %v1812
        %v1996 = vmax.bf16 %v1687, %v1820
        %v1997 = vmax.bf16 %v1688, %v1819
        %v1998 = vmax.bf16 %v1689, %v1827
        %v1999 = vmax.bf16 %v1690, %v1826
        %v2000 = vmax.bf16 %v1691, %v1834
        %v2001 = vmax.bf16 %v1692, %v1833
        %v2002 = vmax.bf16 %v1693, %v1841
        %v2003 = vmax.bf16 %v1694, %v1840
        %v2004 = vmax.bf16 %v1695, %v1848
        %v2005 = vmax.bf16 %v1696, %v1847
        %v2006 = vmax.bf16 %v1697, %v1855
        %v2007 = vmax.bf16 %v1698, %v1854
        %v2008 = vmax.bf16 %v1699, %v1862
        %v2009 = vmax.bf16 %v1700, %v1861
        %v2010 = vmax.bf16 %v1701, %v1869
        %v2011 = vmax.bf16 %v1702, %v1868
        %v2012 = vmax.bf16 %v1703, %v1876
        %v2013 = vmax.bf16 %v1704, %v1875
        %v2014 = vmax.bf16 %v1705, %v1883
        %v2015 = vmax.bf16 %v1706, %v1882
        %v2016 = vmax.bf16 %v1707, %v1890
        %v2017 = vmax.bf16 %v1708, %v1889
        %v2018 = vmax.bf16 %v1709, %v1897
        %v2019 = vmax.bf16 %v1710, %v1896
        %v2020 = vmax.bf16 %v1711, %v1904
        %v2021 = vmax.bf16 %v1712, %v1903
        %v2022 = vmax.bf16 %v1713, %v1911
        %v2023 = vmax.bf16 %v1714, %v1910
        %vm2024 = vcmask 1045504
        %v2025 = vrot.slane %v873, 2
        %v2026 = vrot.slane %v874, 2
        %v2027 = vsel %vm2024, %v2025, %v2026
        %v2028 = vrot.slane %v875, 2
        %v2029 = vrot.slane %v876, 2
        %v2030 = vsel %vm2024, %v2028, %v2029
        %v2031 = vrot.slane %v877, 2
        %v2032 = vrot.slane %v878, 2
        %v2033 = vsel %vm2024, %v2031, %v2032
        %v2034 = vrot.slane %v879, 2
        %v2035 = vrot.slane %v880, 2
        %v2036 = vsel %vm2024, %v2034, %v2035
        %v2037 = vrot.slane %v881, 2
        %v2038 = vrot.slane %v882, 2
        %v2039 = vsel %vm2024, %v2037, %v2038
        %v2040 = vrot.slane %v883, 2
        %v2041 = vrot.slane %v884, 2
        %v2042 = vsel %vm2024, %v2040, %v2041
        %v2043 = vrot.slane %v885, 2
        %v2044 = vrot.slane %v886, 2
        %v2045 = vsel %vm2024, %v2043, %v2044
        %v2046 = vrot.slane %v887, 2
        %v2047 = vrot.slane %v888, 2
        %v2048 = vsel %vm2024, %v2046, %v2047
        %v2049 = vrot.slane %v889, 2
        %v2050 = vrot.slane %v890, 2
        %v2051 = vsel %vm2024, %v2049, %v2050
        %v2052 = vrot.slane %v891, 2
        %v2053 = vrot.slane %v892, 2
        %v2054 = vsel %vm2024, %v2052, %v2053
        %v2055 = vrot.slane %v893, 2
        %v2056 = vrot.slane %v894, 2
        %v2057 = vsel %vm2024, %v2055, %v2056
        %v2058 = vrot.slane %v895, 2
        %v2059 = vrot.slane %v896, 2
        %v2060 = vsel %vm2024, %v2058, %v2059
        %v2061 = vrot.slane %v897, 2
        %v2062 = vrot.slane %v898, 2
        %v2063 = vsel %vm2024, %v2061, %v2062
        %v2064 = vrot.slane %v899, 2
        %v2065 = vrot.slane %v900, 2
        %v2066 = vsel %vm2024, %v2064, %v2065
        %v2067 = vrot.slane %v901, 2
        %v2068 = vrot.slane %v902, 2
        %v2069 = vsel %vm2024, %v2067, %v2068
        %v2070 = vrot.slane %v903, 2
        %v2071 = vrot.slane %v904, 2
        %v2072 = vsel %vm2024, %v2070, %v2071
        %v2073 = vrot.slane %v905, 2
        %v2074 = vrot.slane %v906, 2
        %v2075 = vsel %vm2024, %v2073, %v2074
        %v2076 = vrot.slane %v907, 2
        %v2077 = vrot.slane %v908, 2
        %v2078 = vsel %vm2024, %v2076, %v2077
        %v2079 = vrot.slane %v909, 2
        %v2080 = vrot.slane %v910, 2
        %v2081 = vsel %vm2024, %v2079, %v2080
        %v2082 = vrot.slane %v911, 2
        %v2083 = vrot.slane %v912, 2
        %v2084 = vsel %vm2024, %v2082, %v2083
        %v2085 = vrot.slane %v913, 2
        %v2086 = vrot.slane %v914, 2
        %v2087 = vsel %vm2024, %v2085, %v2086
        %v2088 = vrot.slane %v915, 2
        %v2089 = vrot.slane %v916, 2
        %v2090 = vsel %vm2024, %v2088, %v2089
        %v2091 = vrot.slane %v917, 2
        %v2092 = vrot.slane %v918, 2
        %v2093 = vsel %vm2024, %v2091, %v2092
        %v2094 = vrot.slane %v919, 2
        %v2095 = vrot.slane %v920, 2
        %v2096 = vsel %vm2024, %v2094, %v2095
        %v2097 = vrot.slane %v921, 2
        %v2098 = vrot.slane %v922, 2
        %v2099 = vsel %vm2024, %v2097, %v2098
        %v2100 = vrot.slane %v923, 2
        %v2101 = vrot.slane %v924, 2
        %v2102 = vsel %vm2024, %v2100, %v2101
        %v2103 = vrot.slane %v925, 2
        %v2104 = vrot.slane %v926, 2
        %v2105 = vsel %vm2024, %v2103, %v2104
        %v2106 = vrot.slane %v927, 2
        %v2107 = vrot.slane %v928, 2
        %v2108 = vsel %vm2024, %v2106, %v2107
        %v2165 = vmax.bf16 %v1968, %v2027
        %v2166 = vmax.bf16 %v1969, %v2026
        %v2167 = vmax.bf16 %v1970, %v2030
        %v2168 = vmax.bf16 %v1971, %v2029
        %v2169 = vmax.bf16 %v1972, %v2033
        %v2170 = vmax.bf16 %v1973, %v2032
        %v2171 = vmax.bf16 %v1974, %v2036
        %v2172 = vmax.bf16 %v1975, %v2035
        %v2173 = vmax.bf16 %v1976, %v2039
        %v2174 = vmax.bf16 %v1977, %v2038
        %v2175 = vmax.bf16 %v1978, %v2042
        %v2176 = vmax.bf16 %v1979, %v2041
        %v2177 = vmax.bf16 %v1980, %v2045
        %v2178 = vmax.bf16 %v1981, %v2044
        %v2179 = vmax.bf16 %v1982, %v2048
        %v2180 = vmax.bf16 %v1983, %v2047
        %v2181 = vmax.bf16 %v1984, %v2051
        %v2182 = vmax.bf16 %v1985, %v2050
        %v2183 = vmax.bf16 %v1986, %v2054
        %v2184 = vmax.bf16 %v1987, %v2053
        %v2185 = vmax.bf16 %v1988, %v2057
        %v2186 = vmax.bf16 %v1989, %v2056
        %v2187 = vmax.bf16 %v1990, %v2060
        %v2188 = vmax.bf16 %v1991, %v2059
        %v2189 = vmax.bf16 %v1992, %v2063
        %v2190 = vmax.bf16 %v1993, %v2062
        %v2191 = vmax.bf16 %v1994, %v2066
        %v2192 = vmax.bf16 %v1995, %v2065
        %v2193 = vmax.bf16 %v1996, %v2069
        %v2194 = vmax.bf16 %v1997, %v2068
        %v2195 = vmax.bf16 %v1998, %v2072
        %v2196 = vmax.bf16 %v1999, %v2071
        %v2197 = vmax.bf16 %v2000, %v2075
        %v2198 = vmax.bf16 %v2001, %v2074
        %v2199 = vmax.bf16 %v2002, %v2078
        %v2200 = vmax.bf16 %v2003, %v2077
        %v2201 = vmax.bf16 %v2004, %v2081
        %v2202 = vmax.bf16 %v2005, %v2080
        %v2203 = vmax.bf16 %v2006, %v2084
        %v2204 = vmax.bf16 %v2007, %v2083
        %v2205 = vmax.bf16 %v2008, %v2087
        %v2206 = vmax.bf16 %v2009, %v2086
        %v2207 = vmax.bf16 %v2010, %v2090
        %v2208 = vmax.bf16 %v2011, %v2089
        %v2209 = vmax.bf16 %v2012, %v2093
        %v2210 = vmax.bf16 %v2013, %v2092
        %v2211 = vmax.bf16 %v2014, %v2096
        %v2212 = vmax.bf16 %v2015, %v2095
        %v2213 = vmax.bf16 %v2016, %v2099
        %v2214 = vmax.bf16 %v2017, %v2098
        %v2215 = vmax.bf16 %v2018, %v2102
        %v2216 = vmax.bf16 %v2019, %v2101
        %v2217 = vmax.bf16 %v2020, %v2105
        %v2218 = vmax.bf16 %v2021, %v2104
        %v2219 = vmax.bf16 %v2022, %v2108
        %v2220 = vmax.bf16 %v2023, %v2107
        %v2277 = vrot.slane %v2165, 2
        %v2278 = vrot.slane %v2166, 2
        %v2279 = vsel %vm2024, %v2277, %v2278
        %v2280 = vrot.slane %v2167, 2
        %v2281 = vrot.slane %v2168, 2
        %v2282 = vsel %vm2024, %v2280, %v2281
        %v2283 = vrot.slane %v2169, 2
        %v2284 = vrot.slane %v2170, 2
        %v2285 = vsel %vm2024, %v2283, %v2284
        %v2286 = vrot.slane %v2171, 2
        %v2287 = vrot.slane %v2172, 2
        %v2288 = vsel %vm2024, %v2286, %v2287
        %v2289 = vrot.slane %v2173, 2
        %v2290 = vrot.slane %v2174, 2
        %v2291 = vsel %vm2024, %v2289, %v2290
        %v2292 = vrot.slane %v2175, 2
        %v2293 = vrot.slane %v2176, 2
        %v2294 = vsel %vm2024, %v2292, %v2293
        %v2295 = vrot.slane %v2177, 2
        %v2296 = vrot.slane %v2178, 2
        %v2297 = vsel %vm2024, %v2295, %v2296
        %v2298 = vrot.slane %v2179, 2
        %v2299 = vrot.slane %v2180, 2
        %v2300 = vsel %vm2024, %v2298, %v2299
        %v2301 = vrot.slane %v2181, 2
        %v2302 = vrot.slane %v2182, 2
        %v2303 = vsel %vm2024, %v2301, %v2302
        %v2304 = vrot.slane %v2183, 2
        %v2305 = vrot.slane %v2184, 2
        %v2306 = vsel %vm2024, %v2304, %v2305
        %v2307 = vrot.slane %v2185, 2
        %v2308 = vrot.slane %v2186, 2
        %v2309 = vsel %vm2024, %v2307, %v2308
        %v2310 = vrot.slane %v2187, 2
        %v2311 = vrot.slane %v2188, 2
        %v2312 = vsel %vm2024, %v2310, %v2311
        %v2313 = vrot.slane %v2189, 2
        %v2314 = vrot.slane %v2190, 2
        %v2315 = vsel %vm2024, %v2313, %v2314
        %v2316 = vrot.slane %v2191, 2
        %v2317 = vrot.slane %v2192, 2
        %v2318 = vsel %vm2024, %v2316, %v2317
        %v2319 = vrot.slane %v2193, 2
        %v2320 = vrot.slane %v2194, 2
        %v2321 = vsel %vm2024, %v2319, %v2320
        %v2322 = vrot.slane %v2195, 2
        %v2323 = vrot.slane %v2196, 2
        %v2324 = vsel %vm2024, %v2322, %v2323
        %v2325 = vrot.slane %v2197, 2
        %v2326 = vrot.slane %v2198, 2
        %v2327 = vsel %vm2024, %v2325, %v2326
        %v2328 = vrot.slane %v2199, 2
        %v2329 = vrot.slane %v2200, 2
        %v2330 = vsel %vm2024, %v2328, %v2329
        %v2331 = vrot.slane %v2201, 2
        %v2332 = vrot.slane %v2202, 2
        %v2333 = vsel %vm2024, %v2331, %v2332
        %v2334 = vrot.slane %v2203, 2
        %v2335 = vrot.slane %v2204, 2
        %v2336 = vsel %vm2024, %v2334, %v2335
        %v2337 = vrot.slane %v2205, 2
        %v2338 = vrot.slane %v2206, 2
        %v2339 = vsel %vm2024, %v2337, %v2338
        %v2340 = vrot.slane %v2207, 2
        %v2341 = vrot.slane %v2208, 2
        %v2342 = vsel %vm2024, %v2340, %v2341
        %v2343 = vrot.slane %v2209, 2
        %v2344 = vrot.slane %v2210, 2
        %v2345 = vsel %vm2024, %v2343, %v2344
        %v2346 = vrot.slane %v2211, 2
        %v2347 = vrot.slane %v2212, 2
        %v2348 = vsel %vm2024, %v2346, %v2347
        %v2349 = vrot.slane %v2213, 2
        %v2350 = vrot.slane %v2214, 2
        %v2351 = vsel %vm2024, %v2349, %v2350
        %v2352 = vrot.slane %v2215, 2
        %v2353 = vrot.slane %v2216, 2
        %v2354 = vsel %vm2024, %v2352, %v2353
        %v2355 = vrot.slane %v2217, 2
        %v2356 = vrot.slane %v2218, 2
        %v2357 = vsel %vm2024, %v2355, %v2356
        %v2358 = vrot.slane %v2219, 2
        %v2359 = vrot.slane %v2220, 2
        %v2360 = vsel %vm2024, %v2358, %v2359
        %v2417 = vmax.bf16 %v2165, %v2279
        %v2418 = vmax.bf16 %v2166, %v2278
        %v2419 = vmax.bf16 %v2167, %v2282
        %v2420 = vmax.bf16 %v2168, %v2281
        %v2421 = vmax.bf16 %v2169, %v2285
        %v2422 = vmax.bf16 %v2170, %v2284
        %v2423 = vmax.bf16 %v2171, %v2288
        %v2424 = vmax.bf16 %v2172, %v2287
        %v2425 = vmax.bf16 %v2173, %v2291
        %v2426 = vmax.bf16 %v2174, %v2290
        %v2427 = vmax.bf16 %v2175, %v2294
        %v2428 = vmax.bf16 %v2176, %v2293
        %v2429 = vmax.bf16 %v2177, %v2297
        %v2430 = vmax.bf16 %v2178, %v2296
        %v2431 = vmax.bf16 %v2179, %v2300
        %v2432 = vmax.bf16 %v2180, %v2299
        %v2433 = vmax.bf16 %v2181, %v2303
        %v2434 = vmax.bf16 %v2182, %v2302
        %v2435 = vmax.bf16 %v2183, %v2306
        %v2436 = vmax.bf16 %v2184, %v2305
        %v2437 = vmax.bf16 %v2185, %v2309
        %v2438 = vmax.bf16 %v2186, %v2308
        %v2439 = vmax.bf16 %v2187, %v2312
        %v2440 = vmax.bf16 %v2188, %v2311
        %v2441 = vmax.bf16 %v2189, %v2315
        %v2442 = vmax.bf16 %v2190, %v2314
        %v2443 = vmax.bf16 %v2191, %v2318
        %v2444 = vmax.bf16 %v2192, %v2317
        %v2445 = vmax.bf16 %v2193, %v2321
        %v2446 = vmax.bf16 %v2194, %v2320
        %v2447 = vmax.bf16 %v2195, %v2324
        %v2448 = vmax.bf16 %v2196, %v2323
        %v2449 = vmax.bf16 %v2197, %v2327
        %v2450 = vmax.bf16 %v2198, %v2326
        %v2451 = vmax.bf16 %v2199, %v2330
        %v2452 = vmax.bf16 %v2200, %v2329
        %v2453 = vmax.bf16 %v2201, %v2333
        %v2454 = vmax.bf16 %v2202, %v2332
        %v2455 = vmax.bf16 %v2203, %v2336
        %v2456 = vmax.bf16 %v2204, %v2335
        %v2457 = vmax.bf16 %v2205, %v2339
        %v2458 = vmax.bf16 %v2206, %v2338
        %v2459 = vmax.bf16 %v2207, %v2342
        %v2460 = vmax.bf16 %v2208, %v2341
        %v2461 = vmax.bf16 %v2209, %v2345
        %v2462 = vmax.bf16 %v2210, %v2344
        %v2463 = vmax.bf16 %v2211, %v2348
        %v2464 = vmax.bf16 %v2212, %v2347
        %v2465 = vmax.bf16 %v2213, %v2351
        %v2466 = vmax.bf16 %v2214, %v2350
        %v2467 = vmax.bf16 %v2215, %v2354
        %v2468 = vmax.bf16 %v2216, %v2353
        %v2469 = vmax.bf16 %v2217, %v2357
        %v2470 = vmax.bf16 %v2218, %v2356
        %v2471 = vmax.bf16 %v2219, %v2360
        %v2472 = vmax.bf16 %v2220, %v2359
        %v2529 = vrot.slane %v2417, 2
        %v2530 = vrot.slane %v2418, 2
        %v2531 = vsel %vm2024, %v2529, %v2530
        %v2532 = vrot.slane %v2419, 2
        %v2533 = vrot.slane %v2420, 2
        %v2534 = vsel %vm2024, %v2532, %v2533
        %v2535 = vrot.slane %v2421, 2
        %v2536 = vrot.slane %v2422, 2
        %v2537 = vsel %vm2024, %v2535, %v2536
        %v2538 = vrot.slane %v2423, 2
        %v2539 = vrot.slane %v2424, 2
        %v2540 = vsel %vm2024, %v2538, %v2539
        %v2541 = vrot.slane %v2425, 2
        %v2542 = vrot.slane %v2426, 2
        %v2543 = vsel %vm2024, %v2541, %v2542
        %v2544 = vrot.slane %v2427, 2
        %v2545 = vrot.slane %v2428, 2
        %v2546 = vsel %vm2024, %v2544, %v2545
        %v2547 = vrot.slane %v2429, 2
        %v2548 = vrot.slane %v2430, 2
        %v2549 = vsel %vm2024, %v2547, %v2548
        %v2550 = vrot.slane %v2431, 2
        %v2551 = vrot.slane %v2432, 2
        %v2552 = vsel %vm2024, %v2550, %v2551
        %v2553 = vrot.slane %v2433, 2
        %v2554 = vrot.slane %v2434, 2
        %v2555 = vsel %vm2024, %v2553, %v2554
        %v2556 = vrot.slane %v2435, 2
        %v2557 = vrot.slane %v2436, 2
        %v2558 = vsel %vm2024, %v2556, %v2557
        %v2559 = vrot.slane %v2437, 2
        %v2560 = vrot.slane %v2438, 2
        %v2561 = vsel %vm2024, %v2559, %v2560
        %v2562 = vrot.slane %v2439, 2
        %v2563 = vrot.slane %v2440, 2
        %v2564 = vsel %vm2024, %v2562, %v2563
        %v2565 = vrot.slane %v2441, 2
        %v2566 = vrot.slane %v2442, 2
        %v2567 = vsel %vm2024, %v2565, %v2566
        %v2568 = vrot.slane %v2443, 2
        %v2569 = vrot.slane %v2444, 2
        %v2570 = vsel %vm2024, %v2568, %v2569
        %v2571 = vrot.slane %v2445, 2
        %v2572 = vrot.slane %v2446, 2
        %v2573 = vsel %vm2024, %v2571, %v2572
        %v2574 = vrot.slane %v2447, 2
        %v2575 = vrot.slane %v2448, 2
        %v2576 = vsel %vm2024, %v2574, %v2575
        %v2577 = vrot.slane %v2449, 2
        %v2578 = vrot.slane %v2450, 2
        %v2579 = vsel %vm2024, %v2577, %v2578
        %v2580 = vrot.slane %v2451, 2
        %v2581 = vrot.slane %v2452, 2
        %v2582 = vsel %vm2024, %v2580, %v2581
        %v2583 = vrot.slane %v2453, 2
        %v2584 = vrot.slane %v2454, 2
        %v2585 = vsel %vm2024, %v2583, %v2584
        %v2586 = vrot.slane %v2455, 2
        %v2587 = vrot.slane %v2456, 2
        %v2588 = vsel %vm2024, %v2586, %v2587
        %v2589 = vrot.slane %v2457, 2
        %v2590 = vrot.slane %v2458, 2
        %v2591 = vsel %vm2024, %v2589, %v2590
        %v2592 = vrot.slane %v2459, 2
        %v2593 = vrot.slane %v2460, 2
        %v2594 = vsel %vm2024, %v2592, %v2593
        %v2595 = vrot.slane %v2461, 2
        %v2596 = vrot.slane %v2462, 2
        %v2597 = vsel %vm2024, %v2595, %v2596
        %v2598 = vrot.slane %v2463, 2
        %v2599 = vrot.slane %v2464, 2
        %v2600 = vsel %vm2024, %v2598, %v2599
        %v2601 = vrot.slane %v2465, 2
        %v2602 = vrot.slane %v2466, 2
        %v2603 = vsel %vm2024, %v2601, %v2602
        %v2604 = vrot.slane %v2467, 2
        %v2605 = vrot.slane %v2468, 2
        %v2606 = vsel %vm2024, %v2604, %v2605
        %v2607 = vrot.slane %v2469, 2
        %v2608 = vrot.slane %v2470, 2
        %v2609 = vsel %vm2024, %v2607, %v2608
        %v2610 = vrot.slane %v2471, 2
        %v2611 = vrot.slane %v2472, 2
        %v2612 = vsel %vm2024, %v2610, %v2611
        %v2669 = vmax.bf16 %v2417, %v2531
        %v2670 = vmax.bf16 %v2418, %v2530
        %v2671 = vmax.bf16 %v2419, %v2534
        %v2672 = vmax.bf16 %v2420, %v2533
        %v2673 = vmax.bf16 %v2421, %v2537
        %v2674 = vmax.bf16 %v2422, %v2536
        %v2675 = vmax.bf16 %v2423, %v2540
        %v2676 = vmax.bf16 %v2424, %v2539
        %v2677 = vmax.bf16 %v2425, %v2543
        %v2678 = vmax.bf16 %v2426, %v2542
        %v2679 = vmax.bf16 %v2427, %v2546
        %v2680 = vmax.bf16 %v2428, %v2545
        %v2681 = vmax.bf16 %v2429, %v2549
        %v2682 = vmax.bf16 %v2430, %v2548
        %v2683 = vmax.bf16 %v2431, %v2552
        %v2684 = vmax.bf16 %v2432, %v2551
        %v2685 = vmax.bf16 %v2433, %v2555
        %v2686 = vmax.bf16 %v2434, %v2554
        %v2687 = vmax.bf16 %v2435, %v2558
        %v2688 = vmax.bf16 %v2436, %v2557
        %v2689 = vmax.bf16 %v2437, %v2561
        %v2690 = vmax.bf16 %v2438, %v2560
        %v2691 = vmax.bf16 %v2439, %v2564
        %v2692 = vmax.bf16 %v2440, %v2563
        %v2693 = vmax.bf16 %v2441, %v2567
        %v2694 = vmax.bf16 %v2442, %v2566
        %v2695 = vmax.bf16 %v2443, %v2570
        %v2696 = vmax.bf16 %v2444, %v2569
        %v2697 = vmax.bf16 %v2445, %v2573
        %v2698 = vmax.bf16 %v2446, %v2572
        %v2699 = vmax.bf16 %v2447, %v2576
        %v2700 = vmax.bf16 %v2448, %v2575
        %v2701 = vmax.bf16 %v2449, %v2579
        %v2702 = vmax.bf16 %v2450, %v2578
        %v2703 = vmax.bf16 %v2451, %v2582
        %v2704 = vmax.bf16 %v2452, %v2581
        %v2705 = vmax.bf16 %v2453, %v2585
        %v2706 = vmax.bf16 %v2454, %v2584
        %v2707 = vmax.bf16 %v2455, %v2588
        %v2708 = vmax.bf16 %v2456, %v2587
        %v2709 = vmax.bf16 %v2457, %v2591
        %v2710 = vmax.bf16 %v2458, %v2590
        %v2711 = vmax.bf16 %v2459, %v2594
        %v2712 = vmax.bf16 %v2460, %v2593
        %v2713 = vmax.bf16 %v2461, %v2597
        %v2714 = vmax.bf16 %v2462, %v2596
        %v2715 = vmax.bf16 %v2463, %v2600
        %v2716 = vmax.bf16 %v2464, %v2599
        %v2717 = vmax.bf16 %v2465, %v2603
        %v2718 = vmax.bf16 %v2466, %v2602
        %v2719 = vmax.bf16 %v2467, %v2606
        %v2720 = vmax.bf16 %v2468, %v2605
        %v2721 = vmax.bf16 %v2469, %v2609
        %v2722 = vmax.bf16 %v2470, %v2608
        %v2723 = vmax.bf16 %v2471, %v2612
        %v2724 = vmax.bf16 %v2472, %v2611
        %v2725 = vmax.bf16 %v2173, %v2175
        %v2726 = vmax.bf16 %v2174, %v2176
        %v2727 = vmax.bf16 %v2175, %v2177
        %v2728 = vmax.bf16 %v2176, %v2178
        %v2729 = vmax.bf16 %v2177, %v2179
        %v2730 = vmax.bf16 %v2178, %v2180
        %v2731 = vmax.bf16 %v2179, %v2181
        %v2732 = vmax.bf16 %v2180, %v2182
        %v2733 = vmax.bf16 %v2181, %v2183
        %v2734 = vmax.bf16 %v2182, %v2184
        %v2735 = vmax.bf16 %v2183, %v2185
        %v2736 = vmax.bf16 %v2184, %v2186
        %v2737 = vmax.bf16 %v2185, %v2187
        %v2738 = vmax.bf16 %v2186, %v2188
        %v2739 = vmax.bf16 %v2187, %v2189
        %v2740 = vmax.bf16 %v2188, %v2190
        %v2741 = vmax.bf16 %v2189, %v2191
        %v2742 = vmax.bf16 %v2190, %v2192
        %v2743 = vmax.bf16 %v2191, %v2193
        %v2744 = vmax.bf16 %v2192, %v2194
        %v2745 = vmax.bf16 %v2193, %v2195
        %v2746 = vmax.bf16 %v2194, %v2196
        %v2747 = vmax.bf16 %v2195, %v2197
        %v2748 = vmax.bf16 %v2196, %v2198
        %v2749 = vmax.bf16 %v2197, %v2199
        %v2750 = vmax.bf16 %v2198, %v2200
        %v2751 = vmax.bf16 %v2199, %v2201
        %v2752 = vmax.bf16 %v2200, %v2202
        %v2753 = vmax.bf16 %v2201, %v2203
        %v2754 = vmax.bf16 %v2202, %v2204
        %v2755 = vmax.bf16 %v2203, %v2205
        %v2756 = vmax.bf16 %v2204, %v2206
        %v2757 = vmax.bf16 %v2725, %v2177
        %v2758 = vmax.bf16 %v2726, %v2178
        %v2759 = vmax.bf16 %v2727, %v2179
        %v2760 = vmax.bf16 %v2728, %v2180
        %v2761 = vmax.bf16 %v2729, %v2181
        %v2762 = vmax.bf16 %v2730, %v2182
        %v2763 = vmax.bf16 %v2731, %v2183
        %v2764 = vmax.bf16 %v2732, %v2184
        %v2765 = vmax.bf16 %v2733, %v2185
        %v2766 = vmax.bf16 %v2734, %v2186
        %v2767 = vmax.bf16 %v2735, %v2187
        %v2768 = vmax.bf16 %v2736, %v2188
        %v2769 = vmax.bf16 %v2737, %v2189
        %v2770 = vmax.bf16 %v2738, %v2190
        %v2771 = vmax.bf16 %v2739, %v2191
        %v2772 = vmax.bf16 %v2740, %v2192
        %v2773 = vmax.bf16 %v2741, %v2193
        %v2774 = vmax.bf16 %v2742, %v2194
        %v2775 = vmax.bf16 %v2743, %v2195
        %v2776 = vmax.bf16 %v2744, %v2196
        %v2777 = vmax.bf16 %v2745, %v2197
        %v2778 = vmax.bf16 %v2746, %v2198
        %v2779 = vmax.bf16 %v2747, %v2199
        %v2780 = vmax.bf16 %v2748, %v2200
        %v2781 = vmax.bf16 %v2749, %v2201
        %v2782 = vmax.bf16 %v2750, %v2202
        %v2783 = vmax.bf16 %v2751, %v2203
        %v2784 = vmax.bf16 %v2752, %v2204
        %v2785 = vmax.bf16 %v2753, %v2205
        %v2786 = vmax.bf16 %v2754, %v2206
        %v2787 = vmax.bf16 %v2755, %v2207
        %v2788 = vmax.bf16 %v2756, %v2208
        %v2789 = vmax.bf16 %v2757, %v2179
        %v2790 = vmax.bf16 %v2758, %v2180
        %v2791 = vmax.bf16 %v2759, %v2181
        %v2792 = vmax.bf16 %v2760, %v2182
        %v2793 = vmax.bf16 %v2761, %v2183
        %v2794 = vmax.bf16 %v2762, %v2184
        %v2795 = vmax.bf16 %v2763, %v2185
        %v2796 = vmax.bf16 %v2764, %v2186
        %v2797 = vmax.bf16 %v2765, %v2187
        %v2798 = vmax.bf16 %v2766, %v2188
        %v2799 = vmax.bf16 %v2767, %v2189
        %v2800 = vmax.bf16 %v2768, %v2190
        %v2801 = vmax.bf16 %v2769, %v2191
        %v2802 = vmax.bf16 %v2770, %v2192
        %v2803 = vmax.bf16 %v2771, %v2193
        %v2804 = vmax.bf16 %v2772, %v2194
        %v2805 = vmax.bf16 %v2773, %v2195
        %v2806 = vmax.bf16 %v2774, %v2196
        %v2807 = vmax.bf16 %v2775, %v2197
        %v2808 = vmax.bf16 %v2776, %v2198
        %v2809 = vmax.bf16 %v2777, %v2199
        %v2810 = vmax.bf16 %v2778, %v2200
        %v2811 = vmax.bf16 %v2779, %v2201
        %v2812 = vmax.bf16 %v2780, %v2202
        %v2813 = vmax.bf16 %v2781, %v2203
        %v2814 = vmax.bf16 %v2782, %v2204
        %v2815 = vmax.bf16 %v2783, %v2205
        %v2816 = vmax.bf16 %v2784, %v2206
        %v2817 = vmax.bf16 %v2785, %v2207
        %v2818 = vmax.bf16 %v2786, %v2208
        %v2819 = vmax.bf16 %v2787, %v2209
        %v2820 = vmax.bf16 %v2788, %v2210
        %v2821 = vmax.bf16 %v2789, %v2181
        %v2822 = vmax.bf16 %v2790, %v2182
        %v2823 = vmax.bf16 %v2791, %v2183
        %v2824 = vmax.bf16 %v2792, %v2184
        %v2825 = vmax.bf16 %v2793, %v2185
        %v2826 = vmax.bf16 %v2794, %v2186
        %v2827 = vmax.bf16 %v2795, %v2187
        %v2828 = vmax.bf16 %v2796, %v2188
        %v2829 = vmax.bf16 %v2797, %v2189
        %v2830 = vmax.bf16 %v2798, %v2190
        %v2831 = vmax.bf16 %v2799, %v2191
        %v2832 = vmax.bf16 %v2800, %v2192
        %v2833 = vmax.bf16 %v2801, %v2193
        %v2834 = vmax.bf16 %v2802, %v2194
        %v2835 = vmax.bf16 %v2803, %v2195
        %v2836 = vmax.bf16 %v2804, %v2196
        %v2837 = vmax.bf16 %v2805, %v2197
        %v2838 = vmax.bf16 %v2806, %v2198
        %v2839 = vmax.bf16 %v2807, %v2199
        %v2840 = vmax.bf16 %v2808, %v2200
        %v2841 = vmax.bf16 %v2809, %v2201
        %v2842 = vmax.bf16 %v2810, %v2202
        %v2843 = vmax.bf16 %v2811, %v2203
        %v2844 = vmax.bf16 %v2812, %v2204
        %v2845 = vmax.bf16 %v2813, %v2205
        %v2846 = vmax.bf16 %v2814, %v2206
        %v2847 = vmax.bf16 %v2815, %v2207
        %v2848 = vmax.bf16 %v2816, %v2208
        %v2849 = vmax.bf16 %v2817, %v2209
        %v2850 = vmax.bf16 %v2818, %v2210
        %v2851 = vmax.bf16 %v2819, %v2211
        %v2852 = vmax.bf16 %v2820, %v2212
        %v2853 = vmax.bf16 %v2421, %v2423
        %v2854 = vmax.bf16 %v2422, %v2424
        %v2855 = vmax.bf16 %v2423, %v2425
        %v2856 = vmax.bf16 %v2424, %v2426
        %v2857 = vmax.bf16 %v2425, %v2427
        %v2858 = vmax.bf16 %v2426, %v2428
        %v2859 = vmax.bf16 %v2427, %v2429
        %v2860 = vmax.bf16 %v2428, %v2430
        %v2861 = vmax.bf16 %v2429, %v2431
        %v2862 = vmax.bf16 %v2430, %v2432
        %v2863 = vmax.bf16 %v2431, %v2433
        %v2864 = vmax.bf16 %v2432, %v2434
        %v2865 = vmax.bf16 %v2433, %v2435
        %v2866 = vmax.bf16 %v2434, %v2436
        %v2867 = vmax.bf16 %v2435, %v2437
        %v2868 = vmax.bf16 %v2436, %v2438
        %v2869 = vmax.bf16 %v2437, %v2439
        %v2870 = vmax.bf16 %v2438, %v2440
        %v2871 = vmax.bf16 %v2439, %v2441
        %v2872 = vmax.bf16 %v2440, %v2442
        %v2873 = vmax.bf16 %v2441, %v2443
        %v2874 = vmax.bf16 %v2442, %v2444
        %v2875 = vmax.bf16 %v2443, %v2445
        %v2876 = vmax.bf16 %v2444, %v2446
        %v2877 = vmax.bf16 %v2445, %v2447
        %v2878 = vmax.bf16 %v2446, %v2448
        %v2879 = vmax.bf16 %v2447, %v2449
        %v2880 = vmax.bf16 %v2448, %v2450
        %v2881 = vmax.bf16 %v2449, %v2451
        %v2882 = vmax.bf16 %v2450, %v2452
        %v2883 = vmax.bf16 %v2451, %v2453
        %v2884 = vmax.bf16 %v2452, %v2454
        %v2885 = vmax.bf16 %v2453, %v2455
        %v2886 = vmax.bf16 %v2454, %v2456
        %v2887 = vmax.bf16 %v2455, %v2457
        %v2888 = vmax.bf16 %v2456, %v2458
        %v2889 = vmax.bf16 %v2457, %v2459
        %v2890 = vmax.bf16 %v2458, %v2460
        %v2891 = vmax.bf16 %v2459, %v2461
        %v2892 = vmax.bf16 %v2460, %v2462
        %v2893 = vmax.bf16 %v2853, %v2425
        %v2894 = vmax.bf16 %v2854, %v2426
        %v2895 = vmax.bf16 %v2855, %v2427
        %v2896 = vmax.bf16 %v2856, %v2428
        %v2897 = vmax.bf16 %v2857, %v2429
        %v2898 = vmax.bf16 %v2858, %v2430
        %v2899 = vmax.bf16 %v2859, %v2431
        %v2900 = vmax.bf16 %v2860, %v2432
        %v2901 = vmax.bf16 %v2861, %v2433
        %v2902 = vmax.bf16 %v2862, %v2434
        %v2903 = vmax.bf16 %v2863, %v2435
        %v2904 = vmax.bf16 %v2864, %v2436
        %v2905 = vmax.bf16 %v2865, %v2437
        %v2906 = vmax.bf16 %v2866, %v2438
        %v2907 = vmax.bf16 %v2867, %v2439
        %v2908 = vmax.bf16 %v2868, %v2440
        %v2909 = vmax.bf16 %v2869, %v2441
        %v2910 = vmax.bf16 %v2870, %v2442
        %v2911 = vmax.bf16 %v2871, %v2443
        %v2912 = vmax.bf16 %v2872, %v2444
        %v2913 = vmax.bf16 %v2873, %v2445
        %v2914 = vmax.bf16 %v2874, %v2446
        %v2915 = vmax.bf16 %v2875, %v2447
        %v2916 = vmax.bf16 %v2876, %v2448
        %v2917 = vmax.bf16 %v2877, %v2449
        %v2918 = vmax.bf16 %v2878, %v2450
        %v2919 = vmax.bf16 %v2879, %v2451
        %v2920 = vmax.bf16 %v2880, %v2452
        %v2921 = vmax.bf16 %v2881, %v2453
        %v2922 = vmax.bf16 %v2882, %v2454
        %v2923 = vmax.bf16 %v2883, %v2455
        %v2924 = vmax.bf16 %v2884, %v2456
        %v2925 = vmax.bf16 %v2885, %v2457
        %v2926 = vmax.bf16 %v2886, %v2458
        %v2927 = vmax.bf16 %v2887, %v2459
        %v2928 = vmax.bf16 %v2888, %v2460
        %v2929 = vmax.bf16 %v2889, %v2461
        %v2930 = vmax.bf16 %v2890, %v2462
        %v2931 = vmax.bf16 %v2891, %v2463
        %v2932 = vmax.bf16 %v2892, %v2464
        %v2933 = vmax.bf16 %v2893, %v2427
        %v2934 = vmax.bf16 %v2894, %v2428
        %v2935 = vmax.bf16 %v2895, %v2429
        %v2936 = vmax.bf16 %v2896, %v2430
        %v2937 = vmax.bf16 %v2897, %v2431
        %v2938 = vmax.bf16 %v2898, %v2432
        %v2939 = vmax.bf16 %v2899, %v2433
        %v2940 = vmax.bf16 %v2900, %v2434
        %v2941 = vmax.bf16 %v2901, %v2435
        %v2942 = vmax.bf16 %v2902, %v2436
        %v2943 = vmax.bf16 %v2903, %v2437
        %v2944 = vmax.bf16 %v2904, %v2438
        %v2945 = vmax.bf16 %v2905, %v2439
        %v2946 = vmax.bf16 %v2906, %v2440
        %v2947 = vmax.bf16 %v2907, %v2441
        %v2948 = vmax.bf16 %v2908, %v2442
        %v2949 = vmax.bf16 %v2909, %v2443
        %v2950 = vmax.bf16 %v2910, %v2444
        %v2951 = vmax.bf16 %v2911, %v2445
        %v2952 = vmax.bf16 %v2912, %v2446
        %v2953 = vmax.bf16 %v2913, %v2447
        %v2954 = vmax.bf16 %v2914, %v2448
        %v2955 = vmax.bf16 %v2915, %v2449
        %v2956 = vmax.bf16 %v2916, %v2450
        %v2957 = vmax.bf16 %v2917, %v2451
        %v2958 = vmax.bf16 %v2918, %v2452
        %v2959 = vmax.bf16 %v2919, %v2453
        %v2960 = vmax.bf16 %v2920, %v2454
        %v2961 = vmax.bf16 %v2921, %v2455
        %v2962 = vmax.bf16 %v2922, %v2456
        %v2963 = vmax.bf16 %v2923, %v2457
        %v2964 = vmax.bf16 %v2924, %v2458
        %v2965 = vmax.bf16 %v2925, %v2459
        %v2966 = vmax.bf16 %v2926, %v2460
        %v2967 = vmax.bf16 %v2927, %v2461
        %v2968 = vmax.bf16 %v2928, %v2462
        %v2969 = vmax.bf16 %v2929, %v2463
        %v2970 = vmax.bf16 %v2930, %v2464
        %v2971 = vmax.bf16 %v2931, %v2465
        %v2972 = vmax.bf16 %v2932, %v2466
        %v2973 = vmax.bf16 %v2933, %v2429
        %v2974 = vmax.bf16 %v2934, %v2430
        %v2975 = vmax.bf16 %v2935, %v2431
        %v2976 = vmax.bf16 %v2936, %v2432
        %v2977 = vmax.bf16 %v2937, %v2433
        %v2978 = vmax.bf16 %v2938, %v2434
        %v2979 = vmax.bf16 %v2939, %v2435
        %v2980 = vmax.bf16 %v2940, %v2436
        %v2981 = vmax.bf16 %v2941, %v2437
        %v2982 = vmax.bf16 %v2942, %v2438
        %v2983 = vmax.bf16 %v2943, %v2439
        %v2984 = vmax.bf16 %v2944, %v2440
        %v2985 = vmax.bf16 %v2945, %v2441
        %v2986 = vmax.bf16 %v2946, %v2442
        %v2987 = vmax.bf16 %v2947, %v2443
        %v2988 = vmax.bf16 %v2948, %v2444
        %v2989 = vmax.bf16 %v2949, %v2445
        %v2990 = vmax.bf16 %v2950, %v2446
        %v2991 = vmax.bf16 %v2951, %v2447
        %v2992 = vmax.bf16 %v2952, %v2448
        %v2993 = vmax.bf16 %v2953, %v2449
        %v2994 = vmax.bf16 %v2954, %v2450
        %v2995 = vmax.bf16 %v2955, %v2451
        %v2996 = vmax.bf16 %v2956, %v2452
        %v2997 = vmax.bf16 %v2957, %v2453
        %v2998 = vmax.bf16 %v2958, %v2454
        %v2999 = vmax.bf16 %v2959, %v2455
        %v3000 = vmax.bf16 %v2960, %v2456
        %v3001 = vmax.bf16 %v2961, %v2457
        %v3002 = vmax.bf16 %v2962, %v2458
        %v3003 = vmax.bf16 %v2963, %v2459
        %v3004 = vmax.bf16 %v2964, %v2460
        %v3005 = vmax.bf16 %v2965, %v2461
        %v3006 = vmax.bf16 %v2966, %v2462
        %v3007 = vmax.bf16 %v2967, %v2463
        %v3008 = vmax.bf16 %v2968, %v2464
        %v3009 = vmax.bf16 %v2969, %v2465
        %v3010 = vmax.bf16 %v2970, %v2466
        %v3011 = vmax.bf16 %v2971, %v2467
        %v3012 = vmax.bf16 %v2972, %v2468
        %v3013 = vmax.bf16 %v2973, %v2981
        %v3014 = vmax.bf16 %v2974, %v2982
        %v3015 = vmax.bf16 %v2975, %v2983
        %v3016 = vmax.bf16 %v2976, %v2984
        %v3017 = vmax.bf16 %v2977, %v2985
        %v3018 = vmax.bf16 %v2978, %v2986
        %v3019 = vmax.bf16 %v2979, %v2987
        %v3020 = vmax.bf16 %v2980, %v2988
        %v3021 = vmax.bf16 %v2981, %v2989
        %v3022 = vmax.bf16 %v2982, %v2990
        %v3023 = vmax.bf16 %v2983, %v2991
        %v3024 = vmax.bf16 %v2984, %v2992
        %v3025 = vmax.bf16 %v2985, %v2993
        %v3026 = vmax.bf16 %v2986, %v2994
        %v3027 = vmax.bf16 %v2987, %v2995
        %v3028 = vmax.bf16 %v2988, %v2996
        %v3029 = vmax.bf16 %v2989, %v2997
        %v3030 = vmax.bf16 %v2990, %v2998
        %v3031 = vmax.bf16 %v2991, %v2999
        %v3032 = vmax.bf16 %v2992, %v3000
        %v3033 = vmax.bf16 %v2993, %v3001
        %v3034 = vmax.bf16 %v2994, %v3002
        %v3035 = vmax.bf16 %v2995, %v3003
        %v3036 = vmax.bf16 %v2996, %v3004
        %v3037 = vmax.bf16 %v2997, %v3005
        %v3038 = vmax.bf16 %v2998, %v3006
        %v3039 = vmax.bf16 %v2999, %v3007
        %v3040 = vmax.bf16 %v3000, %v3008
        %v3041 = vmax.bf16 %v3001, %v3009
        %v3042 = vmax.bf16 %v3002, %v3010
        %v3043 = vmax.bf16 %v3003, %v3011
        %v3044 = vmax.bf16 %v3004, %v3012
        %v3045 = vmax.bf16 %v2669, %v2671
        %v3046 = vmax.bf16 %v2670, %v2672
        %v3047 = vmax.bf16 %v2671, %v2673
        %v3048 = vmax.bf16 %v2672, %v2674
        %v3049 = vmax.bf16 %v2673, %v2675
        %v3050 = vmax.bf16 %v2674, %v2676
        %v3051 = vmax.bf16 %v2675, %v2677
        %v3052 = vmax.bf16 %v2676, %v2678
        %v3053 = vmax.bf16 %v2677, %v2679
        %v3054 = vmax.bf16 %v2678, %v2680
        %v3055 = vmax.bf16 %v2679, %v2681
        %v3056 = vmax.bf16 %v2680, %v2682
        %v3057 = vmax.bf16 %v2681, %v2683
        %v3058 = vmax.bf16 %v2682, %v2684
        %v3059 = vmax.bf16 %v2683, %v2685
        %v3060 = vmax.bf16 %v2684, %v2686
        %v3061 = vmax.bf16 %v2685, %v2687
        %v3062 = vmax.bf16 %v2686, %v2688
        %v3063 = vmax.bf16 %v2687, %v2689
        %v3064 = vmax.bf16 %v2688, %v2690
        %v3065 = vmax.bf16 %v2689, %v2691
        %v3066 = vmax.bf16 %v2690, %v2692
        %v3067 = vmax.bf16 %v2691, %v2693
        %v3068 = vmax.bf16 %v2692, %v2694
        %v3069 = vmax.bf16 %v2693, %v2695
        %v3070 = vmax.bf16 %v2694, %v2696
        %v3071 = vmax.bf16 %v2695, %v2697
        %v3072 = vmax.bf16 %v2696, %v2698
        %v3073 = vmax.bf16 %v2697, %v2699
        %v3074 = vmax.bf16 %v2698, %v2700
        %v3075 = vmax.bf16 %v2699, %v2701
        %v3076 = vmax.bf16 %v2700, %v2702
        %v3077 = vmax.bf16 %v2701, %v2703
        %v3078 = vmax.bf16 %v2702, %v2704
        %v3079 = vmax.bf16 %v2703, %v2705
        %v3080 = vmax.bf16 %v2704, %v2706
        %v3081 = vmax.bf16 %v2705, %v2707
        %v3082 = vmax.bf16 %v2706, %v2708
        %v3083 = vmax.bf16 %v2707, %v2709
        %v3084 = vmax.bf16 %v2708, %v2710
        %v3085 = vmax.bf16 %v2709, %v2711
        %v3086 = vmax.bf16 %v2710, %v2712
        %v3087 = vmax.bf16 %v2711, %v2713
        %v3088 = vmax.bf16 %v2712, %v2714
        %v3089 = vmax.bf16 %v2713, %v2715
        %v3090 = vmax.bf16 %v2714, %v2716
        %v3091 = vmax.bf16 %v2715, %v2717
        %v3092 = vmax.bf16 %v2716, %v2718
        %v3093 = vmax.bf16 %v3045, %v2673
        %v3094 = vmax.bf16 %v3046, %v2674
        %v3095 = vmax.bf16 %v3047, %v2675
        %v3096 = vmax.bf16 %v3048, %v2676
        %v3097 = vmax.bf16 %v3049, %v2677
        %v3098 = vmax.bf16 %v3050, %v2678
        %v3099 = vmax.bf16 %v3051, %v2679
        %v3100 = vmax.bf16 %v3052, %v2680
        %v3101 = vmax.bf16 %v3053, %v2681
        %v3102 = vmax.bf16 %v3054, %v2682
        %v3103 = vmax.bf16 %v3055, %v2683
        %v3104 = vmax.bf16 %v3056, %v2684
        %v3105 = vmax.bf16 %v3057, %v2685
        %v3106 = vmax.bf16 %v3058, %v2686
        %v3107 = vmax.bf16 %v3059, %v2687
        %v3108 = vmax.bf16 %v3060, %v2688
        %v3109 = vmax.bf16 %v3061, %v2689
        %v3110 = vmax.bf16 %v3062, %v2690
        %v3111 = vmax.bf16 %v3063, %v2691
        %v3112 = vmax.bf16 %v3064, %v2692
        %v3113 = vmax.bf16 %v3065, %v2693
        %v3114 = vmax.bf16 %v3066, %v2694
        %v3115 = vmax.bf16 %v3067, %v2695
        %v3116 = vmax.bf16 %v3068, %v2696
        %v3117 = vmax.bf16 %v3069, %v2697
        %v3118 = vmax.bf16 %v3070, %v2698
        %v3119 = vmax.bf16 %v3071, %v2699
        %v3120 = vmax.bf16 %v3072, %v2700
        %v3121 = vmax.bf16 %v3073, %v2701
        %v3122 = vmax.bf16 %v3074, %v2702
        %v3123 = vmax.bf16 %v3075, %v2703
        %v3124 = vmax.bf16 %v3076, %v2704
        %v3125 = vmax.bf16 %v3077, %v2705
        %v3126 = vmax.bf16 %v3078, %v2706
        %v3127 = vmax.bf16 %v3079, %v2707
        %v3128 = vmax.bf16 %v3080, %v2708
        %v3129 = vmax.bf16 %v3081, %v2709
        %v3130 = vmax.bf16 %v3082, %v2710
        %v3131 = vmax.bf16 %v3083, %v2711
        %v3132 = vmax.bf16 %v3084, %v2712
        %v3133 = vmax.bf16 %v3085, %v2713
        %v3134 = vmax.bf16 %v3086, %v2714
        %v3135 = vmax.bf16 %v3087, %v2715
        %v3136 = vmax.bf16 %v3088, %v2716
        %v3137 = vmax.bf16 %v3089, %v2717
        %v3138 = vmax.bf16 %v3090, %v2718
        %v3139 = vmax.bf16 %v3091, %v2719
        %v3140 = vmax.bf16 %v3092, %v2720
        %v3141 = vmax.bf16 %v3093, %v2675
        %v3142 = vmax.bf16 %v3094, %v2676
        %v3143 = vmax.bf16 %v3095, %v2677
        %v3144 = vmax.bf16 %v3096, %v2678
        %v3145 = vmax.bf16 %v3097, %v2679
        %v3146 = vmax.bf16 %v3098, %v2680
        %v3147 = vmax.bf16 %v3099, %v2681
        %v3148 = vmax.bf16 %v3100, %v2682
        %v3149 = vmax.bf16 %v3101, %v2683
        %v3150 = vmax.bf16 %v3102, %v2684
        %v3151 = vmax.bf16 %v3103, %v2685
        %v3152 = vmax.bf16 %v3104, %v2686
        %v3153 = vmax.bf16 %v3105, %v2687
        %v3154 = vmax.bf16 %v3106, %v2688
        %v3155 = vmax.bf16 %v3107, %v2689
        %v3156 = vmax.bf16 %v3108, %v2690
        %v3157 = vmax.bf16 %v3109, %v2691
        %v3158 = vmax.bf16 %v3110, %v2692
        %v3159 = vmax.bf16 %v3111, %v2693
        %v3160 = vmax.bf16 %v3112, %v2694
        %v3161 = vmax.bf16 %v3113, %v2695
        %v3162 = vmax.bf16 %v3114, %v2696
        %v3163 = vmax.bf16 %v3115, %v2697
        %v3164 = vmax.bf16 %v3116, %v2698
        %v3165 = vmax.bf16 %v3117, %v2699
        %v3166 = vmax.bf16 %v3118, %v2700
        %v3167 = vmax.bf16 %v3119, %v2701
        %v3168 = vmax.bf16 %v3120, %v2702
        %v3169 = vmax.bf16 %v3121, %v2703
        %v3170 = vmax.bf16 %v3122, %v2704
        %v3171 = vmax.bf16 %v3123, %v2705
        %v3172 = vmax.bf16 %v3124, %v2706
        %v3173 = vmax.bf16 %v3125, %v2707
        %v3174 = vmax.bf16 %v3126, %v2708
        %v3175 = vmax.bf16 %v3127, %v2709
        %v3176 = vmax.bf16 %v3128, %v2710
        %v3177 = vmax.bf16 %v3129, %v2711
        %v3178 = vmax.bf16 %v3130, %v2712
        %v3179 = vmax.bf16 %v3131, %v2713
        %v3180 = vmax.bf16 %v3132, %v2714
        %v3181 = vmax.bf16 %v3133, %v2715
        %v3182 = vmax.bf16 %v3134, %v2716
        %v3183 = vmax.bf16 %v3135, %v2717
        %v3184 = vmax.bf16 %v3136, %v2718
        %v3185 = vmax.bf16 %v3137, %v2719
        %v3186 = vmax.bf16 %v3138, %v2720
        %v3187 = vmax.bf16 %v3139, %v2721
        %v3188 = vmax.bf16 %v3140, %v2722
        %v3189 = vmax.bf16 %v3141, %v2677
        %v3190 = vmax.bf16 %v3142, %v2678
        %v3191 = vmax.bf16 %v3143, %v2679
        %v3192 = vmax.bf16 %v3144, %v2680
        %v3193 = vmax.bf16 %v3145, %v2681
        %v3194 = vmax.bf16 %v3146, %v2682
        %v3195 = vmax.bf16 %v3147, %v2683
        %v3196 = vmax.bf16 %v3148, %v2684
        %v3197 = vmax.bf16 %v3149, %v2685
        %v3198 = vmax.bf16 %v3150, %v2686
        %v3199 = vmax.bf16 %v3151, %v2687
        %v3200 = vmax.bf16 %v3152, %v2688
        %v3201 = vmax.bf16 %v3153, %v2689
        %v3202 = vmax.bf16 %v3154, %v2690
        %v3203 = vmax.bf16 %v3155, %v2691
        %v3204 = vmax.bf16 %v3156, %v2692
        %v3205 = vmax.bf16 %v3157, %v2693
        %v3206 = vmax.bf16 %v3158, %v2694
        %v3207 = vmax.bf16 %v3159, %v2695
        %v3208 = vmax.bf16 %v3160, %v2696
        %v3209 = vmax.bf16 %v3161, %v2697
        %v3210 = vmax.bf16 %v3162, %v2698
        %v3211 = vmax.bf16 %v3163, %v2699
        %v3212 = vmax.bf16 %v3164, %v2700
        %v3213 = vmax.bf16 %v3165, %v2701
        %v3214 = vmax.bf16 %v3166, %v2702
        %v3215 = vmax.bf16 %v3167, %v2703
        %v3216 = vmax.bf16 %v3168, %v2704
        %v3217 = vmax.bf16 %v3169, %v2705
        %v3218 = vmax.bf16 %v3170, %v2706
        %v3219 = vmax.bf16 %v3171, %v2707
        %v3220 = vmax.bf16 %v3172, %v2708
        %v3221 = vmax.bf16 %v3173, %v2709
        %v3222 = vmax.bf16 %v3174, %v2710
        %v3223 = vmax.bf16 %v3175, %v2711
        %v3224 = vmax.bf16 %v3176, %v2712
        %v3225 = vmax.bf16 %v3177, %v2713
        %v3226 = vmax.bf16 %v3178, %v2714
        %v3227 = vmax.bf16 %v3179, %v2715
        %v3228 = vmax.bf16 %v3180, %v2716
        %v3229 = vmax.bf16 %v3181, %v2717
        %v3230 = vmax.bf16 %v3182, %v2718
        %v3231 = vmax.bf16 %v3183, %v2719
        %v3232 = vmax.bf16 %v3184, %v2720
        %v3233 = vmax.bf16 %v3185, %v2721
        %v3234 = vmax.bf16 %v3186, %v2722
        %v3235 = vmax.bf16 %v3187, %v2723
        %v3236 = vmax.bf16 %v3188, %v2724
        %v3237 = vmax.bf16 %v3189, %v3197
        %v3238 = vmax.bf16 %v3190, %v3198
        %v3239 = vmax.bf16 %v3191, %v3199
        %v3240 = vmax.bf16 %v3192, %v3200
        %v3241 = vmax.bf16 %v3193, %v3201
        %v3242 = vmax.bf16 %v3194, %v3202
        %v3243 = vmax.bf16 %v3195, %v3203
        %v3244 = vmax.bf16 %v3196, %v3204
        %v3245 = vmax.bf16 %v3197, %v3205
        %v3246 = vmax.bf16 %v3198, %v3206
        %v3247 = vmax.bf16 %v3199, %v3207
        %v3248 = vmax.bf16 %v3200, %v3208
        %v3249 = vmax.bf16 %v3201, %v3209
        %v3250 = vmax.bf16 %v3202, %v3210
        %v3251 = vmax.bf16 %v3203, %v3211
        %v3252 = vmax.bf16 %v3204, %v3212
        %v3253 = vmax.bf16 %v3205, %v3213
        %v3254 = vmax.bf16 %v3206, %v3214
        %v3255 = vmax.bf16 %v3207, %v3215
        %v3256 = vmax.bf16 %v3208, %v3216
        %v3257 = vmax.bf16 %v3209, %v3217
        %v3258 = vmax.bf16 %v3210, %v3218
        %v3259 = vmax.bf16 %v3211, %v3219
        %v3260 = vmax.bf16 %v3212, %v3220
        %v3261 = vmax.bf16 %v3213, %v3221
        %v3262 = vmax.bf16 %v3214, %v3222
        %v3263 = vmax.bf16 %v3215, %v3223
        %v3264 = vmax.bf16 %v3216, %v3224
        %v3265 = vmax.bf16 %v3217, %v3225
        %v3266 = vmax.bf16 %v3218, %v3226
        %v3267 = vmax.bf16 %v3219, %v3227
        %v3268 = vmax.bf16 %v3220, %v3228
        %v3269 = vmax.bf16 %v3221, %v3229
        %v3270 = vmax.bf16 %v3222, %v3230
        %v3271 = vmax.bf16 %v3223, %v3231
        %v3272 = vmax.bf16 %v3224, %v3232
        %v3273 = vmax.bf16 %v3225, %v3233
        %v3274 = vmax.bf16 %v3226, %v3234
        %v3275 = vmax.bf16 %v3227, %v3235
        %v3276 = vmax.bf16 %v3228, %v3236
        %v3277 = vmax.bf16 %v3237, %v3245
        %v3278 = vmax.bf16 %v3238, %v3246
        %v3279 = vmax.bf16 %v3239, %v3247
        %v3280 = vmax.bf16 %v3240, %v3248
        %v3281 = vmax.bf16 %v3241, %v3249
        %v3282 = vmax.bf16 %v3242, %v3250
        %v3283 = vmax.bf16 %v3243, %v3251
        %v3284 = vmax.bf16 %v3244, %v3252
        %v3285 = vmax.bf16 %v3245, %v3253
        %v3286 = vmax.bf16 %v3246, %v3254
        %v3287 = vmax.bf16 %v3247, %v3255
        %v3288 = vmax.bf16 %v3248, %v3256
        %v3289 = vmax.bf16 %v3249, %v3257
        %v3290 = vmax.bf16 %v3250, %v3258
        %v3291 = vmax.bf16 %v3251, %v3259
        %v3292 = vmax.bf16 %v3252, %v3260
        %v3293 = vmax.bf16 %v3253, %v3261
        %v3294 = vmax.bf16 %v3254, %v3262
        %v3295 = vmax.bf16 %v3255, %v3263
        %v3296 = vmax.bf16 %v3256, %v3264
        %v3297 = vmax.bf16 %v3257, %v3265
        %v3298 = vmax.bf16 %v3258, %v3266
        %v3299 = vmax.bf16 %v3259, %v3267
        %v3300 = vmax.bf16 %v3260, %v3268
        %v3301 = vmax.bf16 %v3261, %v3269
        %v3302 = vmax.bf16 %v3262, %v3270
        %v3303 = vmax.bf16 %v3263, %v3271
        %v3304 = vmax.bf16 %v3264, %v3272
        %v3305 = vmax.bf16 %v3265, %v3273
        %v3306 = vmax.bf16 %v3266, %v3274
        %v3307 = vmax.bf16 %v3267, %v3275
        %v3308 = vmax.bf16 %v3268, %v3276
        %vm3341 = vcmask 1044480
        %v3342 = vrot.slane %v2821, 3
        %v3343 = vrot.slane %v2822, 3
        %v3344 = vsel %vm3341, %v3342, %v3343
        %v3345 = vrot.slane %v2823, 3
        %v3346 = vrot.slane %v2824, 3
        %v3347 = vsel %vm3341, %v3345, %v3346
        %v3348 = vrot.slane %v2825, 3
        %v3349 = vrot.slane %v2826, 3
        %v3350 = vsel %vm3341, %v3348, %v3349
        %v3351 = vrot.slane %v2827, 3
        %v3352 = vrot.slane %v2828, 3
        %v3353 = vsel %vm3341, %v3351, %v3352
        %v3354 = vrot.slane %v2829, 3
        %v3355 = vrot.slane %v2830, 3
        %v3356 = vsel %vm3341, %v3354, %v3355
        %v3357 = vrot.slane %v2831, 3
        %v3358 = vrot.slane %v2832, 3
        %v3359 = vsel %vm3341, %v3357, %v3358
        %v3360 = vrot.slane %v2833, 3
        %v3361 = vrot.slane %v2834, 3
        %v3362 = vsel %vm3341, %v3360, %v3361
        %v3363 = vrot.slane %v2835, 3
        %v3364 = vrot.slane %v2836, 3
        %v3365 = vsel %vm3341, %v3363, %v3364
        %v3366 = vrot.slane %v2837, 3
        %v3367 = vrot.slane %v2838, 3
        %v3368 = vsel %vm3341, %v3366, %v3367
        %v3369 = vrot.slane %v2839, 3
        %v3370 = vrot.slane %v2840, 3
        %v3371 = vsel %vm3341, %v3369, %v3370
        %v3372 = vrot.slane %v2841, 3
        %v3373 = vrot.slane %v2842, 3
        %v3374 = vsel %vm3341, %v3372, %v3373
        %v3375 = vrot.slane %v2843, 3
        %v3376 = vrot.slane %v2844, 3
        %v3377 = vsel %vm3341, %v3375, %v3376
        %v3378 = vrot.slane %v2845, 3
        %v3379 = vrot.slane %v2846, 3
        %v3380 = vsel %vm3341, %v3378, %v3379
        %v3381 = vrot.slane %v2847, 3
        %v3382 = vrot.slane %v2848, 3
        %v3383 = vsel %vm3341, %v3381, %v3382
        %v3384 = vrot.slane %v2849, 3
        %v3385 = vrot.slane %v2850, 3
        %v3386 = vsel %vm3341, %v3384, %v3385
        %v3387 = vrot.slane %v2851, 3
        %v3388 = vrot.slane %v2852, 3
        %v3389 = vsel %vm3341, %v3387, %v3388
        %v3438 = vrot.slane %v3013, 2
        %v3439 = vrot.slane %v3014, 2
        %v3440 = vsel %vm2024, %v3438, %v3439
        %v3441 = vrot.slane %v3015, 2
        %v3442 = vrot.slane %v3016, 2
        %v3443 = vsel %vm2024, %v3441, %v3442
        %v3444 = vrot.slane %v3017, 2
        %v3445 = vrot.slane %v3018, 2
        %v3446 = vsel %vm2024, %v3444, %v3445
        %v3447 = vrot.slane %v3019, 2
        %v3448 = vrot.slane %v3020, 2
        %v3449 = vsel %vm2024, %v3447, %v3448
        %v3450 = vrot.slane %v3021, 2
        %v3451 = vrot.slane %v3022, 2
        %v3452 = vsel %vm2024, %v3450, %v3451
        %v3453 = vrot.slane %v3023, 2
        %v3454 = vrot.slane %v3024, 2
        %v3455 = vsel %vm2024, %v3453, %v3454
        %v3456 = vrot.slane %v3025, 2
        %v3457 = vrot.slane %v3026, 2
        %v3458 = vsel %vm2024, %v3456, %v3457
        %v3459 = vrot.slane %v3027, 2
        %v3460 = vrot.slane %v3028, 2
        %v3461 = vsel %vm2024, %v3459, %v3460
        %v3462 = vrot.slane %v3029, 2
        %v3463 = vrot.slane %v3030, 2
        %v3464 = vsel %vm2024, %v3462, %v3463
        %v3465 = vrot.slane %v3031, 2
        %v3466 = vrot.slane %v3032, 2
        %v3467 = vsel %vm2024, %v3465, %v3466
        %v3468 = vrot.slane %v3033, 2
        %v3469 = vrot.slane %v3034, 2
        %v3470 = vsel %vm2024, %v3468, %v3469
        %v3471 = vrot.slane %v3035, 2
        %v3472 = vrot.slane %v3036, 2
        %v3473 = vsel %vm2024, %v3471, %v3472
        %v3474 = vrot.slane %v3037, 2
        %v3475 = vrot.slane %v3038, 2
        %v3476 = vsel %vm2024, %v3474, %v3475
        %v3477 = vrot.slane %v3039, 2
        %v3478 = vrot.slane %v3040, 2
        %v3479 = vsel %vm2024, %v3477, %v3478
        %v3480 = vrot.slane %v3041, 2
        %v3481 = vrot.slane %v3042, 2
        %v3482 = vsel %vm2024, %v3480, %v3481
        %v3483 = vrot.slane %v3043, 2
        %v3484 = vrot.slane %v3044, 2
        %v3485 = vsel %vm2024, %v3483, %v3484
        %v3534 = vrot.slane %v3277, 1
        %v3535 = vrot.slane %v3278, 1
        %v3536 = vsel %vm1518, %v3534, %v3535
        %v3537 = vrot.slane %v3279, 1
        %v3538 = vrot.slane %v3280, 1
        %v3539 = vsel %vm1518, %v3537, %v3538
        %v3540 = vrot.slane %v3281, 1
        %v3541 = vrot.slane %v3282, 1
        %v3542 = vsel %vm1518, %v3540, %v3541
        %v3543 = vrot.slane %v3283, 1
        %v3544 = vrot.slane %v3284, 1
        %v3545 = vsel %vm1518, %v3543, %v3544
        %v3546 = vrot.slane %v3285, 1
        %v3547 = vrot.slane %v3286, 1
        %v3548 = vsel %vm1518, %v3546, %v3547
        %v3549 = vrot.slane %v3287, 1
        %v3550 = vrot.slane %v3288, 1
        %v3551 = vsel %vm1518, %v3549, %v3550
        %v3552 = vrot.slane %v3289, 1
        %v3553 = vrot.slane %v3290, 1
        %v3554 = vsel %vm1518, %v3552, %v3553
        %v3555 = vrot.slane %v3291, 1
        %v3556 = vrot.slane %v3292, 1
        %v3557 = vsel %vm1518, %v3555, %v3556
        %v3558 = vrot.slane %v3293, 1
        %v3559 = vrot.slane %v3294, 1
        %v3560 = vsel %vm1518, %v3558, %v3559
        %v3561 = vrot.slane %v3295, 1
        %v3562 = vrot.slane %v3296, 1
        %v3563 = vsel %vm1518, %v3561, %v3562
        %v3564 = vrot.slane %v3297, 1
        %v3565 = vrot.slane %v3298, 1
        %v3566 = vsel %vm1518, %v3564, %v3565
        %v3567 = vrot.slane %v3299, 1
        %v3568 = vrot.slane %v3300, 1
        %v3569 = vsel %vm1518, %v3567, %v3568
        %v3570 = vrot.slane %v3301, 1
        %v3571 = vrot.slane %v3302, 1
        %v3572 = vsel %vm1518, %v3570, %v3571
        %v3573 = vrot.slane %v3303, 1
        %v3574 = vrot.slane %v3304, 1
        %v3575 = vsel %vm1518, %v3573, %v3574
        %v3576 = vrot.slane %v3305, 1
        %v3577 = vrot.slane %v3306, 1
        %v3578 = vsel %vm1518, %v3576, %v3577
        %v3579 = vrot.slane %v3307, 1
        %v3580 = vrot.slane %v3308, 1
        %v3581 = vsel %vm1518, %v3579, %v3580
        %v3598 = vld [vmem:[%s3] sm:$0xf]
        %v3599 = vld [vmem:[%s3 + $0x4] sm:$0xf]
        %v3600 = vld [vmem:[%s3 + $0x8] sm:$0xf]
        %v3601 = vld [vmem:[%s3 + $0xc] sm:$0xf]
        %v3602 = vld [vmem:[%s3 + $0x10] sm:$0xf]
        %v3603 = vld [vmem:[%s3 + $0x14] sm:$0xf]
        %v3604 = vld [vmem:[%s3 + $0x18] sm:$0xf]
        %v3605 = vld [vmem:[%s3 + $0x1c] sm:$0xf]
        %v3606 = vld [vmem:[%s3 + $0x20] sm:$0xf]
        %v3607 = vld [vmem:[%s3 + $0x24] sm:$0xf]
        %v3608 = vld [vmem:[%s3 + $0x28] sm:$0xf]
        %v3609 = vld [vmem:[%s3 + $0x2c] sm:$0xf]
        %v3610 = vld [vmem:[%s3 + $0x30] sm:$0xf]
        %v3611 = vld [vmem:[%s3 + $0x34] sm:$0xf]
        %v3612 = vld [vmem:[%s3 + $0x38] sm:$0xf]
        %v3613 = vld [vmem:[%s3 + $0x3c] sm:$0xf]
        %v3614 = vld [vmem:[%s3 + $0x40] sm:$0xf]
        %v3615 = vld [vmem:[%s3 + $0x44] sm:$0xf]
        %v3616 = vld [vmem:[%s3 + $0x48] sm:$0xf]
        %v3617 = vld [vmem:[%s3 + $0x4c] sm:$0xf]
        %v3618 = vld [vmem:[%s3 + $0x50] sm:$0xf]
        %v3619 = vld [vmem:[%s3 + $0x54] sm:$0xf]
        %v3620 = vld [vmem:[%s3 + $0x58] sm:$0xf]
        %v3621 = vld [vmem:[%s3 + $0x5c] sm:$0xf]
        %v3622 = vld [vmem:[%s3 + $0x60] sm:$0xf]
        %v3623 = vld [vmem:[%s3 + $0x64] sm:$0xf]
        %v3624 = vld [vmem:[%s3 + $0x68] sm:$0xf]
        %v3625 = vld [vmem:[%s3 + $0x6c] sm:$0xf]
        %v3626 = vld [vmem:[%s3 + $0x70] sm:$0xf]
        %v3627 = vld [vmem:[%s3 + $0x74] sm:$0xf]
        %v3628 = vld [vmem:[%s3 + $0x78] sm:$0xf]
        %v3629 = vld [vmem:[%s3 + $0x7c] sm:$0xf]
        %v3630 = vld [vmem:[%s3 + $0x80] sm:$0xf]
        %v3631 = vld [vmem:[%s3 + $0x84] sm:$0xf]
        %v3632 = vld [vmem:[%s3 + $0x88] sm:$0xf]
        %v3633 = vld [vmem:[%s3 + $0x8c] sm:$0xf]
        %v3634 = vld [vmem:[%s3 + $0x90] sm:$0xf]
        %v3635 = vld [vmem:[%s3 + $0x94] sm:$0xf]
        %v3636 = vld [vmem:[%s3 + $0x98] sm:$0xf]
        %v3637 = vld [vmem:[%s3 + $0x9c] sm:$0xf]
        %v3638 = vld [vmem:[%s3 + $0xa0] sm:$0xf]
        %v3639 = vld [vmem:[%s3 + $0xa4] sm:$0xf]
        %v3640 = vld [vmem:[%s3 + $0xa8] sm:$0xf]
        %v3641 = vld [vmem:[%s3 + $0xac] sm:$0xf]
        %v3642 = vld [vmem:[%s3 + $0xb0] sm:$0xf]
        %v3643 = vld [vmem:[%s3 + $0xb4] sm:$0xf]
        %v3644 = vld [vmem:[%s3 + $0xb8] sm:$0xf]
        %v3645 = vld [vmem:[%s3 + $0xbc] sm:$0xf]
        %v3646 = vld [vmem:[%s3 + $0xc0] sm:$0xf]
        %v3647 = vld [vmem:[%s3 + $0xc4] sm:$0xf]
        %v3648 = vld [vmem:[%s3 + $0xc8] sm:$0xf]
        %v3649 = vld [vmem:[%s3 + $0xcc] sm:$0xf]
        %v3650 = vld [vmem:[%s3 + $0xd0] sm:$0xf]
        %v3651 = vld [vmem:[%s3 + $0xd4] sm:$0xf]
        %v3652 = vld [vmem:[%s3 + $0xd8] sm:$0xf]
        %v3653 = vld [vmem:[%s3 + $0xdc] sm:$0xf]
        %v3654 = vld [vmem:[%s3 + $0xe0] sm:$0xf]
        %v3655 = vld [vmem:[%s3 + $0xe4] sm:$0xf]
        %v3656 = vld [vmem:[%s3 + $0xe8] sm:$0xf]
        %v3657 = vld [vmem:[%s3 + $0xec] sm:$0xf]
        %v3658 = vld [vmem:[%s3 + $0xf0] sm:$0xf]
        %v3659 = vld [vmem:[%s3 + $0xf4] sm:$0xf]
        %v3660 = vld [vmem:[%s3 + $0xf8] sm:$0xf]
        %v3661 = vld [vmem:[%s3 + $0xfc] sm:$0xf]
        %v3662 = vld [vmem:[%s4] sm:$0x1]
        %v3664 = vlaneseq
        %v3665 = vshrl.u32 %v3664, 7
        %v3666 = vsub.s32 0, %v3665
        %v3667 = vrot.slane %v3662, %v3666
        %v3733 = vunpack.c.l.b16 %v3598
        %v3734 = vunpack.c.l.b16 %v3599
        %v3735 = vunpack.c.l.b16 %v3600
        %v3736 = vunpack.c.l.b16 %v3601
        %v3737 = vunpack.c.l.b16 %v3602
        %v3738 = vunpack.c.l.b16 %v3603
        %v3739 = vunpack.c.l.b16 %v3604
        %v3740 = vunpack.c.l.b16 %v3605
        %v3741 = vunpack.c.l.b16 %v3606
        %v3742 = vunpack.c.l.b16 %v3607
        %v3743 = vunpack.c.l.b16 %v3608
        %v3744 = vunpack.c.l.b16 %v3609
        %v3745 = vunpack.c.l.b16 %v3610
        %v3746 = vunpack.c.l.b16 %v3611
        %v3747 = vunpack.c.l.b16 %v3612
        %v3748 = vunpack.c.l.b16 %v3613
        %v3749 = vunpack.c.l.b16 %v3614
        %v3750 = vunpack.c.l.b16 %v3615
        %v3751 = vunpack.c.l.b16 %v3616
        %v3752 = vunpack.c.l.b16 %v3617
        %v3753 = vunpack.c.l.b16 %v3618
        %v3754 = vunpack.c.l.b16 %v3619
        %v3755 = vunpack.c.l.b16 %v3620
        %v3756 = vunpack.c.l.b16 %v3621
        %v3757 = vunpack.c.l.b16 %v3622
        %v3758 = vunpack.c.l.b16 %v3623
        %v3759 = vunpack.c.l.b16 %v3624
        %v3760 = vunpack.c.l.b16 %v3625
        %v3761 = vunpack.c.l.b16 %v3626
        %v3762 = vunpack.c.l.b16 %v3627
        %v3763 = vunpack.c.l.b16 %v3628
        %v3764 = vunpack.c.l.b16 %v3629
        %v3765 = vunpack.c.l.b16 %v3630
        %v3766 = vunpack.c.l.b16 %v3631
        %v3767 = vunpack.c.l.b16 %v3632
        %v3768 = vunpack.c.l.b16 %v3633
        %v3769 = vunpack.c.l.b16 %v3634
        %v3770 = vunpack.c.l.b16 %v3635
        %v3771 = vunpack.c.l.b16 %v3636
        %v3772 = vunpack.c.l.b16 %v3637
        %v3773 = vunpack.c.l.b16 %v3638
        %v3774 = vunpack.c.l.b16 %v3639
        %v3775 = vunpack.c.l.b16 %v3640
        %v3776 = vunpack.c.l.b16 %v3641
        %v3777 = vunpack.c.l.b16 %v3642
        %v3778 = vunpack.c.l.b16 %v3643
        %v3779 = vunpack.c.l.b16 %v3644
        %v3780 = vunpack.c.l.b16 %v3645
        %v3781 = vunpack.c.l.b16 %v3646
        %v3782 = vunpack.c.l.b16 %v3647
        %v3783 = vunpack.c.l.b16 %v3648
        %v3784 = vunpack.c.l.b16 %v3649
        %v3785 = vunpack.c.l.b16 %v3650
        %v3786 = vunpack.c.l.b16 %v3651
        %v3787 = vunpack.c.l.b16 %v3652
        %v3788 = vunpack.c.l.b16 %v3653
        %v3789 = vunpack.c.l.b16 %v3654
        %v3790 = vunpack.c.l.b16 %v3655
        %v3791 = vunpack.c.l.b16 %v3656
        %v3792 = vunpack.c.l.b16 %v3657
        %v3793 = vunpack.c.l.b16 %v3658
        %v3794 = vunpack.c.l.b16 %v3659
        %v3795 = vunpack.c.l.b16 %v3660
        %v3796 = vunpack.c.l.b16 %v3661
        %v3797 = vpack.c.b16 %v3734, %v3733
        %v3798 = vpack.c.b16 %v3736, %v3735
        %v3799 = vpack.c.b16 %v3738, %v3737
        %v3800 = vpack.c.b16 %v3740, %v3739
        %v3801 = vpack.c.b16 %v3742, %v3741
        %v3802 = vpack.c.b16 %v3744, %v3743
        %v3803 = vpack.c.b16 %v3746, %v3745
        %v3804 = vpack.c.b16 %v3748, %v3747
        %v3805 = vpack.c.b16 %v3750, %v3749
        %v3806 = vpack.c.b16 %v3752, %v3751
        %v3807 = vpack.c.b16 %v3754, %v3753
        %v3808 = vpack.c.b16 %v3756, %v3755
        %v3809 = vpack.c.b16 %v3758, %v3757
        %v3810 = vpack.c.b16 %v3760, %v3759
        %v3811 = vpack.c.b16 %v3762, %v3761
        %v3812 = vpack.c.b16 %v3764, %v3763
        %v3813 = vpack.c.b16 %v3766, %v3765
        %v3814 = vpack.c.b16 %v3768, %v3767
        %v3815 = vpack.c.b16 %v3770, %v3769
        %v3816 = vpack.c.b16 %v3772, %v3771
        %v3817 = vpack.c.b16 %v3774, %v3773
        %v3818 = vpack.c.b16 %v3776, %v3775
        %v3819 = vpack.c.b16 %v3778, %v3777
        %v3820 = vpack.c.b16 %v3780, %v3779
        %v3821 = vpack.c.b16 %v3782, %v3781
        %v3822 = vpack.c.b16 %v3784, %v3783
        %v3823 = vpack.c.b16 %v3786, %v3785
        %v3824 = vpack.c.b16 %v3788, %v3787
        %v3825 = vpack.c.b16 %v3790, %v3789
        %v3826 = vpack.c.b16 %v3792, %v3791
        %v3827 = vpack.c.b16 %v3794, %v3793
        %v3828 = vpack.c.b16 %v3796, %v3795
        %3861 = vmatprep.subr.bf16.mxu0 0
        %3862 = vmatpush1.bf16.msra.mxu0 %v3797
        %3863 = vmatprep.subr.bf16.mxu0 0
        %3864 = vmatpush1.bf16.msra.mxu0 %v3798
        %3865 = vmatprep.subr.bf16.mxu0 0
        %3866 = vmatpush1.bf16.msra.mxu0 %v3799
        %3867 = vmatprep.subr.bf16.mxu0 0
        %3868 = vmatpush1.bf16.msra.mxu0 %v3800
        %3869 = vmatprep.subr.bf16.mxu0 0
        %3870 = vmatpush1.bf16.msra.mxu0 %v3801
        %3871 = vmatprep.subr.bf16.mxu0 0
        %3872 = vmatpush1.bf16.msra.mxu0 %v3802
        %3873 = vmatprep.subr.bf16.mxu0 0
        %3874 = vmatpush1.bf16.msra.mxu0 %v3803
        %3875 = vmatprep.subr.bf16.mxu0 0
        %3876 = vmatpush1.bf16.msra.mxu0 %v3804
        %3877 = vmatprep.subr.bf16.mxu0 0
        %3878 = vmatpush1.bf16.msra.mxu0 %v3805
        %3879 = vmatprep.subr.bf16.mxu0 0
        %3880 = vmatpush1.bf16.msra.mxu0 %v3806
        %3881 = vmatprep.subr.bf16.mxu0 0
        %3882 = vmatpush1.bf16.msra.mxu0 %v3807
        %3883 = vmatprep.subr.bf16.mxu0 0
        %3884 = vmatpush1.bf16.msra.mxu0 %v3808
        %3885 = vmatprep.subr.bf16.mxu0 0
        %3886 = vmatpush1.bf16.msra.mxu0 %v3809
        %3887 = vmatprep.subr.bf16.mxu0 0
        %3888 = vmatpush1.bf16.msra.mxu0 %v3810
        %3889 = vmatprep.subr.bf16.mxu0 0
        %3890 = vmatpush1.bf16.msra.mxu0 %v3811
        %3891 = vmatprep.subr.bf16.mxu0 0
        %3892 = vmatpush1.bf16.msra.mxu0 %v3812
        %3893 = vmatprep.mubr.bf16.mxu0 %v3344
        %3894 = vmatmul.mubr.bf16.gmra.mrb[0].mxu0 %v719
        %v3895 = vpop.f32.mrb[0].mxu0
        %v3896 = vadd.f32 %v3667, %v3895
        %v3897 = vpop.f32.mrb[0].mxu0
        %v3898 = vpop.f32.mrb[0].mxu0
        %v3899 = vadd.f32 %v3667, %v3898
        %v3900 = vpop.f32.mrb[0].mxu0
        %3901 = vmatprep.mubr.bf16.mxu0 %v3347
        %3902 = vmatmul.mubr.bf16.gmra.mrb[0].mxu0 %v720
        %v3903 = vpop.f32.mrb[0].mxu0
        %v3904 = vadd.f32 %v3667, %v3903
        %v3905 = vpop.f32.mrb[0].mxu0
        %v3906 = vpop.f32.mrb[0].mxu0
        %v3907 = vadd.f32 %v3667, %v3906
        %v3908 = vpop.f32.mrb[0].mxu0
        %3909 = vmatprep.mubr.bf16.mxu0 %v3350
        %3910 = vmatmul.mubr.bf16.gmra.mrb[0].mxu0 %v721
        %v3911 = vpop.f32.mrb[0].mxu0
        %v3912 = vadd.f32 %v3667, %v3911
        %v3913 = vpop.f32.mrb[0].mxu0
        %v3914 = vpop.f32.mrb[0].mxu0
        %v3915 = vadd.f32 %v3667, %v3914
        %v3916 = vpop.f32.mrb[0].mxu0
        %3917 = vmatprep.mubr.bf16.mxu0 %v3353
        %3918 = vmatmul.mubr.bf16.gmra.mrb[0].mxu0 %v722
        %v3919 = vpop.f32.mrb[0].mxu0
        %v3920 = vadd.f32 %v3667, %v3919
        %v3921 = vpop.f32.mrb[0].mxu0
        %v3922 = vpop.f32.mrb[0].mxu0
        %v3923 = vadd.f32 %v3667, %v3922
        %v3924 = vpop.f32.mrb[0].mxu0
        %3925 = vmatprep.mubr.bf16.mxu0 %v3356
        %3926 = vmatmul.mubr.bf16.gmra.mrb[0].mxu0 %v723
        %v3927 = vpop.f32.mrb[0].mxu0
        %v3928 = vadd.f32 %v3667, %v3927
        %v3929 = vpop.f32.mrb[0].mxu0
        %v3930 = vpop.f32.mrb[0].mxu0
        %v3931 = vadd.f32 %v3667, %v3930
        %v3932 = vpop.f32.mrb[0].mxu0
        %3933 = vmatprep.mubr.bf16.mxu0 %v3359
        %3934 = vmatmul.mubr.bf16.gmra.mrb[0].mxu0 %v724
        %v3935 = vpop.f32.mrb[0].mxu0
        %v3936 = vadd.f32 %v3667, %v3935
        %v3937 = vpop.f32.mrb[0].mxu0
        %v3938 = vpop.f32.mrb[0].mxu0
        %v3939 = vadd.f32 %v3667, %v3938
        %v3940 = vpop.f32.mrb[0].mxu0
        %3941 = vmatprep.mubr.bf16.mxu0 %v3362
        %3942 = vmatmul.mubr.bf16.gmra.mrb[0].mxu0 %v725
        %v3943 = vpop.f32.mrb[0].mxu0
        %v3944 = vadd.f32 %v3667, %v3943
        %v3945 = vpop.f32.mrb[0].mxu0
        %v3946 = vpop.f32.mrb[0].mxu0
        %v3947 = vadd.f32 %v3667, %v3946
        %v3948 = vpop.f32.mrb[0].mxu0
        %3949 = vmatprep.mubr.bf16.mxu0 %v3365
        %3950 = vmatmul.mubr.bf16.gmra.mrb[0].mxu0 %v726
        %v3951 = vpop.f32.mrb[0].mxu0
        %v3952 = vadd.f32 %v3667, %v3951
        %v3953 = vpop.f32.mrb[0].mxu0
        %v3954 = vpop.f32.mrb[0].mxu0
        %v3955 = vadd.f32 %v3667, %v3954
        %v3956 = vpop.f32.mrb[0].mxu0
        %3957 = vmatprep.mubr.bf16.mxu0 %v3368
        %3958 = vmatmul.mubr.bf16.gmra.mrb[0].mxu0 %v727
        %v3959 = vpop.f32.mrb[0].mxu0
        %v3960 = vadd.f32 %v3667, %v3959
        %v3961 = vpop.f32.mrb[0].mxu0
        %v3962 = vpop.f32.mrb[0].mxu0
        %v3963 = vadd.f32 %v3667, %v3962
        %v3964 = vpop.f32.mrb[0].mxu0
        %3965 = vmatprep.mubr.bf16.mxu0 %v3371
        %3966 = vmatmul.mubr.bf16.gmra.mrb[0].mxu0 %v728
        %v3967 = vpop.f32.mrb[0].mxu0
        %v3968 = vadd.f32 %v3667, %v3967
        %v3969 = vpop.f32.mrb[0].mxu0
        %v3970 = vpop.f32.mrb[0].mxu0
        %v3971 = vadd.f32 %v3667, %v3970
        %v3972 = vpop.f32.mrb[0].mxu0
        %3973 = vmatprep.mubr.bf16.mxu0 %v3374
        %3974 = vmatmul.mubr.bf16.gmra.mrb[0].mxu0 %v729
        %v3975 = vpop.f32.mrb[0].mxu0
        %v3976 = vadd.f32 %v3667, %v3975
        %v3977 = vpop.f32.mrb[0].mxu0
        %v3978 = vpop.f32.mrb[0].mxu0
        %v3979 = vadd.f32 %v3667, %v3978
        %v3980 = vpop.f32.mrb[0].mxu0
        %3981 = vmatprep.mubr.bf16.mxu0 %v3377
        %3982 = vmatmul.mubr.bf16.gmra.mrb[0].mxu0 %v730
        %v3983 = vpop.f32.mrb[0].mxu0
        %v3984 = vadd.f32 %v3667, %v3983
        %v3985 = vpop.f32.mrb[0].mxu0
        %v3986 = vpop.f32.mrb[0].mxu0
        %v3987 = vadd.f32 %v3667, %v3986
        %v3988 = vpop.f32.mrb[0].mxu0
        %3989 = vmatprep.mubr.bf16.mxu0 %v3380
        %3990 = vmatmul.mubr.bf16.gmra.mrb[0].mxu0 %v731
        %v3991 = vpop.f32.mrb[0].mxu0
        %v3992 = vadd.f32 %v3667, %v3991
        %v3993 = vpop.f32.mrb[0].mxu0
        %v3994 = vpop.f32.mrb[0].mxu0
        %v3995 = vadd.f32 %v3667, %v3994
        %v3996 = vpop.f32.mrb[0].mxu0
        %3997 = vmatprep.mubr.bf16.mxu0 %v3383
        %3998 = vmatmul.mubr.bf16.gmra.mrb[0].mxu0 %v732
        %v3999 = vpop.f32.mrb[0].mxu0
        %v4000 = vadd.f32 %v3667, %v3999
        %v4001 = vpop.f32.mrb[0].mxu0
        %v4002 = vpop.f32.mrb[0].mxu0
        %v4003 = vadd.f32 %v3667, %v4002
        %v4004 = vpop.f32.mrb[0].mxu0
        %4005 = vmatprep.mubr.bf16.mxu0 %v3386
        %4006 = vmatmul.mubr.bf16.gmra.mrb[0].mxu0 %v733
        %v4007 = vpop.f32.mrb[0].mxu0
        %v4008 = vadd.f32 %v3667, %v4007
        %v4009 = vpop.f32.mrb[0].mxu0
        %v4010 = vpop.f32.mrb[0].mxu0
        %v4011 = vadd.f32 %v3667, %v4010
        %v4012 = vpop.f32.mrb[0].mxu0
        %4013 = vmatprep.mubr.bf16.mxu0 %v3389
        %4014 = vmatmul.mubr.bf16.gmra.mrb[0].mxu0 %v734
        %v4015 = vpop.f32.mrb[0].mxu0
        %v4016 = vadd.f32 %v3667, %v4015
        %v4017 = vpop.f32.mrb[0].mxu0
        %v4018 = vpop.f32.mrb[0].mxu0
        %v4019 = vadd.f32 %v3667, %v4018
        %v4020 = vpop.f32.mrb[0].mxu0
        %4021 = vdwg.mxu0
        %4022 = vmatprep.subr.bf16.mxu0 0
        %4023 = vmatpush1.bf16.msra.mxu0 %v3813
        %4024 = vmatprep.subr.bf16.mxu0 0
        %4025 = vmatpush1.bf16.msra.mxu0 %v3814
        %4026 = vmatprep.subr.bf16.mxu0 0
        %4027 = vmatpush1.bf16.msra.mxu0 %v3815
        %4028 = vmatprep.subr.bf16.mxu0 0
        %4029 = vmatpush1.bf16.msra.mxu0 %v3816
        %4030 = vmatprep.subr.bf16.mxu0 0
        %4031 = vmatpush1.bf16.msra.mxu0 %v3817
        %4032 = vmatprep.subr.bf16.mxu0 0
        %4033 = vmatpush1.bf16.msra.mxu0 %v3818
        %4034 = vmatprep.subr.bf16.mxu0 0
        %4035 = vmatpush1.bf16.msra.mxu0 %v3819
        %4036 = vmatprep.subr.bf16.mxu0 0
        %4037 = vmatpush1.bf16.msra.mxu0 %v3820
        %4038 = vmatprep.subr.bf16.mxu0 0
        %4039 = vmatpush1.bf16.msra.mxu0 %v3821
        %4040 = vmatprep.subr.bf16.mxu0 0
        %4041 = vmatpush1.bf16.msra.mxu0 %v3822
        %4042 = vmatprep.subr.bf16.mxu0 0
        %4043 = vmatpush1.bf16.msra.mxu0 %v3823
        %4044 = vmatprep.subr.bf16.mxu0 0
        %4045 = vmatpush1.bf16.msra.mxu0 %v3824
        %4046 = vmatprep.subr.bf16.mxu0 0
        %4047 = vmatpush1.bf16.msra.mxu0 %v3825
        %4048 = vmatprep.subr.bf16.mxu0 0
        %4049 = vmatpush1.bf16.msra.mxu0 %v3826
        %4050 = vmatprep.subr.bf16.mxu0 0
        %4051 = vmatpush1.bf16.msra.mxu0 %v3827
        %4052 = vmatprep.subr.bf16.mxu0 0
        %4053 = vmatpush1.bf16.msra.mxu0 %v3828
        %4054 = vmatprep.mubr.bf16.mxu0 %v3536
        %4055 = vmatmul.mubr.bf16.gmra.mrb[0].mxu0 %v3440
        %v4056 = vpop.f32.mrb[0].mxu0
        %v4057 = vadd.f32 %v3896, %v4056
        %v4058 = vpop.f32.mrb[0].mxu0
        %v4059 = vpop.f32.mrb[0].mxu0
        %v4060 = vadd.f32 %v3899, %v4059
        %v4061 = vpop.f32.mrb[0].mxu0
        %4062 = vmatprep.mubr.bf16.mxu0 %v3539
        %4063 = vmatmul.mubr.bf16.gmra.mrb[0].mxu0 %v3443
        %v4064 = vpop.f32.mrb[0].mxu0
        %v4065 = vadd.f32 %v3904, %v4064
        %v4066 = vpop.f32.mrb[0].mxu0
        %v4067 = vpop.f32.mrb[0].mxu0
        %v4068 = vadd.f32 %v3907, %v4067
        %v4069 = vpop.f32.mrb[0].mxu0
        %4070 = vmatprep.mubr.bf16.mxu0 %v3542
        %4071 = vmatmul.mubr.bf16.gmra.mrb[0].mxu0 %v3446
        %v4072 = vpop.f32.mrb[0].mxu0
        %v4073 = vadd.f32 %v3912, %v4072
        %v4074 = vpop.f32.mrb[0].mxu0
        %v4075 = vpop.f32.mrb[0].mxu0
        %v4076 = vadd.f32 %v3915, %v4075
        %v4077 = vpop.f32.mrb[0].mxu0
        %4078 = vmatprep.mubr.bf16.mxu0 %v3545
        %4079 = vmatmul.mubr.bf16.gmra.mrb[0].mxu0 %v3449
        %v4080 = vpop.f32.mrb[0].mxu0
        %v4081 = vadd.f32 %v3920, %v4080
        %v4082 = vpop.f32.mrb[0].mxu0
        %v4083 = vpop.f32.mrb[0].mxu0
        %v4084 = vadd.f32 %v3923, %v4083
        %v4085 = vpop.f32.mrb[0].mxu0
        %4086 = vmatprep.mubr.bf16.mxu0 %v3548
        %4087 = vmatmul.mubr.bf16.gmra.mrb[0].mxu0 %v3452
        %v4088 = vpop.f32.mrb[0].mxu0
        %v4089 = vadd.f32 %v3928, %v4088
        %v4090 = vpop.f32.mrb[0].mxu0
        %v4091 = vpop.f32.mrb[0].mxu0
        %v4092 = vadd.f32 %v3931, %v4091
        %v4093 = vpop.f32.mrb[0].mxu0
        %4094 = vmatprep.mubr.bf16.mxu0 %v3551
        %4095 = vmatmul.mubr.bf16.gmra.mrb[0].mxu0 %v3455
        %v4096 = vpop.f32.mrb[0].mxu0
        %v4097 = vadd.f32 %v3936, %v4096
        %v4098 = vpop.f32.mrb[0].mxu0
        %v4099 = vpop.f32.mrb[0].mxu0
        %v4100 = vadd.f32 %v3939, %v4099
        %v4101 = vpop.f32.mrb[0].mxu0
        %4102 = vmatprep.mubr.bf16.mxu0 %v3554
        %4103 = vmatmul.mubr.bf16.gmra.mrb[0].mxu0 %v3458
        %v4104 = vpop.f32.mrb[0].mxu0
        %v4105 = vadd.f32 %v3944, %v4104
        %v4106 = vpop.f32.mrb[0].mxu0
        %v4107 = vpop.f32.mrb[0].mxu0
        %v4108 = vadd.f32 %v3947, %v4107
        %v4109 = vpop.f32.mrb[0].mxu0
        %4110 = vmatprep.mubr.bf16.mxu0 %v3557
        %4111 = vmatmul.mubr.bf16.gmra.mrb[0].mxu0 %v3461
        %v4112 = vpop.f32.mrb[0].mxu0
        %v4113 = vadd.f32 %v3952, %v4112
        %v4114 = vpop.f32.mrb[0].mxu0
        %v4115 = vpop.f32.mrb[0].mxu0
        %v4116 = vadd.f32 %v3955, %v4115
        %v4117 = vpop.f32.mrb[0].mxu0
        %4118 = vmatprep.mubr.bf16.mxu0 %v3560
        %4119 = vmatmul.mubr.bf16.gmra.mrb[0].mxu0 %v3464
        %v4120 = vpop.f32.mrb[0].mxu0
        %v4121 = vadd.f32 %v3960, %v4120
        %v4122 = vpop.f32.mrb[0].mxu0
        %v4123 = vpop.f32.mrb[0].mxu0
        %v4124 = vadd.f32 %v3963, %v4123
        %v4125 = vpop.f32.mrb[0].mxu0
        %4126 = vmatprep.mubr.bf16.mxu0 %v3563
        %4127 = vmatmul.mubr.bf16.gmra.mrb[0].mxu0 %v3467
        %v4128 = vpop.f32.mrb[0].mxu0
        %v4129 = vadd.f32 %v3968, %v4128
        %v4130 = vpop.f32.mrb[0].mxu0
        %v4131 = vpop.f32.mrb[0].mxu0
        %v4132 = vadd.f32 %v3971, %v4131
        %v4133 = vpop.f32.mrb[0].mxu0
        %4134 = vmatprep.mubr.bf16.mxu0 %v3566
        %4135 = vmatmul.mubr.bf16.gmra.mrb[0].mxu0 %v3470
        %v4136 = vpop.f32.mrb[0].mxu0
        %v4137 = vadd.f32 %v3976, %v4136
        %v4138 = vpop.f32.mrb[0].mxu0
        %v4139 = vpop.f32.mrb[0].mxu0
        %v4140 = vadd.f32 %v3979, %v4139
        %v4141 = vpop.f32.mrb[0].mxu0
        %4142 = vmatprep.mubr.bf16.mxu0 %v3569
        %4143 = vmatmul.mubr.bf16.gmra.mrb[0].mxu0 %v3473
        %v4144 = vpop.f32.mrb[0].mxu0
        %v4145 = vadd.f32 %v3984, %v4144
        %v4146 = vpop.f32.mrb[0].mxu0
        %v4147 = vpop.f32.mrb[0].mxu0
        %v4148 = vadd.f32 %v3987, %v4147
        %v4149 = vpop.f32.mrb[0].mxu0
        %4150 = vmatprep.mubr.bf16.mxu0 %v3572
        %4151 = vmatmul.mubr.bf16.gmra.mrb[0].mxu0 %v3476
        %v4152 = vpop.f32.mrb[0].mxu0
        %v4153 = vadd.f32 %v3992, %v4152
        %v4154 = vpop.f32.mrb[0].mxu0
        %v4155 = vpop.f32.mrb[0].mxu0
        %v4156 = vadd.f32 %v3995, %v4155
        %v4157 = vpop.f32.mrb[0].mxu0
        %4158 = vmatprep.mubr.bf16.mxu0 %v3575
        %4159 = vmatmul.mubr.bf16.gmra.mrb[0].mxu0 %v3479
        %v4160 = vpop.f32.mrb[0].mxu0
        %v4161 = vadd.f32 %v4000, %v4160
        %v4162 = vpop.f32.mrb[0].mxu0
        %v4163 = vpop.f32.mrb[0].mxu0
        %v4164 = vadd.f32 %v4003, %v4163
        %v4165 = vpop.f32.mrb[0].mxu0
        %4166 = vmatprep.mubr.bf16.mxu0 %v3578
        %4167 = vmatmul.mubr.bf16.gmra.mrb[0].mxu0 %v3482
        %v4168 = vpop.f32.mrb[0].mxu0
        %v4169 = vadd.f32 %v4008, %v4168
        %v4170 = vpop.f32.mrb[0].mxu0
        %v4171 = vpop.f32.mrb[0].mxu0
        %v4172 = vadd.f32 %v4011, %v4171
        %v4173 = vpop.f32.mrb[0].mxu0
        %4174 = vmatprep.mubr.bf16.mxu0 %v3581
        %4175 = vmatmul.mubr.bf16.gmra.mrb[0].mxu0 %v3485
        %v4176 = vpop.f32.mrb[0].mxu0
        %v4177 = vadd.f32 %v4016, %v4176
        %v4178 = vpop.f32.mrb[0].mxu0
        %v4179 = vpop.f32.mrb[0].mxu0
        %v4180 = vadd.f32 %v4019, %v4179
        %v4181 = vpop.f32.mrb[0].mxu0
        %4182 = vdwg.mxu0
        %v4183 = vxor.u32 %v4057, 2147483648
        %v4184 = vxor.u32 %v4060, 2147483648
        %v4185 = vxor.u32 %v4065, 2147483648
        %v4186 = vxor.u32 %v4068, 2147483648
        %v4187 = vxor.u32 %v4073, 2147483648
        %v4188 = vxor.u32 %v4076, 2147483648
        %v4189 = vxor.u32 %v4081, 2147483648
        %v4190 = vxor.u32 %v4084, 2147483648
        %v4191 = vxor.u32 %v4089, 2147483648
        %v4192 = vxor.u32 %v4092, 2147483648
        %v4193 = vxor.u32 %v4097, 2147483648
        %v4194 = vxor.u32 %v4100, 2147483648
        %v4195 = vxor.u32 %v4105, 2147483648
        %v4196 = vxor.u32 %v4108, 2147483648
        %v4197 = vxor.u32 %v4113, 2147483648
        %v4198 = vxor.u32 %v4116, 2147483648
        %v4199 = vxor.u32 %v4121, 2147483648
        %v4200 = vxor.u32 %v4124, 2147483648
        %v4201 = vxor.u32 %v4129, 2147483648
        %v4202 = vxor.u32 %v4132, 2147483648
        %v4203 = vxor.u32 %v4137, 2147483648
        %v4204 = vxor.u32 %v4140, 2147483648
        %v4205 = vxor.u32 %v4145, 2147483648
        %v4206 = vxor.u32 %v4148, 2147483648
        %v4207 = vxor.u32 %v4153, 2147483648
        %v4208 = vxor.u32 %v4156, 2147483648
        %v4209 = vxor.u32 %v4161, 2147483648
        %v4210 = vxor.u32 %v4164, 2147483648
        %v4211 = vxor.u32 %v4169, 2147483648
        %v4212 = vxor.u32 %v4172, 2147483648
        %v4213 = vxor.u32 %v4177, 2147483648
        %v4214 = vxor.u32 %v4180, 2147483648
        %v4215 = vmul.f32 %v4183, 1.442695
        %v4216 = vpow.pop %v4215
        %v4217 = vmul.f32 %v4184, 1.442695
        %v4218 = vpow.pop %v4217
        %v4219 = vmul.f32 %v4185, 1.442695
        %v4220 = vpow.pop %v4219
        %v4221 = vmul.f32 %v4186, 1.442695
        %v4222 = vpow.pop %v4221
        %v4223 = vmul.f32 %v4187, 1.442695
        %v4224 = vpow.pop %v4223
        %v4225 = vmul.f32 %v4188, 1.442695
        %v4226 = vpow.pop %v4225
        %v4227 = vmul.f32 %v4189, 1.442695
        %v4228 = vpow.pop %v4227
        %v4229 = vmul.f32 %v4190, 1.442695
        %v4230 = vpow.pop %v4229
        %v4231 = vmul.f32 %v4191, 1.442695
        %v4232 = vpow.pop %v4231
        %v4233 = vmul.f32 %v4192, 1.442695
        %v4234 = vpow.pop %v4233
        %v4235 = vmul.f32 %v4193, 1.442695
        %v4236 = vpow.pop %v4235
        %v4237 = vmul.f32 %v4194, 1.442695
        %v4238 = vpow.pop %v4237
        %v4239 = vmul.f32 %v4195, 1.442695
        %v4240 = vpow.pop %v4239
        %v4241 = vmul.f32 %v4196, 1.442695
        %v4242 = vpow.pop %v4241
        %v4243 = vmul.f32 %v4197, 1.442695
        %v4244 = vpow.pop %v4243
        %v4245 = vmul.f32 %v4198, 1.442695
        %v4246 = vpow.pop %v4245
        %v4247 = vmul.f32 %v4199, 1.442695
        %v4248 = vpow.pop %v4247
        %v4249 = vmul.f32 %v4200, 1.442695
        %v4250 = vpow.pop %v4249
        %v4251 = vmul.f32 %v4201, 1.442695
        %v4252 = vpow.pop %v4251
        %v4253 = vmul.f32 %v4202, 1.442695
        %v4254 = vpow.pop %v4253
        %v4255 = vmul.f32 %v4203, 1.442695
        %v4256 = vpow.pop %v4255
        %v4257 = vmul.f32 %v4204, 1.442695
        %v4258 = vpow.pop %v4257
        %v4259 = vmul.f32 %v4205, 1.442695
        %v4260 = vpow.pop %v4259
        %v4261 = vmul.f32 %v4206, 1.442695
        %v4262 = vpow.pop %v4261
        %v4263 = vmul.f32 %v4207, 1.442695
        %v4264 = vpow.pop %v4263
        %v4265 = vmul.f32 %v4208, 1.442695
        %v4266 = vpow.pop %v4265
        %v4267 = vmul.f32 %v4209, 1.442695
        %v4268 = vpow.pop %v4267
        %v4269 = vmul.f32 %v4210, 1.442695
        %v4270 = vpow.pop %v4269
        %v4271 = vmul.f32 %v4211, 1.442695
        %v4272 = vpow.pop %v4271
        %v4273 = vmul.f32 %v4212, 1.442695
        %v4274 = vpow.pop %v4273
        %v4275 = vmul.f32 %v4213, 1.442695
        %v4276 = vpow.pop %v4275
        %v4277 = vmul.f32 %v4214, 1.442695
        %v4278 = vpow.pop %v4277
        %v4279 = vadd.f32 %v4216, 1.0
        %v4280 = vadd.f32 %v4218, 1.0
        %v4281 = vadd.f32 %v4220, 1.0
        %v4282 = vadd.f32 %v4222, 1.0
        %v4283 = vadd.f32 %v4224, 1.0
        %v4284 = vadd.f32 %v4226, 1.0
        %v4285 = vadd.f32 %v4228, 1.0
        %v4286 = vadd.f32 %v4230, 1.0
        %v4287 = vadd.f32 %v4232, 1.0
        %v4288 = vadd.f32 %v4234, 1.0
        %v4289 = vadd.f32 %v4236, 1.0
        %v4290 = vadd.f32 %v4238, 1.0
        %v4291 = vadd.f32 %v4240, 1.0
        %v4292 = vadd.f32 %v4242, 1.0
        %v4293 = vadd.f32 %v4244, 1.0
        %v4294 = vadd.f32 %v4246, 1.0
        %v4295 = vadd.f32 %v4248, 1.0
        %v4296 = vadd.f32 %v4250, 1.0
        %v4297 = vadd.f32 %v4252, 1.0
        %v4298 = vadd.f32 %v4254, 1.0
        %v4299 = vadd.f32 %v4256, 1.0
        %v4300 = vadd.f32 %v4258, 1.0
        %v4301 = vadd.f32 %v4260, 1.0
        %v4302 = vadd.f32 %v4262, 1.0
        %v4303 = vadd.f32 %v4264, 1.0
        %v4304 = vadd.f32 %v4266, 1.0
        %v4305 = vadd.f32 %v4268, 1.0
        %v4306 = vadd.f32 %v4270, 1.0
        %v4307 = vadd.f32 %v4272, 1.0
        %v4308 = vadd.f32 %v4274, 1.0
        %v4309 = vadd.f32 %v4276, 1.0
        %v4310 = vadd.f32 %v4278, 1.0
        %v4311 = vrcp.pop %v4279
        %v4312 = vmul.f32 1.0, %v4311
        %v4313 = vrcp.pop %v4280
        %v4314 = vmul.f32 1.0, %v4313
        %v4315 = vrcp.pop %v4281
        %v4316 = vmul.f32 1.0, %v4315
        %v4317 = vrcp.pop %v4282
        %v4318 = vmul.f32 1.0, %v4317
        %v4319 = vrcp.pop %v4283
        %v4320 = vmul.f32 1.0, %v4319
        %v4321 = vrcp.pop %v4284
        %v4322 = vmul.f32 1.0, %v4321
        %v4323 = vrcp.pop %v4285
        %v4324 = vmul.f32 1.0, %v4323
        %v4325 = vrcp.pop %v4286
        %v4326 = vmul.f32 1.0, %v4325
        %v4327 = vrcp.pop %v4287
        %v4328 = vmul.f32 1.0, %v4327
        %v4329 = vrcp.pop %v4288
        %v4330 = vmul.f32 1.0, %v4329
        %v4331 = vrcp.pop %v4289
        %v4332 = vmul.f32 1.0, %v4331
        %v4333 = vrcp.pop %v4290
        %v4334 = vmul.f32 1.0, %v4333
        %v4335 = vrcp.pop %v4291
        %v4336 = vmul.f32 1.0, %v4335
        %v4337 = vrcp.pop %v4292
        %v4338 = vmul.f32 1.0, %v4337
        %v4339 = vrcp.pop %v4293
        %v4340 = vmul.f32 1.0, %v4339
        %v4341 = vrcp.pop %v4294
        %v4342 = vmul.f32 1.0, %v4341
        %v4343 = vrcp.pop %v4295
        %v4344 = vmul.f32 1.0, %v4343
        %v4345 = vrcp.pop %v4296
        %v4346 = vmul.f32 1.0, %v4345
        %v4347 = vrcp.pop %v4297
        %v4348 = vmul.f32 1.0, %v4347
        %v4349 = vrcp.pop %v4298
        %v4350 = vmul.f32 1.0, %v4349
        %v4351 = vrcp.pop %v4299
        %v4352 = vmul.f32 1.0, %v4351
        %v4353 = vrcp.pop %v4300
        %v4354 = vmul.f32 1.0, %v4353
        %v4355 = vrcp.pop %v4301
        %v4356 = vmul.f32 1.0, %v4355
        %v4357 = vrcp.pop %v4302
        %v4358 = vmul.f32 1.0, %v4357
        %v4359 = vrcp.pop %v4303
        %v4360 = vmul.f32 1.0, %v4359
        %v4361 = vrcp.pop %v4304
        %v4362 = vmul.f32 1.0, %v4361
        %v4363 = vrcp.pop %v4305
        %v4364 = vmul.f32 1.0, %v4363
        %v4365 = vrcp.pop %v4306
        %v4366 = vmul.f32 1.0, %v4365
        %v4367 = vrcp.pop %v4307
        %v4368 = vmul.f32 1.0, %v4367
        %v4369 = vrcp.pop %v4308
        %v4370 = vmul.f32 1.0, %v4369
        %v4371 = vrcp.pop %v4309
        %v4372 = vmul.f32 1.0, %v4371
        %v4373 = vrcp.pop %v4310
        %v4374 = vmul.f32 1.0, %v4373
        %v4375 = vmul.f32 %v4057, %v4312
        %v4376 = vmul.f32 %v4060, %v4314
        %v4377 = vmul.f32 %v4065, %v4316
        %v4378 = vmul.f32 %v4068, %v4318
        %v4379 = vmul.f32 %v4073, %v4320
        %v4380 = vmul.f32 %v4076, %v4322
        %v4381 = vmul.f32 %v4081, %v4324
        %v4382 = vmul.f32 %v4084, %v4326
        %v4383 = vmul.f32 %v4089, %v4328
        %v4384 = vmul.f32 %v4092, %v4330
        %v4385 = vmul.f32 %v4097, %v4332
        %v4386 = vmul.f32 %v4100, %v4334
        %v4387 = vmul.f32 %v4105, %v4336
        %v4388 = vmul.f32 %v4108, %v4338
        %v4389 = vmul.f32 %v4113, %v4340
        %v4390 = vmul.f32 %v4116, %v4342
        %v4391 = vmul.f32 %v4121, %v4344
        %v4392 = vmul.f32 %v4124, %v4346
        %v4393 = vmul.f32 %v4129, %v4348
        %v4394 = vmul.f32 %v4132, %v4350
        %v4395 = vmul.f32 %v4137, %v4352
        %v4396 = vmul.f32 %v4140, %v4354
        %v4397 = vmul.f32 %v4145, %v4356
        %v4398 = vmul.f32 %v4148, %v4358
        %v4399 = vmul.f32 %v4153, %v4360
        %v4400 = vmul.f32 %v4156, %v4362
        %v4401 = vmul.f32 %v4161, %v4364
        %v4402 = vmul.f32 %v4164, %v4366
        %v4403 = vmul.f32 %v4169, %v4368
        %v4404 = vmul.f32 %v4172, %v4370
        %v4405 = vmul.f32 %v4177, %v4372
        %v4406 = vmul.f32 %v4180, %v4374
        %4407 = vst [vmem:[%s217] sm:$0xff] %v4375
        %4408 = vst [vmem:[%s217 + $0x8] sm:$0xff] %v4376
        %4409 = vst [vmem:[%s217 + $0x10] sm:$0xff] %v4377
        %4410 = vst [vmem:[%s217 + $0x18] sm:$0xff] %v4378
        %4411 = vst [vmem:[%s217 + $0x20] sm:$0xff] %v4379
        %4412 = vst [vmem:[%s217 + $0x28] sm:$0xff] %v4380
        %4413 = vst [vmem:[%s217 + $0x30] sm:$0xff] %v4381
        %4414 = vst [vmem:[%s217 + $0x38] sm:$0xff] %v4382
        %4415 = vst [vmem:[%s217 + $0x40] sm:$0xff] %v4383
        %4416 = vst [vmem:[%s217 + $0x48] sm:$0xff] %v4384
        %4417 = vst [vmem:[%s217 + $0x50] sm:$0xff] %v4385
        %4418 = vst [vmem:[%s217 + $0x58] sm:$0xff] %v4386
        %4419 = vst [vmem:[%s217 + $0x60] sm:$0xff] %v4387
        %4420 = vst [vmem:[%s217 + $0x68] sm:$0xff] %v4388
        %4421 = vst [vmem:[%s217 + $0x70] sm:$0xff] %v4389
        %4422 = vst [vmem:[%s217 + $0x78] sm:$0xff] %v4390
        %4423 = vst [vmem:[%s217 + $0x80] sm:$0xff] %v4391
        %4424 = vst [vmem:[%s217 + $0x88] sm:$0xff] %v4392
        %4425 = vst [vmem:[%s217 + $0x90] sm:$0xff] %v4393
        %4426 = vst [vmem:[%s217 + $0x98] sm:$0xff] %v4394
        %4427 = vst [vmem:[%s217 + $0xa0] sm:$0xff] %v4395
        %4428 = vst [vmem:[%s217 + $0xa8] sm:$0xff] %v4396
        %4429 = vst [vmem:[%s217 + $0xb0] sm:$0xff] %v4397
        %4430 = vst [vmem:[%s217 + $0xb8] sm:$0xff] %v4398
        %4431 = vst [vmem:[%s217 + $0xc0] sm:$0xff] %v4399
        %4432 = vst [vmem:[%s217 + $0xc8] sm:$0xff] %v4400
        %4433 = vst [vmem:[%s217 + $0xd0] sm:$0xff] %v4401
        %4434 = vst [vmem:[%s217 + $0xd8] sm:$0xff] %v4402
        %4435 = vst [vmem:[%s217 + $0xe0] sm:$0xff] %v4403
        %4436 = vst [vmem:[%s217 + $0xe8] sm:$0xff] %v4404
        %4437 = vst [vmem:[%s217 + $0xf0] sm:$0xff] %v4405
        %4438 = vst [vmem:[%s217 + $0xf8] sm:$0xff] %v4406
        %s4439 = sand.u32 %s137, 1
        %s4440 = scalar_lea.sflag [#allocation4], %s4439
        %s4441 = sand.u32 %s137, 1
        %s4442 = smul.addr %s4441, 256
        %s4443 = scalar_lea.vmem [#allocation3], %s4442
        // Predicated region
        $region41: #{tpu_custom_call.1} parent=39 // pred_check
          %p4444 = pneg %p147
        $region42: #{tpu_custom_call.1} parent=39 // pred_check_branch
          %4446 = sbr.rel (%p4444) target = $region44
        $region43: #{tpu_custom_call.1} parent=39 // pred_region
          %s4448 = ssub.s32 4096, 4096
          %4449 = vsyncadd %s4440, %s4448
          %s4450 = smul.addr %s19, 32
          %s4451 = smul.addr %s4450, 128
          %s4452 = scalar_lea.hbm %s5, %s4451
          %s4453 = sshll.u32 %s4443, 4
          %s4454 = int_to_ptr.vmem [resolvable:$true] %s4453
          %4459 = dma.vmem_to_hbm [thread:$0]  %s4454, 4096, %s4452, %s4440, 128, 128, 8
        $region44: #{tpu_custom_call.1} parent=39 // pred_fallthru
          _
      $region40: #{tpu_custom_call.1} parent=5 // pred_fallthru
        _
      %p4460 = scmp.le.s32.totalorder 2, %s14
      // Predicated region
      $region45: #{tpu_custom_call.1} parent=5 // pred_check
        %p4461 = pneg %p4460
      $region46: #{tpu_custom_call.1} parent=5 // pred_check_branch
        %4463 = sbr.rel (%p4461) target = $region48
      $region47: #{tpu_custom_call.1} parent=5 // pred_region
        %s4464 = ssub.s32 %s14, 2
        // Predicated region
        $region49: #{tpu_custom_call.1} parent=47 // pred_check
          %p4465 = pneg %p153
        $region50: #{tpu_custom_call.1} parent=47 // pred_check_branch
          %4467 = sbr.rel (%p4465) target = $region52
        $region51: #{tpu_custom_call.1} parent=47 // pred_region
          %s4468 = sand.u32 %s138, 1
          %s4469 = scalar_lea.sflag [#allocation4], %s4468
          %s4470 = sand.u32 %s138, 1
          %s4471 = smul.addr %s4470, 256
          %s4472 = scalar_lea.vmem [#allocation3], %s4471
          %4473 = dma.done %s4469, 4096
        $region52: #{tpu_custom_call.1} parent=47 // pred_fallthru
          _
      $region48: #{tpu_custom_call.1} parent=5 // pred_fallthru
        _
    $region6: #{tpu_custom_call.1} parent=1 // loop_footer
      %s18 = sadd.s32 1, %s14
    $region7: #{tpu_custom_call.1} parent=1 // loop_footer_branch
      %13 = sbr.rel target = $region3
    $region8: #{tpu_custom_call.1} parent=1 // loop_exit
      _
    %4474 = vsyncpa [#allocation4], 1
    %s4475 = scalar_lea.sflag [#allocation4], 1
    %4476 = vsyncpa %s4475, 1

</llo_original>
